<compile_context>
chip_gen: v7x
topology: tpu7x:2x2x1
jax: 0.10.0
libtpu: 0.0.40
codegen_flags: <defaults>
</compile_context>

<pallas_src>
import functools
import math

import jax
import jax.numpy as jnp
from jax.experimental import pallas as pl
from jax.experimental.pallas import tpu as pltpu


def _silu(v):
    # sigmoid = 1 / (1 + exp(-v)); exp and the reciprocal both run on the EUP slot.
    return v * pl.reciprocal(1.0 + jnp.exp(-v), approx=True)


def c3_kernel(H, W, T,
              x_ref, xp_ref, xn_ref,
              w12_ref, b12_ref, wm1_ref, bm1_ref,
              wt_ref, bm2_ref, w3_ref, b3_ref, o_ref):
    """One (batch, row-band) step: T flat rows plus a +-W-row halo, channels last."""
    HW = H * W
    c_ = wm1_ref.shape[1]
    E = T + 2 * W                         # extended (haloed) row count
    f32 = jnp.float32
    bf16 = jnp.bfloat16

    # [prev halo | band | next halo] along the flattened (h*W + w) row axis.
    x_ext = jnp.concatenate([xp_ref[0], x_ref[0], xn_ref[0]], axis=0)      # (E, c1) bf16

    # cv1|cv2 fused 1x1 conv (+ folded BN) + SiLU  ->  ab = [a | b].
    ab = _silu(jnp.dot(x_ext, w12_ref[...], preferred_element_type=f32)
               + b12_ref[...])                                             # (E, 2c_) f32
    ab16 = ab.astype(bf16)

    # Bottleneck cv1 (1x1); wm1 is zero-padded to K=2c_ so ab is used unsliced.
    m1 = _silu(jnp.dot(ab16, wm1_ref[...], preferred_element_type=f32)
               + bm1_ref[...])                                             # (E, c_) f32

    # ---- Bottleneck cv2: 3x3 same-padded conv as shifted channel matmuls ----
    # Global flat-row index of every extended row.  Halo rows at image borders hold
    # clamped (wrong) data, but every tap that could read them is masked below.
    e_row = jax.lax.broadcasted_iota(jnp.int32, (E, 1), 0)
    g_row = pl.program_id(1) * T - W + e_row
    w_idx = e_row % W                                   # == g_row % W for in-image rows

    # dx-shifted, width-masked copies of m1 (shared by all three dy taps).
    s_m = jnp.where(w_idx >= 1, pltpu.roll(m1, 1, axis=0), 0.0).astype(bf16)      # m1[e-1]
    s_p = jnp.where(w_idx <= W - 2, pltpu.roll(m1, E - 1, axis=0), 0.0).astype(bf16)  # m1[e+1]
    m1_16 = m1.astype(bf16)

    # Three K=c_ matmuls; column block j of P is the dy = j-1 partial sum.
    P = (jnp.dot(s_m, wt_ref[0], preferred_element_type=f32)
         + jnp.dot(m1_16, wt_ref[1], preferred_element_type=f32)
         + jnp.dot(s_p, wt_ref[2], preferred_element_type=f32))            # (E, 3c_) f32

    acc = P[:, c_:2 * c_]                                                  # dy = 0
    acc = acc + jnp.where(g_row >= W,
                          pltpu.roll(P[:, :c_], W, axis=0), 0.0)           # dy = -1
    acc = acc + jnp.where(g_row < HW - W,
                          pltpu.roll(P[:, 2 * c_:], E - W, axis=0), 0.0)   # dy = +1
    m2 = _silu(acc + bm2_ref[...])                                         # (E, c_)

    # cv3 on cat([a + m2, b]) without building the concat or the shortcut add:
    #   cat([a + m2, b]) @ w3 = ab @ w3 + m2 @ w3[:c_, :]
    ab_mid = ab16[W:W + T, :]
    m2_mid = m2[W:W + T, :].astype(bf16)
    y = (jnp.dot(ab_mid, w3_ref[...], preferred_element_type=f32)
         + jnp.dot(m2_mid, w3_ref[:c_, :], preferred_element_type=f32)
         + b3_ref[...])
    o_ref[0] = _silu(y)                                  # lane-dense (T, c2) f32 store


def _pick_row_tile(HW, W):
    """Row-band size: multiple of W, divides H*W, ~2K flat rows, >=2 bands if possible."""
    target = min(2048, HW // 2) if HW >= 2 * W else HW
    T = max(W, (target // W) * W)
    while HW % T:
        T -= W
    return T


def c3_forward(x_nhwc, w_cv1, b_cv1, w_cv2, b_cv2,
               w_m1, b_m1, w_m2_hwio, b_m2, w_cv3, b_cv3, *, row_tile=None):
    """x_nhwc: (B,H,W,c1) f32 (NHWC view of the PyTorch NCHW input). BN pre-folded."""
    B, H, W, c1 = x_nhwc.shape
    c_ = w_cv1.shape[1]
    c2 = w_cv3.shape[1]
    HW = H * W
    assert W % 8 == 0, "image width must be a multiple of 8 (sublane-tiled halo blocks)"

    T = _pick_row_tile(HW, W) if row_tile is None else row_tile
    assert T % W == 0 and HW % T == 0
    R = HW // T            # row bands per image (grid steps per image)
    k = T // W             # image rows per band
    n_wblk = HW // W       # number of W-row blocks per image (halo index range)

    bf16 = jnp.bfloat16
    x_flat = x_nhwc.reshape(B, HW, c1).astype(bf16)

    # ---- Host-side weight prep (BN already folded): bf16 weights, f32 biases ----
    w12 = jnp.concatenate([w_cv1, w_cv2], axis=1).astype(bf16)             # (c1, 2c_)
    b12 = jnp.concatenate([b_cv1, b_cv2]).reshape(1, 2 * c_)
    wm1p = jnp.concatenate([w_m1, jnp.zeros_like(w_m1)], axis=0).astype(bf16)  # (2c_, c_)
    bm1 = b_m1.reshape(1, c_)
    # (ky,kx,ci,co) HWIO -> per-kx weight stacks (ci, 3*co) with columns ordered by ky.
    wtap = jnp.transpose(w_m2_hwio, (1, 2, 0, 3)).reshape(3, c_, 3 * c_).astype(bf16)
    bm2 = b_m2.reshape(1, c_)
    w3 = w_cv3.astype(bf16)                                                # (2c_, c2)
    b3 = b_cv3.reshape(1, c2)

    kernel = functools.partial(c3_kernel, H, W, T)
    cmap2 = lambda b, r: (0, 0)
    cmap3 = lambda b, r: (0, 0, 0)

    out = pl.pallas_call(
        kernel,
        out_shape=jax.ShapeDtypeStruct((B, HW, c2), jnp.float32),
        grid_spec=pltpu.PrefetchScalarGridSpec(
            num_scalar_prefetch=0,
            grid=(B, R),
            in_specs=[
                # row band + one-image-row halos (clamped at image borders; any
                # garbage they carry is zeroed by the in-kernel h/w border masks).
                pl.BlockSpec((1, T, c1), lambda b, r: (b, r, 0)),
                pl.BlockSpec((1, W, c1),
                             lambda b, r: (b, jnp.maximum(r * k - 1, 0), 0)),
                pl.BlockSpec((1, W, c1),
                             lambda b, r: (b, jnp.minimum((r + 1) * k, n_wblk - 1), 0)),
                pl.BlockSpec((c1, 2 * c_), cmap2),      # cv1|cv2 fused weights
                pl.BlockSpec((1, 2 * c_), cmap2),       # cv1|cv2 fused bias
                pl.BlockSpec((2 * c_, c_), cmap2),      # m.cv1 weights (K zero-padded)
                pl.BlockSpec((1, c_), cmap2),           # m.cv1 bias
                pl.BlockSpec((3, c_, 3 * c_), cmap3),   # m.cv2 3x3 taps, dy-stacked per dx
                pl.BlockSpec((1, c_), cmap2),           # m.cv2 bias
                pl.BlockSpec((2 * c_, c2), cmap2),      # cv3 weights
                pl.BlockSpec((1, c2), cmap2),           # cv3 bias
            ],
            out_specs=pl.BlockSpec((1, T, c2), lambda b, r: (b, r, 0)),
        ),
        compiler_params=pltpu.CompilerParams(
            dimension_semantics=("parallel", "parallel")),
    )(x_flat, x_flat, x_flat, w12, b12, wm1p, bm1, wtap, bm2, w3, b3)

    return out.reshape(B, H, W, c2)


def c3_reference(x, w_cv1, b_cv1, w_cv2, b_cv2, w_m1, b_m1, w_m2, b_m2, w_cv3, b_cv3):
    """Pure-JAX f32 reference mirroring the PyTorch graph."""
    def silu(v):
        return v * jax.nn.sigmoid(v)
    a = silu(x @ w_cv1 + b_cv1)
    b = silu(x @ w_cv2 + b_cv2)
    m1 = silu(a @ w_m1 + b_m1)
    conv = jax.lax.conv_general_dilated(
        m1, w_m2, window_strides=(1, 1), padding="SAME",
        dimension_numbers=("NHWC", "HWIO", "NHWC"))
    m2 = silu(conv + b_m2)
    m = a + m2
    cat = jnp.concatenate([m, b], axis=-1)
    return silu(cat @ w_cv3 + b_cv3)


def make_conv_bn(key, shape_w, c_out, eps=1e-5):
    """Random Conv (bias=False) + BatchNorm params, folded into (weight, bias)."""
    kw, kg, kb, km, kv = jax.random.split(key, 5)
    fan_in = math.prod(shape_w[:-1])
    w = jax.random.normal(kw, shape_w, jnp.float32) * (1.0 / math.sqrt(fan_in))
    gamma = jax.random.uniform(kg, (c_out,), jnp.float32, 0.5, 1.5)
    beta = jax.random.normal(kb, (c_out,), jnp.float32) * 0.1
    mean = jax.random.normal(km, (c_out,), jnp.float32) * 0.1
    var = jax.random.uniform(kv, (c_out,), jnp.float32, 0.5, 1.5)
    scale = gamma / jnp.sqrt(var + eps)
    return w * scale, beta - mean * scale


if __name__ == "__main__":
    key = jax.random.PRNGKey(0)
    kx, k1, k2, k3, k4, k5 = jax.random.split(key, 6)

    B, H, W = 2, 16, 16
    c1 = c2 = 128          # realistic YOLOv5 C3 width; keeps the output lane-dense
    c_ = c2 // 2           # e = 0.5 -> 64

    # Feature-map input (NHWC view of the PyTorch NCHW (B, c1, H, W) tensor).
    x = jax.random.normal(kx, (B, H, W, c1), jnp.float32)

    w_cv1, b_cv1 = make_conv_bn(k1, (c1, c_), c_)
    w_cv2, b_cv2 = make_conv_bn(k2, (c1, c_), c_)
    w_m1, b_m1 = make_conv_bn(k3, (c_, c_), c_)
    w_m2, b_m2 = make_conv_bn(k4, (3, 3, c_, c_), c_)       # HWIO
    w_cv3, b_cv3 = make_conv_bn(k5, (2 * c_, c2), c2)

    y = c3_forward(x, w_cv1, b_cv1, w_cv2, b_cv2, w_m1, b_m1, w_m2, b_m2, w_cv3, b_cv3)
    jax.block_until_ready(y)

    y_ref = c3_reference(x, w_cv1, b_cv1, w_cv2, b_cv2, w_m1, b_m1, w_m2, b_m2,
                         w_cv3, b_cv3)
    assert y.shape == (B, H, W, c2)
    max_err = float(jnp.max(jnp.abs(y - y_ref)))
    # Kernel uses bf16 MXU inputs (f32 accumulation) vs. the all-f32 reference.
    assert jnp.allclose(y, y_ref, atol=3e-2, rtol=3e-2), max_err

    print("KERNEL_OK")
</pallas_src>

<mosaic_0001>
module attributes {stable_mosaic.version = 11 : i64} {
  func.func @c3_kernel(%arg0: i32, %arg1: i32, %arg2: memref<1x128x128xbf16, #tpu.memory_space<vmem>>, %arg3: memref<1x16x128xbf16, #tpu.memory_space<vmem>>, %arg4: memref<1x16x128xbf16, #tpu.memory_space<vmem>>, %arg5: memref<128x128xbf16, #tpu.memory_space<vmem>>, %arg6: memref<1x128xf32, #tpu.memory_space<vmem>>, %arg7: memref<128x64xbf16, #tpu.memory_space<vmem>>, %arg8: memref<1x64xf32, #tpu.memory_space<vmem>>, %arg9: memref<3x64x192xbf16, #tpu.memory_space<vmem>>, %arg10: memref<1x64xf32, #tpu.memory_space<vmem>>, %arg11: memref<128x128xbf16, #tpu.memory_space<vmem>>, %arg12: memref<1x128xf32, #tpu.memory_space<vmem>>, %arg13: memref<1x128x128xf32, #tpu.memory_space<vmem>>) attributes {dimension_semantics = [#tpu.dimension_semantics<parallel>, #tpu.dimension_semantics<parallel>], iteration_bounds = array<i64: 2, 2>, scalar_prefetch = 0 : i64, scratch_operands = 0 : i64, tpu.core_type = #tpu.core_type<tc>, window_params = [{transform_indices = @transform_0, window_bounds = array<i64: 1, 128, 128>}, {transform_indices = @transform_1, window_bounds = array<i64: 1, 16, 128>}, {transform_indices = @transform_2, window_bounds = array<i64: 1, 16, 128>}, {pipeline_mode = #tpu.pipeline_mode<synchronous>, transform_indices = @transform_3, window_bounds = array<i64: 128, 128>}, {pipeline_mode = #tpu.pipeline_mode<synchronous>, transform_indices = @transform_4, window_bounds = array<i64: 1, 128>}, {pipeline_mode = #tpu.pipeline_mode<synchronous>, transform_indices = @transform_5, window_bounds = array<i64: 128, 64>}, {pipeline_mode = #tpu.pipeline_mode<synchronous>, transform_indices = @transform_6, window_bounds = array<i64: 1, 64>}, {pipeline_mode = #tpu.pipeline_mode<synchronous>, transform_indices = @transform_7, window_bounds = array<i64: 3, 64, 192>}, {pipeline_mode = #tpu.pipeline_mode<synchronous>, transform_indices = @transform_8, window_bounds = array<i64: 1, 64>}, {pipeline_mode = #tpu.pipeline_mode<synchronous>, transform_indices = @transform_9, window_bounds = array<i64: 128, 128>}, {pipeline_mode = #tpu.pipeline_mode<synchronous>, transform_indices = @transform_10, window_bounds = array<i64: 1, 128>}, {transform_indices = @transform_11, window_bounds = array<i64: 1, 128, 128>}]} {
    %c0 = arith.constant 0 : index
    %c0_0 = arith.constant 0 : index
    %c0_1 = arith.constant 0 : index
    %0 = vector.load %arg3[%c0, %c0_0, %c0_1] : memref<1x16x128xbf16, #tpu.memory_space<vmem>>, vector<1x16x128xbf16>
    %1 = vector.shape_cast %0 : vector<1x16x128xbf16> to vector<16x128xbf16>
    %c0_2 = arith.constant 0 : index
    %c0_3 = arith.constant 0 : index
    %c0_4 = arith.constant 0 : index
    %2 = vector.load %arg2[%c0_2, %c0_3, %c0_4] : memref<1x128x128xbf16, #tpu.memory_space<vmem>>, vector<1x128x128xbf16>
    %3 = vector.shape_cast %2 : vector<1x128x128xbf16> to vector<128x128xbf16>
    %c0_5 = arith.constant 0 : index
    %c0_6 = arith.constant 0 : index
    %c0_7 = arith.constant 0 : index
    %4 = vector.load %arg4[%c0_5, %c0_6, %c0_7] : memref<1x16x128xbf16, #tpu.memory_space<vmem>>, vector<1x16x128xbf16>
    %5 = vector.shape_cast %4 : vector<1x16x128xbf16> to vector<16x128xbf16>
    %6 = tpu.concatenate %1, %3, %5 in 0 : vector<16x128xbf16>, vector<128x128xbf16>, vector<16x128xbf16> -> vector<160x128xbf16>
    %c0_8 = arith.constant 0 : index
    %c0_9 = arith.constant 0 : index
    %7 = vector.load %arg5[%c0_8, %c0_9] : memref<128x128xbf16, #tpu.memory_space<vmem>>, vector<128x128xbf16>
    %cst = arith.constant dense<0.000000e+00> : vector<160x128xf32>
    %8 = tpu.matmul %6, %7, %cst {dimension_numbers = #tpu.dot_dimension_numbers<[1], [0], [0], [1], [0, 0, 1, 1], [], []>} : vector<160x128xbf16>, vector<128x128xbf16>, vector<160x128xf32> -> vector<160x128xf32>
    %c0_10 = arith.constant 0 : index
    %c0_11 = arith.constant 0 : index
    %9 = vector.load %arg6[%c0_10, %c0_11] : memref<1x128xf32, #tpu.memory_space<vmem>>, vector<1x128xf32>
    %10 = vector.broadcast %9 : vector<1x128xf32> to vector<160x128xf32>
    %11 = arith.addf %8, %10 : vector<160x128xf32>
    %cst_12 = arith.constant 0.000000e+00 : f32
    %12 = vector.broadcast %cst_12 : f32 to vector<160x128xf32>
    %13 = arith.subf %12, %11 : vector<160x128xf32>
    %14 = math.exp %13 : vector<160x128xf32>
    %cst_13 = arith.constant 1.000000e+00 : f32
    %15 = vector.broadcast %cst_13 : f32 to vector<160x128xf32>
    %16 = arith.addf %15, %14 : vector<160x128xf32>
    %17 = tpu.reciprocal %16 {approx = true} : vector<160x128xf32> -> vector<160x128xf32>
    %18 = arith.mulf %11, %17 : vector<160x128xf32>
    %19 = arith.truncf %18 : vector<160x128xf32> to vector<160x128xbf16>
    %c0_14 = arith.constant 0 : index
    %c0_15 = arith.constant 0 : index
    %20 = vector.load %arg7[%c0_14, %c0_15] : memref<128x64xbf16, #tpu.memory_space<vmem>>, vector<128x64xbf16>
    %cst_16 = arith.constant dense<0.000000e+00> : vector<160x64xf32>
    %21 = tpu.matmul %19, %20, %cst_16 {dimension_numbers = #tpu.dot_dimension_numbers<[1], [0], [0], [1], [0, 0, 1, 1], [], []>} : vector<160x128xbf16>, vector<128x64xbf16>, vector<160x64xf32> -> vector<160x64xf32>
    %c0_17 = arith.constant 0 : index
    %c0_18 = arith.constant 0 : index
    %22 = vector.load %arg8[%c0_17, %c0_18] : memref<1x64xf32, #tpu.memory_space<vmem>>, vector<1x64xf32>
    %23 = vector.broadcast %22 : vector<1x64xf32> to vector<160x64xf32>
    %24 = arith.addf %21, %23 : vector<160x64xf32>
    %cst_19 = arith.constant 0.000000e+00 : f32
    %25 = vector.broadcast %cst_19 : f32 to vector<160x64xf32>
    %26 = arith.subf %25, %24 : vector<160x64xf32>
    %27 = math.exp %26 : vector<160x64xf32>
    %cst_20 = arith.constant 1.000000e+00 : f32
    %28 = vector.broadcast %cst_20 : f32 to vector<160x64xf32>
    %29 = arith.addf %28, %27 : vector<160x64xf32>
    %30 = tpu.reciprocal %29 {approx = true} : vector<160x64xf32> -> vector<160x64xf32>
    %31 = arith.mulf %24, %30 : vector<160x64xf32>
    %32 = tpu.iota {dimensions = array<i32: 0>} : vector<160x1xi32>
    %c128_i32 = arith.constant 128 : i32
    %33 = arith.muli %arg1, %c128_i32 : i32
    %c16_i32 = arith.constant 16 : i32
    %34 = arith.subi %33, %c16_i32 : i32
    %35 = vector.broadcast %34 : i32 to vector<160x1xi32>
    %36 = arith.addi %35, %32 : vector<160x1xi32>
    %c16_i32_21 = arith.constant 16 : i32
    %c0_i32 = arith.constant 0 : i32
    %37 = arith.cmpi eq, %c16_i32_21, %c0_i32 : i32
    %c1_i32 = arith.constant 1 : i32
    %38 = arith.select %37, %c1_i32, %c16_i32_21 : i32
    %39 = vector.broadcast %38 : i32 to vector<160x1xi32>
    %40 = arith.remsi %32, %39 : vector<160x1xi32>
    %c0_i32_22 = arith.constant 0 : i32
    %41 = vector.broadcast %c0_i32_22 : i32 to vector<160x1xi32>
    %42 = arith.cmpi ne, %40, %41 : vector<160x1xi32>
    %c0_i32_23 = arith.constant 0 : i32
    %43 = vector.broadcast %c0_i32_23 : i32 to vector<160x1xi32>
    %44 = arith.cmpi slt, %40, %43 : vector<160x1xi32>
    %c0_i32_24 = arith.constant 0 : i32
    %45 = arith.cmpi slt, %38, %c0_i32_24 : i32
    %46 = vector.broadcast %45 : i1 to vector<160x1xi1>
    %47 = vector.broadcast %46 : vector<160x1xi1> to vector<160x1xi1>
    %48 = arith.xori %44, %47 : vector<160x1xi1>
    %49 = arith.andi %48, %42 : vector<160x1xi1>
    %50 = vector.broadcast %38 : i32 to vector<160x1xi32>
    %51 = arith.addi %40, %50 : vector<160x1xi32>
    %52 = arith.select %49, %51, %40 : vector<160x1xi1>, vector<160x1xi32>
    %c1_i32_25 = arith.constant 1 : i32
    %53 = vector.broadcast %c1_i32_25 : i32 to vector<160x1xi32>
    %54 = arith.cmpi sge, %52, %53 : vector<160x1xi32>
    %c1_i32_26 = arith.constant 1 : i32
    %55 = tpu.dynamic_rotate %31 by %c1_i32_26 dim 0 : vector<160x64xf32>, i32 -> vector<160x64xf32>
    %cst_27 = arith.constant 0.000000e+00 : f32
    %56 = vector.shape_cast %54 : vector<160x1xi1> to vector<160x1xi1>
    %57 = vector.broadcast %56 : vector<160x1xi1> to vector<160x64xi1>
    %58 = vector.broadcast %cst_27 : f32 to vector<160x64xf32>
    %59 = arith.select %57, %55, %58 : vector<160x64xi1>, vector<160x64xf32>
    %60 = arith.truncf %59 : vector<160x64xf32> to vector<160x64xbf16>
    %c14_i32 = arith.constant 14 : i32
    %61 = vector.broadcast %c14_i32 : i32 to vector<160x1xi32>
    %62 = arith.cmpi sle, %52, %61 : vector<160x1xi32>
    %c159_i32 = arith.constant 159 : i32
    %63 = tpu.dynamic_rotate %31 by %c159_i32 dim 0 : vector<160x64xf32>, i32 -> vector<160x64xf32>
    %cst_28 = arith.constant 0.000000e+00 : f32
    %64 = vector.shape_cast %62 : vector<160x1xi1> to vector<160x1xi1>
    %65 = vector.broadcast %64 : vector<160x1xi1> to vector<160x64xi1>
    %66 = vector.broadcast %cst_28 : f32 to vector<160x64xf32>
    %67 = arith.select %65, %63, %66 : vector<160x64xi1>, vector<160x64xf32>
    %68 = arith.truncf %67 : vector<160x64xf32> to vector<160x64xbf16>
    %69 = arith.truncf %31 : vector<160x64xf32> to vector<160x64xbf16>
    %c0_29 = arith.constant 0 : index
    %c0_30 = arith.constant 0 : index
    %c0_31 = arith.constant 0 : index
    %70 = vector.load %arg9[%c0_29, %c0_30, %c0_31] : memref<3x64x192xbf16, #tpu.memory_space<vmem>>, vector<1x64x192xbf16>
    %71 = vector.shape_cast %70 : vector<1x64x192xbf16> to vector<64x192xbf16>
    %cst_32 = arith.constant dense<0.000000e+00> : vector<160x192xf32>
    %72 = tpu.matmul %60, %71, %cst_32 {dimension_numbers = #tpu.dot_dimension_numbers<[1], [0], [0], [1], [0, 0, 1, 1], [], []>} : vector<160x64xbf16>, vector<64x192xbf16>, vector<160x192xf32> -> vector<160x192xf32>
    %c1 = arith.constant 1 : index
    %c0_33 = arith.constant 0 : index
    %c0_34 = arith.constant 0 : index
    %73 = vector.load %arg9[%c1, %c0_33, %c0_34] : memref<3x64x192xbf16, #tpu.memory_space<vmem>>, vector<1x64x192xbf16>
    %74 = vector.shape_cast %73 : vector<1x64x192xbf16> to vector<64x192xbf16>
    %cst_35 = arith.constant dense<0.000000e+00> : vector<160x192xf32>
    %75 = tpu.matmul %69, %74, %cst_35 {dimension_numbers = #tpu.dot_dimension_numbers<[1], [0], [0], [1], [0, 0, 1, 1], [], []>} : vector<160x64xbf16>, vector<64x192xbf16>, vector<160x192xf32> -> vector<160x192xf32>
    %76 = arith.addf %72, %75 : vector<160x192xf32>
    %c2 = arith.constant 2 : index
    %c0_36 = arith.constant 0 : index
    %c0_37 = arith.constant 0 : index
    %77 = vector.load %arg9[%c2, %c0_36, %c0_37] : memref<3x64x192xbf16, #tpu.memory_space<vmem>>, vector<1x64x192xbf16>
    %78 = vector.shape_cast %77 : vector<1x64x192xbf16> to vector<64x192xbf16>
    %cst_38 = arith.constant dense<0.000000e+00> : vector<160x192xf32>
    %79 = tpu.matmul %68, %78, %cst_38 {dimension_numbers = #tpu.dot_dimension_numbers<[1], [0], [0], [1], [0, 0, 1, 1], [], []>} : vector<160x64xbf16>, vector<64x192xbf16>, vector<160x192xf32> -> vector<160x192xf32>
    %80 = arith.addf %76, %79 : vector<160x192xf32>
    %81 = vector.extract_strided_slice %80 {offsets = [0, 64], sizes = [160, 64], strides = [1, 1]} : vector<160x192xf32> to vector<160x64xf32>
    %c16_i32_39 = arith.constant 16 : i32
    %82 = vector.broadcast %c16_i32_39 : i32 to vector<160x1xi32>
    %83 = arith.cmpi sge, %36, %82 : vector<160x1xi32>
    %84 = vector.extract_strided_slice %80 {offsets = [0, 0], sizes = [160, 64], strides = [1, 1]} : vector<160x192xf32> to vector<160x64xf32>
    %c16_i32_40 = arith.constant 16 : i32
    %85 = tpu.dynamic_rotate %84 by %c16_i32_40 dim 0 : vector<160x64xf32>, i32 -> vector<160x64xf32>
    %cst_41 = arith.constant 0.000000e+00 : f32
    %86 = vector.shape_cast %83 : vector<160x1xi1> to vector<160x1xi1>
    %87 = vector.broadcast %86 : vector<160x1xi1> to vector<160x64xi1>
    %88 = vector.broadcast %cst_41 : f32 to vector<160x64xf32>
    %89 = arith.select %87, %85, %88 : vector<160x64xi1>, vector<160x64xf32>
    %90 = arith.addf %81, %89 : vector<160x64xf32>
    %c240_i32 = arith.constant 240 : i32
    %91 = vector.broadcast %c240_i32 : i32 to vector<160x1xi32>
    %92 = arith.cmpi slt, %36, %91 : vector<160x1xi32>
    %93 = vector.extract_strided_slice %80 {offsets = [0, 128], sizes = [160, 64], strides = [1, 1]} : vector<160x192xf32> to vector<160x64xf32>
    %c144_i32 = arith.constant 144 : i32
    %94 = tpu.dynamic_rotate %93 by %c144_i32 dim 0 : vector<160x64xf32>, i32 -> vector<160x64xf32>
    %cst_42 = arith.constant 0.000000e+00 : f32
    %95 = vector.shape_cast %92 : vector<160x1xi1> to vector<160x1xi1>
    %96 = vector.broadcast %95 : vector<160x1xi1> to vector<160x64xi1>
    %97 = vector.broadcast %cst_42 : f32 to vector<160x64xf32>
    %98 = arith.select %96, %94, %97 : vector<160x64xi1>, vector<160x64xf32>
    %99 = arith.addf %90, %98 : vector<160x64xf32>
    %c0_43 = arith.constant 0 : index
    %c0_44 = arith.constant 0 : index
    %100 = vector.load %arg10[%c0_43, %c0_44] : memref<1x64xf32, #tpu.memory_space<vmem>>, vector<1x64xf32>
    %101 = vector.broadcast %100 : vector<1x64xf32> to vector<160x64xf32>
    %102 = arith.addf %99, %101 : vector<160x64xf32>
    %cst_45 = arith.constant 0.000000e+00 : f32
    %103 = vector.broadcast %cst_45 : f32 to vector<160x64xf32>
    %104 = arith.subf %103, %102 : vector<160x64xf32>
    %105 = math.exp %104 : vector<160x64xf32>
    %cst_46 = arith.constant 1.000000e+00 : f32
    %106 = vector.broadcast %cst_46 : f32 to vector<160x64xf32>
    %107 = arith.addf %106, %105 : vector<160x64xf32>
    %108 = tpu.reciprocal %107 {approx = true} : vector<160x64xf32> -> vector<160x64xf32>
    %109 = arith.mulf %102, %108 : vector<160x64xf32>
    %110 = vector.extract_strided_slice %19 {offsets = [16, 0], sizes = [128, 128], strides = [1, 1]} : vector<160x128xbf16> to vector<128x128xbf16>
    %111 = vector.extract_strided_slice %109 {offsets = [16, 0], sizes = [128, 64], strides = [1, 1]} : vector<160x64xf32> to vector<128x64xf32>
    %112 = arith.truncf %111 : vector<128x64xf32> to vector<128x64xbf16>
    %c0_47 = arith.constant 0 : index
    %c0_48 = arith.constant 0 : index
    %113 = vector.load %arg11[%c0_47, %c0_48] : memref<128x128xbf16, #tpu.memory_space<vmem>>, vector<128x128xbf16>
    %cst_49 = arith.constant dense<0.000000e+00> : vector<128x128xf32>
    %114 = tpu.matmul %110, %113, %cst_49 {dimension_numbers = #tpu.dot_dimension_numbers<[1], [0], [0], [1], [0, 0, 1, 1], [], []>} : vector<128x128xbf16>, vector<128x128xbf16>, vector<128x128xf32> -> vector<128x128xf32>
    %c0_50 = arith.constant 0 : index
    %c0_51 = arith.constant 0 : index
    %115 = vector.load %arg11[%c0_50, %c0_51] : memref<128x128xbf16, #tpu.memory_space<vmem>>, vector<64x128xbf16>
    %cst_52 = arith.constant dense<0.000000e+00> : vector<128x128xf32>
    %116 = tpu.matmul %112, %115, %cst_52 {dimension_numbers = #tpu.dot_dimension_numbers<[1], [0], [0], [1], [0, 0, 1, 1], [], []>} : vector<128x64xbf16>, vector<64x128xbf16>, vector<128x128xf32> -> vector<128x128xf32>
    %117 = arith.addf %114, %116 : vector<128x128xf32>
    %c0_53 = arith.constant 0 : index
    %c0_54 = arith.constant 0 : index
    %118 = vector.load %arg12[%c0_53, %c0_54] : memref<1x128xf32, #tpu.memory_space<vmem>>, vector<1x128xf32>
    %119 = vector.broadcast %118 : vector<1x128xf32> to vector<128x128xf32>
    %120 = arith.addf %117, %119 : vector<128x128xf32>
    %cst_55 = arith.constant 0.000000e+00 : f32
    %121 = vector.broadcast %cst_55 : f32 to vector<128x128xf32>
    %122 = arith.subf %121, %120 : vector<128x128xf32>
    %123 = math.exp %122 : vector<128x128xf32>
    %cst_56 = arith.constant 1.000000e+00 : f32
    %124 = vector.broadcast %cst_56 : f32 to vector<128x128xf32>
    %125 = arith.addf %124, %123 : vector<128x128xf32>
    %126 = tpu.reciprocal %125 {approx = true} : vector<128x128xf32> -> vector<128x128xf32>
    %127 = arith.mulf %120, %126 : vector<128x128xf32>
    %c0_57 = arith.constant 0 : index
    %c0_58 = arith.constant 0 : index
    %c0_59 = arith.constant 0 : index
    %128 = vector.load %arg13[%c0_57, %c0_58, %c0_59] : memref<1x128x128xf32, #tpu.memory_space<vmem>>, vector<1x128x128xf32>
    %129 = vector.shape_cast %128 : vector<1x128x128xf32> to vector<128x128xf32>
    %130 = vector.shape_cast %127 : vector<128x128xf32> to vector<1x128x128xf32>
    tpu.vector_store %arg13[%c0_57, %c0_58, %c0_59], %130 {strides = array<i32>} : memref<1x128x128xf32, #tpu.memory_space<vmem>>, vector<1x128x128xf32>,
    return
  }
  func.func @transform_0(%arg0: i32, %arg1: i32) -> (i32, i32, i32) {
    %c0_i32 = arith.constant 0 : i32
    %c0_i32_0 = arith.constant 0 : i32
    return %arg0, %arg1, %c0_i32 : i32, i32, i32
  }
  func.func @transform_1(%arg0: i32, %arg1: i32) -> (i32, i32, i32) {
    %c8_i32 = arith.constant 8 : i32
    %0 = arith.muli %arg1, %c8_i32 : i32
    %c1_i32 = arith.constant 1 : i32
    %1 = arith.subi %0, %c1_i32 : i32
    %c0_i32 = arith.constant 0 : i32
    %2 = arith.maxsi %1, %c0_i32 : i32
    %c0_i32_0 = arith.constant 0 : i32
    %c0_i32_1 = arith.constant 0 : i32
    return %arg0, %2, %c0_i32_0 : i32, i32, i32
  }
  func.func @transform_2(%arg0: i32, %arg1: i32) -> (i32, i32, i32) {
    %c1_i32 = arith.constant 1 : i32
    %0 = arith.addi %arg1, %c1_i32 : i32
    %c8_i32 = arith.constant 8 : i32
    %1 = arith.muli %0, %c8_i32 : i32
    %c15_i32 = arith.constant 15 : i32
    %2 = arith.minsi %1, %c15_i32 : i32
    %c0_i32 = arith.constant 0 : i32
    %c0_i32_0 = arith.constant 0 : i32
    return %arg0, %2, %c0_i32 : i32, i32, i32
  }
  func.func @transform_3(%arg0: i32, %arg1: i32) -> (i32, i32) {
    %c0_i32 = arith.constant 0 : i32
    %c0_i32_0 = arith.constant 0 : i32
    %c0_i32_1 = arith.constant 0 : i32
    return %c0_i32, %c0_i32_0 : i32, i32
  }
  func.func @transform_4(%arg0: i32, %arg1: i32) -> (i32, i32) {
    %c0_i32 = arith.constant 0 : i32
    %c0_i32_0 = arith.constant 0 : i32
    %c0_i32_1 = arith.constant 0 : i32
    return %c0_i32, %c0_i32_0 : i32, i32
  }
  func.func @transform_5(%arg0: i32, %arg1: i32) -> (i32, i32) {
    %c0_i32 = arith.constant 0 : i32
    %c0_i32_0 = arith.constant 0 : i32
    %c0_i32_1 = arith.constant 0 : i32
    return %c0_i32, %c0_i32_0 : i32, i32
  }
  func.func @transform_6(%arg0: i32, %arg1: i32) -> (i32, i32) {
    %c0_i32 = arith.constant 0 : i32
    %c0_i32_0 = arith.constant 0 : i32
    %c0_i32_1 = arith.constant 0 : i32
    return %c0_i32, %c0_i32_0 : i32, i32
  }
  func.func @transform_7(%arg0: i32, %arg1: i32) -> (i32, i32, i32) {
    %c0_i32 = arith.constant 0 : i32
    %c0_i32_0 = arith.constant 0 : i32
    %c0_i32_1 = arith.constant 0 : i32
    %c0_i32_2 = arith.constant 0 : i32
    return %c0_i32, %c0_i32_0, %c0_i32_1 : i32, i32, i32
  }
  func.func @transform_8(%arg0: i32, %arg1: i32) -> (i32, i32) {
    %c0_i32 = arith.constant 0 : i32
    %c0_i32_0 = arith.constant 0 : i32
    %c0_i32_1 = arith.constant 0 : i32
    return %c0_i32, %c0_i32_0 : i32, i32
  }
  func.func @transform_9(%arg0: i32, %arg1: i32) -> (i32, i32) {
    %c0_i32 = arith.constant 0 : i32
    %c0_i32_0 = arith.constant 0 : i32
    %c0_i32_1 = arith.constant 0 : i32
    return %c0_i32, %c0_i32_0 : i32, i32
  }
  func.func @transform_10(%arg0: i32, %arg1: i32) -> (i32, i32) {
    %c0_i32 = arith.constant 0 : i32
    %c0_i32_0 = arith.constant 0 : i32
    %c0_i32_1 = arith.constant 0 : i32
    return %c0_i32, %c0_i32_0 : i32, i32
  }
  func.func @transform_11(%arg0: i32, %arg1: i32) -> (i32, i32, i32) {
    %c0_i32 = arith.constant 0 : i32
    %c0_i32_0 = arith.constant 0 : i32
    return %arg0, %arg1, %c0_i32 : i32, i32, i32
  }
}

</mosaic_0001>

<llo_original>
// kernel: tpu_custom_call.1
$region0: #{tpu_custom_call.1}
  #allocation0 [shape = 'u32[]', space=smem, size = 0x4, offset = 0x4, fixed_abs, tag = 'smem constant byte address 0x4 - core index']
  #allocation1 [shape = 'u32[144,128]{1,0:T(1,128)}', space=vmem, size = 0x12000, scoped, tag = 'internal scratch']
  %s0 = inlined_call_operand.hbm [shape: bf16[2,256,128], index: 0, kind: input, shape index: {}]
  %s1 = inlined_call_operand.hbm [shape: bf16[2,256,128], index: 1, kind: input, shape index: {}]
  %s2 = inlined_call_operand.hbm [shape: bf16[2,256,128], index: 2, kind: input, shape index: {}]
  %s3 = inlined_call_operand.vmem [shape: bf16[128,128], index: 3, kind: input, shape index: {}]
  %s4 = inlined_call_operand.vmem [shape: f32[1,128], index: 4, kind: input, shape index: {}]
  %s5 = inlined_call_operand.vmem [shape: bf16[128,64], index: 5, kind: input, shape index: {}]
  %s6 = inlined_call_operand.vmem [shape: f32[1,64], index: 6, kind: input, shape index: {}]
  %s7 = inlined_call_operand.hbm [shape: bf16[3,64,192], index: 7, kind: input, shape index: {}]
  %s8 = inlined_call_operand.hbm [shape: f32[1,64], index: 8, kind: input, shape index: {}]
  %s9 = inlined_call_operand.vmem [shape: bf16[128,128], index: 9, kind: input, shape index: {}]
  %s10 = inlined_call_operand.vmem [shape: f32[1,128], index: 10, kind: input, shape index: {}]
  %s11 = inlined_call_operand.hbm [shape: f32[2,256,128], index: 11, kind: output, shape index: {}]
  %s12 = sld [smem:[#allocation0]]
  $region97: #{tpu_custom_call.1} parent=0
    _
  %s14 = ssub.s32 1, %s12
  %s15 = scalar_select 0, %s14, %s12
  $region1: #{tpu_custom_call.1} parent=0
    #allocation2 [shape = 'u8[65536]{0}', space=vmem, size = 0x10000, scoped, tag = 'input window, operand 0']
    #allocation3 [shape = 's32[2]{0}', space=sflag, size = 0x8, scoped, tag = 'scoped memory for tpu_custom_call.1']
    #allocation4 [shape = 's32[2]{0}', space=sflag, size = 0x8, scoped, tag = 'scoped memory for tpu_custom_call.1']
    #allocation5 [shape = 'u8[8192]{0}', space=vmem, size = 0x2000, scoped, tag = 'input window, operand 1']
    #allocation6 [shape = 's32[2]{0}', space=sflag, size = 0x8, scoped, tag = 'scoped memory for tpu_custom_call.1']
    #allocation7 [shape = 'u8[8192]{0}', space=vmem, size = 0x2000, scoped, tag = 'input window, operand 2']
    #allocation8 [shape = 'u8[98304]{0}', space=vmem, size = 0x18000, scoped, tag = 'input window, operand 7, single buffered']
    #allocation9 [shape = 's32[1]{0}', space=sflag, size = 0x4, scoped, tag = 'scoped memory for tpu_custom_call.1']
    #allocation10 [shape = 'u8[512]{0}', space=vmem, size = 0x400, scoped, tag = 'input window, operand 8, single buffered']
    #allocation11 [shape = 'u8[131072]{0}', space=vmem, size = 0x20000, scoped, tag = 'output window, operand 0']
    %16 = vsyncpa [#allocation3], 0
    %s17 = scalar_lea.sflag [#allocation3], 1
    %18 = vsyncpa %s17, 0
    %19 = vsyncpa [#allocation6], 0
    %s20 = scalar_lea.sflag [#allocation6], 1
    %21 = vsyncpa %s20, 0
    %22 = vsyncpa [#allocation9], 0
    %23 = vsyncpa [#allocation4], 0
    %s24 = scalar_lea.sflag [#allocation4], 1
    %25 = vsyncpa %s24, 0
    loop: start=0, step=1, limit=6
    $region2: #{tpu_custom_call.1} parent=1 // loop_pre_header
      _
    $region3: #{tpu_custom_call.1} parent=1 // loop_header
      %s27 = sphi 0, %s31
      %p28 = scmp.ge.s32.totalorder %s27, 6
      %s34 = sphi 0, %s46
      %s35 = sphi 0, %s42
      %s36 = sphi 0, %s34
      %s37 = sphi 0, %s35
      %s38 = sphi 0, %s36
      %s39 = sphi 0, %s37
      %s51 = sphi 0, %s53
      %s54 = sphi 0, %s51
      %s55 = sphi 0, %s54
      %s71 = sphi 0, %s55
      %s87 = sphi 0, %s89
      %s90 = sphi 0, %s87
      %s91 = sphi 0, %s90
      %s107 = sphi 0, %s91
      %s123 = sphi 0, %s125
      %s126 = sphi 0, %s123
      %s127 = sphi 0, %s126
      %s143 = sphi 0, %s127
      %s147 = sphi 0, %s147
      %s149 = sphi 0, %s147
      %s150 = sphi 0, %s149
      %s164 = sphi 0, %s150
      %s168 = sphi 0, %s168
      %s170 = sphi 0, %s168
      %s171 = sphi 0, %s170
      %s185 = sphi 0, %s171
      %s189 = sphi 0, %s189
      %s191 = sphi 0, %s189
      %s192 = sphi 0, %s191
      %s206 = sphi 0, %s192
      %s210 = sphi 0, %s210
      %s212 = sphi 0, %s210
      %s213 = sphi 0, %s212
      %s227 = sphi 0, %s213
      %s231 = sphi 0, %s231
      %s233 = sphi 0, %s231
      %s234 = sphi 0, %s233
      %s248 = sphi 0, %s234
      %s252 = sphi 0, %s252
      %s254 = sphi 0, %s252
      %s255 = sphi 0, %s254
      %s269 = sphi 0, %s255
      %s273 = sphi 0, %s273
      %s275 = sphi 0, %s273
      %s276 = sphi 0, %s275
      %s290 = sphi 0, %s276
      %s294 = sphi 0, %s294
      %s296 = sphi 0, %s294
      %s297 = sphi 0, %s296
      %s311 = sphi 0, %s297
      %s319 = sphi 0, %s321
      %s322 = sphi 0, %s319
      %s323 = sphi 0, %s322
      %s339 = sphi 0, %s323
    $region4: #{tpu_custom_call.1} parent=1 // loop_header_branch
      %30 = sbr.rel (%p28) target = $region8
    $region5: #{tpu_custom_call.1} parent=1 // loop_body
      %s32 = ssub.s32 %s27, 1
      %s33 = ssub.s32 %s27, 2
      %s40 = sadd.s32 1, %s35
      %p41 = scmp.ge.s32.totalorder %s40, 2
      %s42 = scalar_select %p41, 0, %s40
      %s43 = sadd.s32 1, %s34
      %s44 = scalar_select %p41, %s43, %s34
      %p45 = scmp.ge.s32.totalorder %s44, 2
      %s46 = scalar_select %p45, 0, %s44
      %s47 = ssub.s32 %s34, %s46
      %s48 = ssub.s32 %s35, %s42
      %s49 = sor.u32 %s47, %s48
      %p50 = scmp.eq.s32.totalorder %s49, 0
      %s52 = sadd.s32 %s51, 1
      %s53 = scalar_select %p50, %s51, %s52
      %p56 = pneg %p50
      %p57 = scmp.eq.s32.totalorder %s27, 3
      %p58 = por %p56, %p57
      %p59 = scmp.ne.s32.totalorder %s51, %s54
      %p60 = scmp.eq.s32.totalorder %s27, 0
      %p61 = por %p59, %p60
      %p62 = scmp.ne.s32.totalorder %s51, %s54
      %p63 = scmp.eq.s32.totalorder %s32, 3
      %p64 = por %p62, %p63
      %p65 = scmp.ne.s32.totalorder %s54, %s55
      %p66 = scmp.eq.s32.totalorder %s32, 0
      %p67 = por %p65, %p66
      %p68 = scmp.ne.s32.totalorder %s54, %s55
      %p69 = scmp.eq.s32.totalorder %s33, 3
      %p70 = por %p68, %p69
      %p72 = scmp.ne.s32.totalorder %s55, %s71
      %p73 = scmp.eq.s32.totalorder %s33, 0
      %p74 = por %p72, %p73
      %s75 = smul.u32 %s35, 8
      %s76 = ssub.s32 %s75, 1
      %p77 = scmp.gt.s32.totalorder %s76, 0
      %s78 = scalar_select %p77, %s76, 0
      %s79 = smul.u32 %s42, 8
      %s80 = ssub.s32 %s79, 1
      %p81 = scmp.gt.s32.totalorder %s80, 0
      %s82 = scalar_select %p81, %s80, 0
      %s83 = ssub.s32 %s34, %s46
      %s84 = ssub.s32 %s78, %s82
      %s85 = sor.u32 %s83, %s84
      %p86 = scmp.eq.s32.totalorder %s85, 0
      %s88 = sadd.s32 %s87, 1
      %s89 = scalar_select %p86, %s87, %s88
      %p92 = pneg %p86
      %p93 = scmp.eq.s32.totalorder %s27, 3
      %p94 = por %p92, %p93
      %p95 = scmp.ne.s32.totalorder %s87, %s90
      %p96 = scmp.eq.s32.totalorder %s27, 0
      %p97 = por %p95, %p96
      %p98 = scmp.ne.s32.totalorder %s87, %s90
      %p99 = scmp.eq.s32.totalorder %s32, 3
      %p100 = por %p98, %p99
      %p101 = scmp.ne.s32.totalorder %s90, %s91
      %p102 = scmp.eq.s32.totalorder %s32, 0
      %p103 = por %p101, %p102
      %p104 = scmp.ne.s32.totalorder %s90, %s91
      %p105 = scmp.eq.s32.totalorder %s33, 3
      %p106 = por %p104, %p105
      %p108 = scmp.ne.s32.totalorder %s91, %s107
      %p109 = scmp.eq.s32.totalorder %s33, 0
      %p110 = por %p108, %p109
      %s111 = sadd.s32 %s35, 1
      %s112 = smul.u32 %s111, 8
      %p113 = scmp.lt.s32.totalorder %s112, 15
      %s114 = scalar_select %p113, %s112, 15
      %s115 = sadd.s32 %s42, 1
      %s116 = smul.u32 %s115, 8
      %p117 = scmp.lt.s32.totalorder %s116, 15
      %s118 = scalar_select %p117, %s116, 15
      %s119 = ssub.s32 %s34, %s46
      %s120 = ssub.s32 %s114, %s118
      %s121 = sor.u32 %s119, %s120
      %p122 = scmp.eq.s32.totalorder %s121, 0
      %s124 = sadd.s32 %s123, 1
      %s125 = scalar_select %p122, %s123, %s124
      %p128 = pneg %p122
      %p129 = scmp.eq.s32.totalorder %s27, 3
      %p130 = por %p128, %p129
      %p131 = scmp.ne.s32.totalorder %s123, %s126
      %p132 = scmp.eq.s32.totalorder %s27, 0
      %p133 = por %p131, %p132
      %p134 = scmp.ne.s32.totalorder %s123, %s126
      %p135 = scmp.eq.s32.totalorder %s32, 3
      %p136 = por %p134, %p135
      %p137 = scmp.ne.s32.totalorder %s126, %s127
      %p138 = scmp.eq.s32.totalorder %s32, 0
      %p139 = por %p137, %p138
      %p140 = scmp.ne.s32.totalorder %s126, %s127
      %p141 = scmp.eq.s32.totalorder %s33, 3
      %p142 = por %p140, %p141
      %p144 = scmp.ne.s32.totalorder %s127, %s143
      %p145 = scmp.eq.s32.totalorder %s33, 0
      %p146 = por %p144, %p145
      %s148 = sadd.s32 %s147, 1
      %p151 = scmp.eq.s32.totalorder %s27, 3
      %p152 = scmp.ne.s32.totalorder %s147, %s149
      %p153 = scmp.eq.s32.totalorder %s27, 0
      %p154 = por %p152, %p153
      %p155 = scmp.ne.s32.totalorder %s147, %s149
      %p156 = scmp.eq.s32.totalorder %s32, 3
      %p157 = por %p155, %p156
      %p158 = scmp.ne.s32.totalorder %s149, %s150
      %p159 = scmp.eq.s32.totalorder %s32, 0
      %p160 = por %p158, %p159
      %p161 = scmp.ne.s32.totalorder %s149, %s150
      %p162 = scmp.eq.s32.totalorder %s33, 3
      %p163 = por %p161, %p162
      %p165 = scmp.ne.s32.totalorder %s150, %s164
      %p166 = scmp.eq.s32.totalorder %s33, 0
      %p167 = por %p165, %p166
      %s169 = sadd.s32 %s168, 1
      %p172 = scmp.eq.s32.totalorder %s27, 3
      %p173 = scmp.ne.s32.totalorder %s168, %s170
      %p174 = scmp.eq.s32.totalorder %s27, 0
      %p175 = por %p173, %p174
      %p176 = scmp.ne.s32.totalorder %s168, %s170
      %p177 = scmp.eq.s32.totalorder %s32, 3
      %p178 = por %p176, %p177
      %p179 = scmp.ne.s32.totalorder %s170, %s171
      %p180 = scmp.eq.s32.totalorder %s32, 0
      %p181 = por %p179, %p180
      %p182 = scmp.ne.s32.totalorder %s170, %s171
      %p183 = scmp.eq.s32.totalorder %s33, 3
      %p184 = por %p182, %p183
      %p186 = scmp.ne.s32.totalorder %s171, %s185
      %p187 = scmp.eq.s32.totalorder %s33, 0
      %p188 = por %p186, %p187
      %s190 = sadd.s32 %s189, 1
      %p193 = scmp.eq.s32.totalorder %s27, 3
      %p194 = scmp.ne.s32.totalorder %s189, %s191
      %p195 = scmp.eq.s32.totalorder %s27, 0
      %p196 = por %p194, %p195
      %p197 = scmp.ne.s32.totalorder %s189, %s191
      %p198 = scmp.eq.s32.totalorder %s32, 3
      %p199 = por %p197, %p198
      %p200 = scmp.ne.s32.totalorder %s191, %s192
      %p201 = scmp.eq.s32.totalorder %s32, 0
      %p202 = por %p200, %p201
      %p203 = scmp.ne.s32.totalorder %s191, %s192
      %p204 = scmp.eq.s32.totalorder %s33, 3
      %p205 = por %p203, %p204
      %p207 = scmp.ne.s32.totalorder %s192, %s206
      %p208 = scmp.eq.s32.totalorder %s33, 0
      %p209 = por %p207, %p208
      %s211 = sadd.s32 %s210, 1
      %p214 = scmp.eq.s32.totalorder %s27, 3
      %p215 = scmp.ne.s32.totalorder %s210, %s212
      %p216 = scmp.eq.s32.totalorder %s27, 0
      %p217 = por %p215, %p216
      %p218 = scmp.ne.s32.totalorder %s210, %s212
      %p219 = scmp.eq.s32.totalorder %s32, 3
      %p220 = por %p218, %p219
      %p221 = scmp.ne.s32.totalorder %s212, %s213
      %p222 = scmp.eq.s32.totalorder %s32, 0
      %p223 = por %p221, %p222
      %p224 = scmp.ne.s32.totalorder %s212, %s213
      %p225 = scmp.eq.s32.totalorder %s33, 3
      %p226 = por %p224, %p225
      %p228 = scmp.ne.s32.totalorder %s213, %s227
      %p229 = scmp.eq.s32.totalorder %s33, 0
      %p230 = por %p228, %p229
      %s232 = sadd.s32 %s231, 1
      %p235 = scmp.eq.s32.totalorder %s27, 3
      %p236 = scmp.ne.s32.totalorder %s231, %s233
      %p237 = scmp.eq.s32.totalorder %s27, 0
      %p238 = por %p236, %p237
      %p239 = scmp.ne.s32.totalorder %s231, %s233
      %p240 = scmp.eq.s32.totalorder %s32, 3
      %p241 = por %p239, %p240
      %p242 = scmp.ne.s32.totalorder %s233, %s234
      %p243 = scmp.eq.s32.totalorder %s32, 0
      %p244 = por %p242, %p243
      %p245 = scmp.ne.s32.totalorder %s233, %s234
      %p246 = scmp.eq.s32.totalorder %s33, 3
      %p247 = por %p245, %p246
      %p249 = scmp.ne.s32.totalorder %s234, %s248
      %p250 = scmp.eq.s32.totalorder %s33, 0
      %p251 = por %p249, %p250
      %s253 = sadd.s32 %s252, 1
      %p256 = scmp.eq.s32.totalorder %s27, 3
      %p257 = scmp.ne.s32.totalorder %s252, %s254
      %p258 = scmp.eq.s32.totalorder %s27, 0
      %p259 = por %p257, %p258
      %p260 = scmp.ne.s32.totalorder %s252, %s254
      %p261 = scmp.eq.s32.totalorder %s32, 3
      %p262 = por %p260, %p261
      %p263 = scmp.ne.s32.totalorder %s254, %s255
      %p264 = scmp.eq.s32.totalorder %s32, 0
      %p265 = por %p263, %p264
      %p266 = scmp.ne.s32.totalorder %s254, %s255
      %p267 = scmp.eq.s32.totalorder %s33, 3
      %p268 = por %p266, %p267
      %p270 = scmp.ne.s32.totalorder %s255, %s269
      %p271 = scmp.eq.s32.totalorder %s33, 0
      %p272 = por %p270, %p271
      %s274 = sadd.s32 %s273, 1
      %p277 = scmp.eq.s32.totalorder %s27, 3
      %p278 = scmp.ne.s32.totalorder %s273, %s275
      %p279 = scmp.eq.s32.totalorder %s27, 0
      %p280 = por %p278, %p279
      %p281 = scmp.ne.s32.totalorder %s273, %s275
      %p282 = scmp.eq.s32.totalorder %s32, 3
      %p283 = por %p281, %p282
      %p284 = scmp.ne.s32.totalorder %s275, %s276
      %p285 = scmp.eq.s32.totalorder %s32, 0
      %p286 = por %p284, %p285
      %p287 = scmp.ne.s32.totalorder %s275, %s276
      %p288 = scmp.eq.s32.totalorder %s33, 3
      %p289 = por %p287, %p288
      %p291 = scmp.ne.s32.totalorder %s276, %s290
      %p292 = scmp.eq.s32.totalorder %s33, 0
      %p293 = por %p291, %p292
      %s295 = sadd.s32 %s294, 1
      %p298 = scmp.eq.s32.totalorder %s27, 3
      %p299 = scmp.ne.s32.totalorder %s294, %s296
      %p300 = scmp.eq.s32.totalorder %s27, 0
      %p301 = por %p299, %p300
      %p302 = scmp.ne.s32.totalorder %s294, %s296
      %p303 = scmp.eq.s32.totalorder %s32, 3
      %p304 = por %p302, %p303
      %p305 = scmp.ne.s32.totalorder %s296, %s297
      %p306 = scmp.eq.s32.totalorder %s32, 0
      %p307 = por %p305, %p306
      %p308 = scmp.ne.s32.totalorder %s296, %s297
      %p309 = scmp.eq.s32.totalorder %s33, 3
      %p310 = por %p308, %p309
      %p312 = scmp.ne.s32.totalorder %s297, %s311
      %p313 = scmp.eq.s32.totalorder %s33, 0
      %p314 = por %p312, %p313
      %s315 = ssub.s32 %s34, %s46
      %s316 = ssub.s32 %s35, %s42
      %s317 = sor.u32 %s315, %s316
      %p318 = scmp.eq.s32.totalorder %s317, 0
      %s320 = sadd.s32 %s319, 1
      %s321 = scalar_select %p318, %s319, %s320
      %p324 = pneg %p318
      %p325 = scmp.eq.s32.totalorder %s27, 3
      %p326 = por %p324, %p325
      %p327 = scmp.ne.s32.totalorder %s319, %s322
      %p328 = scmp.eq.s32.totalorder %s27, 0
      %p329 = por %p327, %p328
      %p330 = scmp.ne.s32.totalorder %s319, %s322
      %p331 = scmp.eq.s32.totalorder %s32, 3
      %p332 = por %p330, %p331
      %p333 = scmp.ne.s32.totalorder %s322, %s323
      %p334 = scmp.eq.s32.totalorder %s32, 0
      %p335 = por %p333, %p334
      %p336 = scmp.ne.s32.totalorder %s322, %s323
      %p337 = scmp.eq.s32.totalorder %s33, 3
      %p338 = por %p336, %p337
      %p340 = scmp.ne.s32.totalorder %s323, %s339
      %p341 = scmp.eq.s32.totalorder %s33, 0
      %p342 = por %p340, %p341
      %p343 = scmp.le.s32.totalorder 1, %s27
      %p344 = scmp.lt.s32.totalorder %s27, 5
      %p345 = pnand %p343, %p344
      %p346 = pneg %p345
      // Predicated region
      $region9: #{tpu_custom_call.1} parent=5 // pred_check
        _
      $region10: #{tpu_custom_call.1} parent=5 // pred_check_branch
        %348 = sbr.rel (%p345) target = $region12
      $region11: #{tpu_custom_call.1} parent=5 // pred_region
        %s349 = ssub.s32 %s27, 1
        // Predicated region
        $region13: #{tpu_custom_call.1} parent=11 // pred_check
          %p350 = pneg %p160
        $region14: #{tpu_custom_call.1} parent=11 // pred_check_branch
          %352 = sbr.rel (%p350) target = $region16
        $region15: #{tpu_custom_call.1} parent=11 // pred_region
          _
        $region16: #{tpu_custom_call.1} parent=11 // pred_fallthru
          _
        // Predicated region
        $region17: #{tpu_custom_call.1} parent=11 // pred_check
          %p353 = pneg %p181
        $region18: #{tpu_custom_call.1} parent=11 // pred_check_branch
          %355 = sbr.rel (%p353) target = $region20
        $region19: #{tpu_custom_call.1} parent=11 // pred_region
          _
        $region20: #{tpu_custom_call.1} parent=11 // pred_fallthru
          _
        // Predicated region
        $region21: #{tpu_custom_call.1} parent=11 // pred_check
          %p356 = pneg %p202
        $region22: #{tpu_custom_call.1} parent=11 // pred_check_branch
          %358 = sbr.rel (%p356) target = $region24
        $region23: #{tpu_custom_call.1} parent=11 // pred_region
          _
        $region24: #{tpu_custom_call.1} parent=11 // pred_fallthru
          _
        // Predicated region
        $region25: #{tpu_custom_call.1} parent=11 // pred_check
          %p359 = pneg %p223
        $region26: #{tpu_custom_call.1} parent=11 // pred_check_branch
          %361 = sbr.rel (%p359) target = $region28
        $region27: #{tpu_custom_call.1} parent=11 // pred_region
          _
        $region28: #{tpu_custom_call.1} parent=11 // pred_fallthru
          _
        // Predicated region
        $region29: #{tpu_custom_call.1} parent=11 // pred_check
          %p362 = pneg %p244
        $region30: #{tpu_custom_call.1} parent=11 // pred_check_branch
          %364 = sbr.rel (%p362) target = $region32
        $region31: #{tpu_custom_call.1} parent=11 // pred_region
          %s366 = ssub.s32 3072, 3072
          %367 = vsyncadd [#allocation9], %s366
          %s368 = sshll.u32 [#allocation8], 4
          %s369 = int_to_ptr.vmem [resolvable:$true] %s368
          %374 = dma.hbm_to_vmem [thread:$0]  %s7, 3072, %s369, [#allocation9], 128, 128, 8
        $region32: #{tpu_custom_call.1} parent=11 // pred_fallthru
          _
        // Predicated region
        $region33: #{tpu_custom_call.1} parent=11 // pred_check
          %p375 = pneg %p265
        $region34: #{tpu_custom_call.1} parent=11 // pred_check_branch
          %377 = sbr.rel (%p375) target = $region36
        $region35: #{tpu_custom_call.1} parent=11 // pred_region
          %s379 = ssub.s32 16, 16
          %380 = vsyncadd [#allocation9], %s379
          %s382 = sshll.u32 [#allocation10], 4
          %s383 = int_to_ptr.vmem [resolvable:$true] %s382
          %385 = dma.hbm_to_vmem [thread:$0]  %s8, 16, %s383, [#allocation9]
        $region36: #{tpu_custom_call.1} parent=11 // pred_fallthru
          _
        // Predicated region
        $region37: #{tpu_custom_call.1} parent=11 // pred_check
          %p386 = pneg %p286
        $region38: #{tpu_custom_call.1} parent=11 // pred_check_branch
          %388 = sbr.rel (%p386) target = $region40
        $region39: #{tpu_custom_call.1} parent=11 // pred_region
          _
        $region40: #{tpu_custom_call.1} parent=11 // pred_fallthru
          _
        // Predicated region
        $region41: #{tpu_custom_call.1} parent=11 // pred_check
          %p389 = pneg %p307
        $region42: #{tpu_custom_call.1} parent=11 // pred_check_branch
          %391 = sbr.rel (%p389) target = $region44
        $region43: #{tpu_custom_call.1} parent=11 // pred_region
          _
        $region44: #{tpu_custom_call.1} parent=11 // pred_fallthru
          _
      $region12: #{tpu_custom_call.1} parent=5 // pred_fallthru
        _
      %p392 = scmp.lt.s32.totalorder %s27, 4
      // Predicated region
      $region45: #{tpu_custom_call.1} parent=5 // pred_check
        %p393 = pneg %p392
      $region46: #{tpu_custom_call.1} parent=5 // pred_check_branch
        %395 = sbr.rel (%p393) target = $region48
      $region47: #{tpu_custom_call.1} parent=5 // pred_region
        // Predicated region
        $region49: #{tpu_custom_call.1} parent=47 // pred_check
          %p396 = pneg %p61
        $region50: #{tpu_custom_call.1} parent=47 // pred_check_branch
          %398 = sbr.rel (%p396) target = $region52
        $region51: #{tpu_custom_call.1} parent=47 // pred_region
          %s399 = sand.u32 %s51, 1
          %s400 = scalar_lea.sflag [#allocation3], %s399
          %s401 = sand.u32 %s51, 1
          %s402 = smul.addr %s401, 64
          %s403 = scalar_lea.vmem [#allocation2], %s402
          %s404 = smul.u32 16, %s35
          %s406 = ssub.s32 1024, 1024
          %407 = vsyncadd %s400, %s406
          %s408 = smul.addr %s34, 32
          %s409 = sadd.s32 %s404, %s408
          %s410 = smul.addr %s409, 64
          %s411 = scalar_lea.hbm %s0, %s410
          %s412 = sshll.u32 %s403, 4
          %s413 = int_to_ptr.vmem [resolvable:$true] %s412
          %418 = dma.hbm_to_vmem [thread:$0]  %s411, 1024, %s413, %s400, 64, 64, 4
        $region52: #{tpu_custom_call.1} parent=47 // pred_fallthru
          _
        // Predicated region
        $region53: #{tpu_custom_call.1} parent=47 // pred_check
          %p419 = pneg %p97
        $region54: #{tpu_custom_call.1} parent=47 // pred_check_branch
          %421 = sbr.rel (%p419) target = $region56
        $region55: #{tpu_custom_call.1} parent=47 // pred_region
          %s422 = sand.u32 %s27, 1
          %s423 = scalar_lea.sflag [#allocation6], %s422
          %s424 = sand.u32 %s87, 1
          %s425 = smul.addr %s424, 8
          %s426 = scalar_lea.vmem [#allocation5], %s425
          %s427 = smul.u32 %s35, 8
          %s428 = ssub.s32 %s427, 1
          %p429 = scmp.gt.s32.totalorder %s428, 0
          %s430 = scalar_select %p429, %s428, 0
          %s431 = smul.u32 2, %s430
          %s433 = ssub.s32 128, 128
          %434 = vsyncadd %s423, %s433
          %s435 = smul.addr %s34, 32
          %s436 = sadd.s32 %s431, %s435
          %s437 = smul.addr %s436, 64
          %s438 = scalar_lea.hbm %s1, %s437
          %s439 = sshll.u32 %s426, 4
          %s440 = int_to_ptr.vmem [resolvable:$true] %s439
          %445 = dma.hbm_to_vmem [thread:$0]  %s438, 128, %s440, %s423, 64, 64, 4
        $region56: #{tpu_custom_call.1} parent=47 // pred_fallthru
          _
        // Predicated region
        $region57: #{tpu_custom_call.1} parent=47 // pred_check
          %p446 = pneg %p133
        $region58: #{tpu_custom_call.1} parent=47 // pred_check_branch
          %448 = sbr.rel (%p446) target = $region60
        $region59: #{tpu_custom_call.1} parent=47 // pred_region
          %s449 = sand.u32 %s27, 1
          %s450 = scalar_lea.sflag [#allocation6], %s449
          %s451 = sand.u32 %s123, 1
          %s452 = smul.addr %s451, 8
          %s453 = scalar_lea.vmem [#allocation7], %s452
          %s454 = sadd.s32 %s35, 1
          %s455 = smul.u32 %s454, 8
          %p456 = scmp.lt.s32.totalorder %s455, 15
          %s457 = scalar_select %p456, %s455, 15
          %s458 = smul.u32 2, %s457
          %s460 = ssub.s32 128, 128
          %461 = vsyncadd %s450, %s460
          %s462 = smul.addr %s34, 32
          %s463 = sadd.s32 %s458, %s462
          %s464 = smul.addr %s463, 64
          %s465 = scalar_lea.hbm %s2, %s464
          %s466 = sshll.u32 %s453, 4
          %s467 = int_to_ptr.vmem [resolvable:$true] %s466
          %472 = dma.hbm_to_vmem [thread:$0]  %s465, 128, %s467, %s450, 64, 64, 4
        $region60: #{tpu_custom_call.1} parent=47 // pred_fallthru
          _
      $region48: #{tpu_custom_call.1} parent=5 // pred_fallthru
        _
      %p473 = scmp.le.s32.totalorder 1, %s27
      %p474 = scmp.lt.s32.totalorder %s27, 5
      %p475 = pnand %p473, %p474
      %p476 = pneg %p475
      // Predicated region
      $region61: #{tpu_custom_call.1} parent=5 // pred_check
        _
      $region62: #{tpu_custom_call.1} parent=5 // pred_check_branch
        %478 = sbr.rel (%p475) target = $region64
      $region63: #{tpu_custom_call.1} parent=5 // pred_region
        %s479 = ssub.s32 %s27, 1
        %s480 = sand.u32 %s54, 1
        %s481 = scalar_lea.sflag [#allocation3], %s480
        %s482 = sand.u32 %s54, 1
        %s483 = smul.addr %s482, 64
        %s484 = scalar_lea.vmem [#allocation2], %s483
        // Predicated region
        $region65: #{tpu_custom_call.1} parent=63 // pred_check
          %p485 = pneg %p67
        $region66: #{tpu_custom_call.1} parent=63 // pred_check_branch
          %487 = sbr.rel (%p485) target = $region68
        $region67: #{tpu_custom_call.1} parent=63 // pred_region
          %488 = dma.done %s481, 1024
        $region68: #{tpu_custom_call.1} parent=63 // pred_fallthru
          _
        %s489 = sand.u32 %s32, 1
        %s490 = scalar_lea.sflag [#allocation6], %s489
        %s491 = sand.u32 %s90, 1
        %s492 = smul.addr %s491, 8
        %s493 = scalar_lea.vmem [#allocation5], %s492
        // Predicated region
        $region69: #{tpu_custom_call.1} parent=63 // pred_check
          %p494 = pneg %p103
        $region70: #{tpu_custom_call.1} parent=63 // pred_check_branch
          %496 = sbr.rel (%p494) target = $region72
        $region71: #{tpu_custom_call.1} parent=63 // pred_region
          %497 = dma.done %s490, 128
        $region72: #{tpu_custom_call.1} parent=63 // pred_fallthru
          _
        %s498 = sand.u32 %s32, 1
        %s499 = scalar_lea.sflag [#allocation6], %s498
        %s500 = sand.u32 %s126, 1
        %s501 = smul.addr %s500, 8
        %s502 = scalar_lea.vmem [#allocation7], %s501
        // Predicated region
        $region73: #{tpu_custom_call.1} parent=63 // pred_check
          %p503 = pneg %p139
        $region74: #{tpu_custom_call.1} parent=63 // pred_check_branch
          %505 = sbr.rel (%p503) target = $region76
        $region75: #{tpu_custom_call.1} parent=63 // pred_region
          %506 = dma.done %s499, 128
        $region76: #{tpu_custom_call.1} parent=63 // pred_fallthru
          _
        // Predicated region
        $region77: #{tpu_custom_call.1} parent=63 // pred_check
          %p507 = pneg %p244
        $region78: #{tpu_custom_call.1} parent=63 // pred_check_branch
          %509 = sbr.rel (%p507) target = $region80
        $region79: #{tpu_custom_call.1} parent=63 // pred_region
          %510 = dma.done [#allocation9], 3072
        $region80: #{tpu_custom_call.1} parent=63 // pred_fallthru
          _
        // Predicated region
        $region81: #{tpu_custom_call.1} parent=63 // pred_check
          %p511 = pneg %p265
        $region82: #{tpu_custom_call.1} parent=63 // pred_check_branch
          %513 = sbr.rel (%p511) target = $region84
        $region83: #{tpu_custom_call.1} parent=63 // pred_region
          %514 = dma.done [#allocation9], 16
        $region84: #{tpu_custom_call.1} parent=63 // pred_fallthru
          _
        %s515 = sand.u32 %s54, 1
        %s516 = scalar_lea.sflag [#allocation3], %s515
        %s517 = sand.u32 %s54, 1
        %s518 = smul.addr %s517, 64
        %s519 = scalar_lea.vmem [#allocation2], %s518
        %p520 = pneg %p67
        %p521 = pneg %p64
        %s522 = sand.u32 %s32, 1
        %s523 = scalar_lea.sflag [#allocation6], %s522
        %s524 = sand.u32 %s90, 1
        %s525 = smul.addr %s524, 8
        %s526 = scalar_lea.vmem [#allocation5], %s525
        %p527 = pneg %p103
        %p528 = pneg %p100
        %s529 = sand.u32 %s32, 1
        %s530 = scalar_lea.sflag [#allocation6], %s529
        %s531 = sand.u32 %s126, 1
        %s532 = smul.addr %s531, 8
        %s533 = scalar_lea.vmem [#allocation7], %s532
        %p534 = pneg %p139
        %p535 = pneg %p136
        %p536 = pneg %p160
        %p537 = pneg %p157
        %p538 = pneg %p181
        %p539 = pneg %p178
        %p540 = pneg %p202
        %p541 = pneg %p199
        %p542 = pneg %p223
        %p543 = pneg %p220
        %p544 = pneg %p244
        %p545 = pneg %p241
        %p546 = pneg %p265
        %p547 = pneg %p262
        %p548 = pneg %p286
        %p549 = pneg %p283
        %p550 = pneg %p307
        %p551 = pneg %p304
        %p552 = pneg %p335
        %p553 = pneg %p332
        %s554 = sand.u32 %s322, 1
        %s555 = scalar_lea.sflag [#allocation4], %s554
        %s556 = sand.u32 %s322, 1
        %s557 = smul.addr %s556, 128
        %s558 = scalar_lea.vmem [#allocation11], %s557
        %s559 = smul.u32 16, %s37
        %s560 = smul.u32 %s37, 8
        %s561 = ssub.s32 %s560, 1
        %p562 = scmp.gt.s32.totalorder %s561, 0
        %s563 = scalar_select %p562, %s561, 0
        %s564 = smul.u32 2, %s563
        %s565 = sadd.s32 %s37, 1
        %s566 = smul.u32 %s565, 8
        %p567 = scmp.lt.s32.totalorder %s566, 15
        %s568 = scalar_select %p567, %s566, 15
        %s569 = smul.u32 2, %s568
        %s570 = smul.u32 16, %s37
        %v572 = vld [vmem:[%s493] sm:$0xf]
        %v573 = vld [vmem:[%s493 + $0x4] sm:$0xf]
        %v574 = vld [vmem:[%s484] sm:$0xf]
        %v575 = vld [vmem:[%s484 + $0x4] sm:$0xf]
        %v576 = vld [vmem:[%s484 + $0x8] sm:$0xf]
        %v577 = vld [vmem:[%s484 + $0xc] sm:$0xf]
        %v578 = vld [vmem:[%s484 + $0x10] sm:$0xf]
        %v579 = vld [vmem:[%s484 + $0x14] sm:$0xf]
        %v580 = vld [vmem:[%s484 + $0x18] sm:$0xf]
        %v581 = vld [vmem:[%s484 + $0x1c] sm:$0xf]
        %v582 = vld [vmem:[%s484 + $0x20] sm:$0xf]
        %v583 = vld [vmem:[%s484 + $0x24] sm:$0xf]
        %v584 = vld [vmem:[%s484 + $0x28] sm:$0xf]
        %v585 = vld [vmem:[%s484 + $0x2c] sm:$0xf]
        %v586 = vld [vmem:[%s484 + $0x30] sm:$0xf]
        %v587 = vld [vmem:[%s484 + $0x34] sm:$0xf]
        %v588 = vld [vmem:[%s484 + $0x38] sm:$0xf]
        %v589 = vld [vmem:[%s484 + $0x3c] sm:$0xf]
        %v590 = vld [vmem:[%s502] sm:$0xf]
        %v591 = vld [vmem:[%s502 + $0x4] sm:$0xf]
        %v594 = vunpack.c.l.b16 %v572
        %v595 = vunpack.c.l.b16 %v573
        %v596 = vpack.c.b16 %v595, %v594
        %v614 = vunpack.c.l.b16 %v574
        %v615 = vunpack.c.l.b16 %v575
        %v616 = vunpack.c.l.b16 %v576
        %v617 = vunpack.c.l.b16 %v577
        %v618 = vunpack.c.l.b16 %v578
        %v619 = vunpack.c.l.b16 %v579
        %v620 = vunpack.c.l.b16 %v580
        %v621 = vunpack.c.l.b16 %v581
        %v622 = vunpack.c.l.b16 %v582
        %v623 = vunpack.c.l.b16 %v583
        %v624 = vunpack.c.l.b16 %v584
        %v625 = vunpack.c.l.b16 %v585
        %v626 = vunpack.c.l.b16 %v586
        %v627 = vunpack.c.l.b16 %v587
        %v628 = vunpack.c.l.b16 %v588
        %v629 = vunpack.c.l.b16 %v589
        %v630 = vpack.c.b16 %v615, %v614
        %v631 = vpack.c.b16 %v617, %v616
        %v632 = vpack.c.b16 %v619, %v618
        %v633 = vpack.c.b16 %v621, %v620
        %v634 = vpack.c.b16 %v623, %v622
        %v635 = vpack.c.b16 %v625, %v624
        %v636 = vpack.c.b16 %v627, %v626
        %v637 = vpack.c.b16 %v629, %v628
        %v648 = vunpack.c.l.b16 %v590
        %v649 = vunpack.c.l.b16 %v591
        %v650 = vpack.c.b16 %v649, %v648
        %v652 = vld [vmem:[%s3] sm:$0xf]
        %v653 = vld [vmem:[%s3 + $0x4] sm:$0xf]
        %v654 = vld [vmem:[%s3 + $0x8] sm:$0xf]
        %v655 = vld [vmem:[%s3 + $0xc] sm:$0xf]
        %v656 = vld [vmem:[%s3 + $0x10] sm:$0xf]
        %v657 = vld [vmem:[%s3 + $0x14] sm:$0xf]
        %v658 = vld [vmem:[%s3 + $0x18] sm:$0xf]
        %v659 = vld [vmem:[%s3 + $0x1c] sm:$0xf]
        %v660 = vld [vmem:[%s3 + $0x20] sm:$0xf]
        %v661 = vld [vmem:[%s3 + $0x24] sm:$0xf]
        %v662 = vld [vmem:[%s3 + $0x28] sm:$0xf]
        %v663 = vld [vmem:[%s3 + $0x2c] sm:$0xf]
        %v664 = vld [vmem:[%s3 + $0x30] sm:$0xf]
        %v665 = vld [vmem:[%s3 + $0x34] sm:$0xf]
        %v666 = vld [vmem:[%s3 + $0x38] sm:$0xf]
        %v667 = vld [vmem:[%s3 + $0x3c] sm:$0xf]
        %v668 = vld [vmem:[%s4] sm:$0x1]
        %v670 = vlaneseq
        %v671 = vshrl.u32 %v670, 7
        %v672 = vsub.s32 0, %v671
        %v673 = vrot.slane %v668, %v672
        %v691 = vunpack.c.l.b16 %v652
        %v692 = vunpack.c.l.b16 %v653
        %v693 = vunpack.c.l.b16 %v654
        %v694 = vunpack.c.l.b16 %v655
        %v695 = vunpack.c.l.b16 %v656
        %v696 = vunpack.c.l.b16 %v657
        %v697 = vunpack.c.l.b16 %v658
        %v698 = vunpack.c.l.b16 %v659
        %v699 = vunpack.c.l.b16 %v660
        %v700 = vunpack.c.l.b16 %v661
        %v701 = vunpack.c.l.b16 %v662
        %v702 = vunpack.c.l.b16 %v663
        %v703 = vunpack.c.l.b16 %v664
        %v704 = vunpack.c.l.b16 %v665
        %v705 = vunpack.c.l.b16 %v666
        %v706 = vunpack.c.l.b16 %v667
        %v707 = vpack.c.b16 %v692, %v691
        %v708 = vpack.c.b16 %v694, %v693
        %v709 = vpack.c.b16 %v696, %v695
        %v710 = vpack.c.b16 %v698, %v697
        %v711 = vpack.c.b16 %v700, %v699
        %v712 = vpack.c.b16 %v702, %v701
        %v713 = vpack.c.b16 %v704, %v703
        %v714 = vpack.c.b16 %v706, %v705
        %723 = vmatprep.subr.bf16.mxu0 0
        %724 = vmatpush1.bf16.msra.mxu0 %v707
        %725 = vmatprep.subr.bf16.mxu0 0
        %726 = vmatpush1.bf16.msra.mxu0 %v708
        %727 = vmatprep.subr.bf16.mxu0 0
        %728 = vmatpush1.bf16.msra.mxu0 %v709
        %729 = vmatprep.subr.bf16.mxu0 0
        %730 = vmatpush1.bf16.msra.mxu0 %v710
        %731 = vmatprep.subr.bf16.mxu0 0
        %732 = vmatpush1.bf16.msra.mxu0 %v711
        %733 = vmatprep.subr.bf16.mxu0 0
        %734 = vmatpush1.bf16.msra.mxu0 %v712
        %735 = vmatprep.subr.bf16.mxu0 0
        %736 = vmatpush1.bf16.msra.mxu0 %v713
        %737 = vmatprep.subr.bf16.mxu0 0
        %738 = vmatpush1.bf16.msra.mxu0 %v714
        %739 = vmatprep.subr.bf16.mxu0 0
        %740 = vmatpush1.bf16.msra.mxu0 0
        %741 = vmatprep.subr.bf16.mxu0 0
        %742 = vmatpush1.bf16.msra.mxu0 0
        %743 = vmatprep.subr.bf16.mxu0 0
        %744 = vmatpush1.bf16.msra.mxu0 0
        %745 = vmatprep.subr.bf16.mxu0 0
        %746 = vmatpush1.bf16.msra.mxu0 0
        %747 = vmatprep.subr.bf16.mxu0 0
        %748 = vmatpush1.bf16.msra.mxu0 0
        %749 = vmatprep.subr.bf16.mxu0 0
        %750 = vmatpush1.bf16.msra.mxu0 0
        %751 = vmatprep.subr.bf16.mxu0 0
        %752 = vmatpush1.bf16.msra.mxu0 0
        %753 = vmatprep.subr.bf16.mxu0 0
        %754 = vmatpush1.bf16.msra.mxu0 0
        %755 = vmatprep.mubr.bf16.mxu0 0
        %756 = vmatmul.mubr.bf16.gmra.mrb[0].mxu0 %v596
        %v757 = vpop.f32.mrb[0].mxu0
        %v758 = vadd.f32 %v673, %v757
        %v759 = vpop.f32.mrb[0].mxu0
        %v760 = vpop.f32.mrb[0].mxu0
        %v761 = vadd.f32 %v673, %v760
        %v762 = vpop.f32.mrb[0].mxu0
        %763 = vmatprep.mubr.bf16.mxu0 0
        %764 = vmatmul.mubr.bf16.gmra.mrb[0].mxu0 %v630
        %v765 = vpop.f32.mrb[0].mxu0
        %v766 = vadd.f32 %v673, %v765
        %v767 = vpop.f32.mrb[0].mxu0
        %v768 = vpop.f32.mrb[0].mxu0
        %v769 = vadd.f32 %v673, %v768
        %v770 = vpop.f32.mrb[0].mxu0
        %771 = vmatprep.mubr.bf16.mxu0 0
        %772 = vmatmul.mubr.bf16.gmra.mrb[0].mxu0 %v631
        %v773 = vpop.f32.mrb[0].mxu0
        %v774 = vadd.f32 %v673, %v773
        %v775 = vpop.f32.mrb[0].mxu0
        %v776 = vpop.f32.mrb[0].mxu0
        %v777 = vadd.f32 %v673, %v776
        %v778 = vpop.f32.mrb[0].mxu0
        %779 = vmatprep.mubr.bf16.mxu0 0
        %780 = vmatmul.mubr.bf16.gmra.mrb[0].mxu0 %v632
        %v781 = vpop.f32.mrb[0].mxu0
        %v782 = vadd.f32 %v673, %v781
        %v783 = vpop.f32.mrb[0].mxu0
        %v784 = vpop.f32.mrb[0].mxu0
        %v785 = vadd.f32 %v673, %v784
        %v786 = vpop.f32.mrb[0].mxu0
        %787 = vmatprep.mubr.bf16.mxu0 0
        %788 = vmatmul.mubr.bf16.gmra.mrb[0].mxu0 %v633
        %v789 = vpop.f32.mrb[0].mxu0
        %v790 = vadd.f32 %v673, %v789
        %v791 = vpop.f32.mrb[0].mxu0
        %v792 = vpop.f32.mrb[0].mxu0
        %v793 = vadd.f32 %v673, %v792
        %v794 = vpop.f32.mrb[0].mxu0
        %795 = vmatprep.mubr.bf16.mxu0 0
        %796 = vmatmul.mubr.bf16.gmra.mrb[0].mxu0 %v634
        %v797 = vpop.f32.mrb[0].mxu0
        %v798 = vadd.f32 %v673, %v797
        %v799 = vpop.f32.mrb[0].mxu0
        %v800 = vpop.f32.mrb[0].mxu0
        %v801 = vadd.f32 %v673, %v800
        %v802 = vpop.f32.mrb[0].mxu0
        %803 = vmatprep.mubr.bf16.mxu0 0
        %804 = vmatmul.mubr.bf16.gmra.mrb[0].mxu0 %v635
        %v805 = vpop.f32.mrb[0].mxu0
        %v806 = vadd.f32 %v673, %v805
        %v807 = vpop.f32.mrb[0].mxu0
        %v808 = vpop.f32.mrb[0].mxu0
        %v809 = vadd.f32 %v673, %v808
        %v810 = vpop.f32.mrb[0].mxu0
        %811 = vmatprep.mubr.bf16.mxu0 0
        %812 = vmatmul.mubr.bf16.gmra.mrb[0].mxu0 %v636
        %v813 = vpop.f32.mrb[0].mxu0
        %v814 = vadd.f32 %v673, %v813
        %v815 = vpop.f32.mrb[0].mxu0
        %v816 = vpop.f32.mrb[0].mxu0
        %v817 = vadd.f32 %v673, %v816
        %v818 = vpop.f32.mrb[0].mxu0
        %819 = vmatprep.mubr.bf16.mxu0 0
        %820 = vmatmul.mubr.bf16.gmra.mrb[0].mxu0 %v637
        %v821 = vpop.f32.mrb[0].mxu0
        %v822 = vadd.f32 %v673, %v821
        %v823 = vpop.f32.mrb[0].mxu0
        %v824 = vpop.f32.mrb[0].mxu0
        %v825 = vadd.f32 %v673, %v824
        %v826 = vpop.f32.mrb[0].mxu0
        %827 = vmatprep.mubr.bf16.mxu0 0
        %828 = vmatmul.mubr.bf16.gmra.mrb[0].mxu0 %v650
        %v829 = vpop.f32.mrb[0].mxu0
        %v830 = vadd.f32 %v673, %v829
        %v831 = vpop.f32.mrb[0].mxu0
        %v832 = vpop.f32.mrb[0].mxu0
        %v833 = vadd.f32 %v673, %v832
        %v834 = vpop.f32.mrb[0].mxu0
        %835 = vdwg.mxu0
        %v836 = vsub.f32 0.0, %v758
        %v837 = vsub.f32 0.0, %v761
        %v838 = vsub.f32 0.0, %v766
        %v839 = vsub.f32 0.0, %v769
        %v840 = vsub.f32 0.0, %v774
        %v841 = vsub.f32 0.0, %v777
        %v842 = vsub.f32 0.0, %v782
        %v843 = vsub.f32 0.0, %v785
        %v844 = vsub.f32 0.0, %v790
        %v845 = vsub.f32 0.0, %v793
        %v846 = vsub.f32 0.0, %v798
        %v847 = vsub.f32 0.0, %v801
        %v848 = vsub.f32 0.0, %v806
        %v849 = vsub.f32 0.0, %v809
        %v850 = vsub.f32 0.0, %v814
        %v851 = vsub.f32 0.0, %v817
        %v852 = vsub.f32 0.0, %v822
        %v853 = vsub.f32 0.0, %v825
        %v854 = vsub.f32 0.0, %v830
        %v855 = vsub.f32 0.0, %v833
        %v856 = vmul.f32 %v836, 1.442695
        %v857 = vpow.pop %v856
        %v858 = vmul.f32 %v837, 1.442695
        %v859 = vpow.pop %v858
        %v860 = vmul.f32 %v838, 1.442695
        %v861 = vpow.pop %v860
        %v862 = vmul.f32 %v839, 1.442695
        %v863 = vpow.pop %v862
        %v864 = vmul.f32 %v840, 1.442695
        %v865 = vpow.pop %v864
        %v866 = vmul.f32 %v841, 1.442695
        %v867 = vpow.pop %v866
        %v868 = vmul.f32 %v842, 1.442695
        %v869 = vpow.pop %v868
        %v870 = vmul.f32 %v843, 1.442695
        %v871 = vpow.pop %v870
        %v872 = vmul.f32 %v844, 1.442695
        %v873 = vpow.pop %v872
        %v874 = vmul.f32 %v845, 1.442695
        %v875 = vpow.pop %v874
        %v876 = vmul.f32 %v846, 1.442695
        %v877 = vpow.pop %v876
        %v878 = vmul.f32 %v847, 1.442695
        %v879 = vpow.pop %v878
        %v880 = vmul.f32 %v848, 1.442695
        %v881 = vpow.pop %v880
        %v882 = vmul.f32 %v849, 1.442695
        %v883 = vpow.pop %v882
        %v884 = vmul.f32 %v850, 1.442695
        %v885 = vpow.pop %v884
        %v886 = vmul.f32 %v851, 1.442695
        %v887 = vpow.pop %v886
        %v888 = vmul.f32 %v852, 1.442695
        %v889 = vpow.pop %v888
        %v890 = vmul.f32 %v853, 1.442695
        %v891 = vpow.pop %v890
        %v892 = vmul.f32 %v854, 1.442695
        %v893 = vpow.pop %v892
        %v894 = vmul.f32 %v855, 1.442695
        %v895 = vpow.pop %v894
        %v896 = vadd.f32 %v857, 1.0
        %v897 = vadd.f32 %v859, 1.0
        %v898 = vadd.f32 %v861, 1.0
        %v899 = vadd.f32 %v863, 1.0
        %v900 = vadd.f32 %v865, 1.0
        %v901 = vadd.f32 %v867, 1.0
        %v902 = vadd.f32 %v869, 1.0
        %v903 = vadd.f32 %v871, 1.0
        %v904 = vadd.f32 %v873, 1.0
        %v905 = vadd.f32 %v875, 1.0
        %v906 = vadd.f32 %v877, 1.0
        %v907 = vadd.f32 %v879, 1.0
        %v908 = vadd.f32 %v881, 1.0
        %v909 = vadd.f32 %v883, 1.0
        %v910 = vadd.f32 %v885, 1.0
        %v911 = vadd.f32 %v887, 1.0
        %v912 = vadd.f32 %v889, 1.0
        %v913 = vadd.f32 %v891, 1.0
        %v914 = vadd.f32 %v893, 1.0
        %v915 = vadd.f32 %v895, 1.0
        %v916 = vrcp.pop %v896
        %v917 = vrcp.pop %v897
        %v918 = vrcp.pop %v898
        %v919 = vrcp.pop %v899
        %v920 = vrcp.pop %v900
        %v921 = vrcp.pop %v901
        %v922 = vrcp.pop %v902
        %v923 = vrcp.pop %v903
        %v924 = vrcp.pop %v904
        %v925 = vrcp.pop %v905
        %v926 = vrcp.pop %v906
        %v927 = vrcp.pop %v907
        %v928 = vrcp.pop %v908
        %v929 = vrcp.pop %v909
        %v930 = vrcp.pop %v910
        %v931 = vrcp.pop %v911
        %v932 = vrcp.pop %v912
        %v933 = vrcp.pop %v913
        %v934 = vrcp.pop %v914
        %v935 = vrcp.pop %v915
        %v936 = vmul.f32 %v758, %v916
        %v937 = vmul.f32 %v761, %v917
        %v938 = vmul.f32 %v766, %v918
        %v939 = vmul.f32 %v769, %v919
        %v940 = vmul.f32 %v774, %v920
        %v941 = vmul.f32 %v777, %v921
        %v942 = vmul.f32 %v782, %v922
        %v943 = vmul.f32 %v785, %v923
        %v944 = vmul.f32 %v790, %v924
        %v945 = vmul.f32 %v793, %v925
        %v946 = vmul.f32 %v798, %v926
        %v947 = vmul.f32 %v801, %v927
        %v948 = vmul.f32 %v806, %v928
        %v949 = vmul.f32 %v809, %v929
        %v950 = vmul.f32 %v814, %v930
        %v951 = vmul.f32 %v817, %v931
        %v952 = vmul.f32 %v822, %v932
        %v953 = vmul.f32 %v825, %v933
        %v954 = vmul.f32 %v830, %v934
        %v955 = vmul.f32 %v833, %v935
        %v956 = vpack.c.bf16 %v937, %v936
        %v957 = vpack.c.bf16 %v939, %v938
        %v958 = vpack.c.bf16 %v941, %v940
        %v959 = vpack.c.bf16 %v943, %v942
        %v960 = vpack.c.bf16 %v945, %v944
        %v961 = vpack.c.bf16 %v947, %v946
        %v962 = vpack.c.bf16 %v949, %v948
        %v963 = vpack.c.bf16 %v951, %v950
        %v964 = vpack.c.bf16 %v953, %v952
        %v965 = vpack.c.bf16 %v955, %v954
        %v966 = vld [vmem:[%s5] sm:$0xf]
        %v967 = vld [vmem:[%s5 + $0x4] sm:$0xf]
        %v968 = vld [vmem:[%s5 + $0x8] sm:$0xf]
        %v969 = vld [vmem:[%s5 + $0xc] sm:$0xf]
        %v970 = vld [vmem:[%s5 + $0x10] sm:$0xf]
        %v971 = vld [vmem:[%s5 + $0x14] sm:$0xf]
        %v972 = vld [vmem:[%s5 + $0x18] sm:$0xf]
        %v973 = vld [vmem:[%s5 + $0x1c] sm:$0xf]
        %v974 = vld [vmem:[%s5 + $0x20] sm:$0xf]
        %v975 = vld [vmem:[%s5 + $0x24] sm:$0xf]
        %v976 = vld [vmem:[%s5 + $0x28] sm:$0xf]
        %v977 = vld [vmem:[%s5 + $0x2c] sm:$0xf]
        %v978 = vld [vmem:[%s5 + $0x30] sm:$0xf]
        %v979 = vld [vmem:[%s5 + $0x34] sm:$0xf]
        %v980 = vld [vmem:[%s5 + $0x38] sm:$0xf]
        %v981 = vld [vmem:[%s5 + $0x3c] sm:$0xf]
        %v982 = vld [vmem:[%s6] sm:$0x1]
        %v984 = vlaneseq
        %v985 = vshrl.u32 %v984, 7
        %v986 = vsub.s32 0, %v985
        %v987 = vrot.slane %v982, %v986
        %v1005 = vunpack.c.l.b16 %v966
        %v1006 = vunpack.c.l.b16 %v967
        %v1007 = vunpack.c.l.b16 %v968
        %v1008 = vunpack.c.l.b16 %v969
        %v1009 = vunpack.c.l.b16 %v970
        %v1010 = vunpack.c.l.b16 %v971
        %v1011 = vunpack.c.l.b16 %v972
        %v1012 = vunpack.c.l.b16 %v973
        %v1013 = vunpack.c.l.b16 %v974
        %v1014 = vunpack.c.l.b16 %v975
        %v1015 = vunpack.c.l.b16 %v976
        %v1016 = vunpack.c.l.b16 %v977
        %v1017 = vunpack.c.l.b16 %v978
        %v1018 = vunpack.c.l.b16 %v979
        %v1019 = vunpack.c.l.b16 %v980
        %v1020 = vunpack.c.l.b16 %v981
        %v1021 = vpack.c.b16 %v1006, %v1005
        %v1022 = vpack.c.b16 %v1008, %v1007
        %v1023 = vpack.c.b16 %v1010, %v1009
        %v1024 = vpack.c.b16 %v1012, %v1011
        %v1025 = vpack.c.b16 %v1014, %v1013
        %v1026 = vpack.c.b16 %v1016, %v1015
        %v1027 = vpack.c.b16 %v1018, %v1017
        %v1028 = vpack.c.b16 %v1020, %v1019
        %1037 = vmatprep.subr.bf16.mxu0 0
        %1038 = vmatpush1.bf16.msra.mxu0 %v1021
        %1039 = vmatprep.subr.bf16.mxu0 0
        %1040 = vmatpush1.bf16.msra.mxu0 %v1022
        %1041 = vmatprep.subr.bf16.mxu0 0
        %1042 = vmatpush1.bf16.msra.mxu0 %v1023
        %1043 = vmatprep.subr.bf16.mxu0 0
        %1044 = vmatpush1.bf16.msra.mxu0 %v1024
        %1045 = vmatprep.subr.bf16.mxu0 0
        %1046 = vmatpush1.bf16.msra.mxu0 %v1025
        %1047 = vmatprep.subr.bf16.mxu0 0
        %1048 = vmatpush1.bf16.msra.mxu0 %v1026
        %1049 = vmatprep.subr.bf16.mxu0 0
        %1050 = vmatpush1.bf16.msra.mxu0 %v1027
        %1051 = vmatprep.subr.bf16.mxu0 0
        %1052 = vmatpush1.bf16.msra.mxu0 %v1028
        %1053 = vmatprep.subr.bf16.mxu0 0
        %1054 = vmatpush1.bf16.msra.mxu0 0
        %1055 = vmatprep.subr.bf16.mxu0 0
        %1056 = vmatpush1.bf16.msra.mxu0 0
        %1057 = vmatprep.subr.bf16.mxu0 0
        %1058 = vmatpush1.bf16.msra.mxu0 0
        %1059 = vmatprep.subr.bf16.mxu0 0
        %1060 = vmatpush1.bf16.msra.mxu0 0
        %1061 = vmatprep.subr.bf16.mxu0 0
        %1062 = vmatpush1.bf16.msra.mxu0 0
        %1063 = vmatprep.subr.bf16.mxu0 0
        %1064 = vmatpush1.bf16.msra.mxu0 0
        %1065 = vmatprep.subr.bf16.mxu0 0
        %1066 = vmatpush1.bf16.msra.mxu0 0
        %1067 = vmatprep.subr.bf16.mxu0 0
        %1068 = vmatpush1.bf16.msra.mxu0 0
        %1069 = vmatprep.mubr.bf16.mxu0 0
        %1070 = vmatmul.mubr.bf16.gmra.mrb[0].mxu0 %v956
        %v1071 = vpop.f32.mrb[0].mxu0
        %v1072 = vadd.f32 %v987, %v1071
        %v1073 = vpop.f32.mrb[0].mxu0
        %v1074 = vpop.f32.mrb[0].mxu0
        %v1075 = vadd.f32 %v987, %v1074
        %v1076 = vpop.f32.mrb[0].mxu0
        %1077 = vmatprep.mubr.bf16.mxu0 0
        %1078 = vmatmul.mubr.bf16.gmra.mrb[0].mxu0 %v957
        %v1079 = vpop.f32.mrb[0].mxu0
        %v1080 = vadd.f32 %v987, %v1079
        %v1081 = vpop.f32.mrb[0].mxu0
        %v1082 = vpop.f32.mrb[0].mxu0
        %v1083 = vadd.f32 %v987, %v1082
        %v1084 = vpop.f32.mrb[0].mxu0
        %1085 = vmatprep.mubr.bf16.mxu0 0
        %1086 = vmatmul.mubr.bf16.gmra.mrb[0].mxu0 %v958
        %v1087 = vpop.f32.mrb[0].mxu0
        %v1088 = vadd.f32 %v987, %v1087
        %v1089 = vpop.f32.mrb[0].mxu0
        %v1090 = vpop.f32.mrb[0].mxu0
        %v1091 = vadd.f32 %v987, %v1090
        %v1092 = vpop.f32.mrb[0].mxu0
        %1093 = vmatprep.mubr.bf16.mxu0 0
        %1094 = vmatmul.mubr.bf16.gmra.mrb[0].mxu0 %v959
        %v1095 = vpop.f32.mrb[0].mxu0
        %v1096 = vadd.f32 %v987, %v1095
        %v1097 = vpop.f32.mrb[0].mxu0
        %v1098 = vpop.f32.mrb[0].mxu0
        %v1099 = vadd.f32 %v987, %v1098
        %v1100 = vpop.f32.mrb[0].mxu0
        %1101 = vmatprep.mubr.bf16.mxu0 0
        %1102 = vmatmul.mubr.bf16.gmra.mrb[0].mxu0 %v960
        %v1103 = vpop.f32.mrb[0].mxu0
        %v1104 = vadd.f32 %v987, %v1103
        %v1105 = vpop.f32.mrb[0].mxu0
        %v1106 = vpop.f32.mrb[0].mxu0
        %v1107 = vadd.f32 %v987, %v1106
        %v1108 = vpop.f32.mrb[0].mxu0
        %1109 = vmatprep.mubr.bf16.mxu0 0
        %1110 = vmatmul.mubr.bf16.gmra.mrb[0].mxu0 %v961
        %v1111 = vpop.f32.mrb[0].mxu0
        %v1112 = vadd.f32 %v987, %v1111
        %v1113 = vpop.f32.mrb[0].mxu0
        %v1114 = vpop.f32.mrb[0].mxu0
        %v1115 = vadd.f32 %v987, %v1114
        %v1116 = vpop.f32.mrb[0].mxu0
        %1117 = vmatprep.mubr.bf16.mxu0 0
        %1118 = vmatmul.mubr.bf16.gmra.mrb[0].mxu0 %v962
        %v1119 = vpop.f32.mrb[0].mxu0
        %v1120 = vadd.f32 %v987, %v1119
        %v1121 = vpop.f32.mrb[0].mxu0
        %v1122 = vpop.f32.mrb[0].mxu0
        %v1123 = vadd.f32 %v987, %v1122
        %v1124 = vpop.f32.mrb[0].mxu0
        %1125 = vmatprep.mubr.bf16.mxu0 0
        %1126 = vmatmul.mubr.bf16.gmra.mrb[0].mxu0 %v963
        %v1127 = vpop.f32.mrb[0].mxu0
        %v1128 = vadd.f32 %v987, %v1127
        %v1129 = vpop.f32.mrb[0].mxu0
        %v1130 = vpop.f32.mrb[0].mxu0
        %v1131 = vadd.f32 %v987, %v1130
        %v1132 = vpop.f32.mrb[0].mxu0
        %1133 = vmatprep.mubr.bf16.mxu0 0
        %1134 = vmatmul.mubr.bf16.gmra.mrb[0].mxu0 %v964
        %v1135 = vpop.f32.mrb[0].mxu0
        %v1136 = vadd.f32 %v987, %v1135
        %v1137 = vpop.f32.mrb[0].mxu0
        %v1138 = vpop.f32.mrb[0].mxu0
        %v1139 = vadd.f32 %v987, %v1138
        %v1140 = vpop.f32.mrb[0].mxu0
        %1141 = vmatprep.mubr.bf16.mxu0 0
        %1142 = vmatmul.mubr.bf16.gmra.mrb[0].mxu0 %v965
        %v1143 = vpop.f32.mrb[0].mxu0
        %v1144 = vadd.f32 %v987, %v1143
        %v1145 = vpop.f32.mrb[0].mxu0
        %v1146 = vpop.f32.mrb[0].mxu0
        %v1147 = vadd.f32 %v987, %v1146
        %v1148 = vpop.f32.mrb[0].mxu0
        %1149 = vdwg.mxu0
        %v1150 = vsub.f32 0.0, %v1072
        %v1151 = vsub.f32 0.0, %v1075
        %v1152 = vsub.f32 0.0, %v1080
        %v1153 = vsub.f32 0.0, %v1083
        %v1154 = vsub.f32 0.0, %v1088
        %v1155 = vsub.f32 0.0, %v1091
        %v1156 = vsub.f32 0.0, %v1096
        %v1157 = vsub.f32 0.0, %v1099
        %v1158 = vsub.f32 0.0, %v1104
        %v1159 = vsub.f32 0.0, %v1107
        %v1160 = vsub.f32 0.0, %v1112
        %v1161 = vsub.f32 0.0, %v1115
        %v1162 = vsub.f32 0.0, %v1120
        %v1163 = vsub.f32 0.0, %v1123
        %v1164 = vsub.f32 0.0, %v1128
        %v1165 = vsub.f32 0.0, %v1131
        %v1166 = vsub.f32 0.0, %v1136
        %v1167 = vsub.f32 0.0, %v1139
        %v1168 = vsub.f32 0.0, %v1144
        %v1169 = vsub.f32 0.0, %v1147
        %v1170 = vmul.f32 %v1150, 1.442695
        %v1171 = vpow.pop %v1170
        %v1172 = vmul.f32 %v1151, 1.442695
        %v1173 = vpow.pop %v1172
        %v1174 = vmul.f32 %v1152, 1.442695
        %v1175 = vpow.pop %v1174
        %v1176 = vmul.f32 %v1153, 1.442695
        %v1177 = vpow.pop %v1176
        %v1178 = vmul.f32 %v1154, 1.442695
        %v1179 = vpow.pop %v1178
        %v1180 = vmul.f32 %v1155, 1.442695
        %v1181 = vpow.pop %v1180
        %v1182 = vmul.f32 %v1156, 1.442695
        %v1183 = vpow.pop %v1182
        %v1184 = vmul.f32 %v1157, 1.442695
        %v1185 = vpow.pop %v1184
        %v1186 = vmul.f32 %v1158, 1.442695
        %v1187 = vpow.pop %v1186
        %v1188 = vmul.f32 %v1159, 1.442695
        %v1189 = vpow.pop %v1188
        %v1190 = vmul.f32 %v1160, 1.442695
        %v1191 = vpow.pop %v1190
        %v1192 = vmul.f32 %v1161, 1.442695
        %v1193 = vpow.pop %v1192
        %v1194 = vmul.f32 %v1162, 1.442695
        %v1195 = vpow.pop %v1194
        %v1196 = vmul.f32 %v1163, 1.442695
        %v1197 = vpow.pop %v1196
        %v1198 = vmul.f32 %v1164, 1.442695
        %v1199 = vpow.pop %v1198
        %v1200 = vmul.f32 %v1165, 1.442695
        %v1201 = vpow.pop %v1200
        %v1202 = vmul.f32 %v1166, 1.442695
        %v1203 = vpow.pop %v1202
        %v1204 = vmul.f32 %v1167, 1.442695
        %v1205 = vpow.pop %v1204
        %v1206 = vmul.f32 %v1168, 1.442695
        %v1207 = vpow.pop %v1206
        %v1208 = vmul.f32 %v1169, 1.442695
        %v1209 = vpow.pop %v1208
        %v1210 = vadd.f32 %v1171, 1.0
        %v1211 = vadd.f32 %v1173, 1.0
        %v1212 = vadd.f32 %v1175, 1.0
        %v1213 = vadd.f32 %v1177, 1.0
        %v1214 = vadd.f32 %v1179, 1.0
        %v1215 = vadd.f32 %v1181, 1.0
        %v1216 = vadd.f32 %v1183, 1.0
        %v1217 = vadd.f32 %v1185, 1.0
        %v1218 = vadd.f32 %v1187, 1.0
        %v1219 = vadd.f32 %v1189, 1.0
        %v1220 = vadd.f32 %v1191, 1.0
        %v1221 = vadd.f32 %v1193, 1.0
        %v1222 = vadd.f32 %v1195, 1.0
        %v1223 = vadd.f32 %v1197, 1.0
        %v1224 = vadd.f32 %v1199, 1.0
        %v1225 = vadd.f32 %v1201, 1.0
        %v1226 = vadd.f32 %v1203, 1.0
        %v1227 = vadd.f32 %v1205, 1.0
        %v1228 = vadd.f32 %v1207, 1.0
        %v1229 = vadd.f32 %v1209, 1.0
        %v1230 = vrcp.pop %v1210
        %v1231 = vrcp.pop %v1211
        %v1232 = vrcp.pop %v1212
        %v1233 = vrcp.pop %v1213
        %v1234 = vrcp.pop %v1214
        %v1235 = vrcp.pop %v1215
        %v1236 = vrcp.pop %v1216
        %v1237 = vrcp.pop %v1217
        %v1238 = vrcp.pop %v1218
        %v1239 = vrcp.pop %v1219
        %v1240 = vrcp.pop %v1220
        %v1241 = vrcp.pop %v1221
        %v1242 = vrcp.pop %v1222
        %v1243 = vrcp.pop %v1223
        %v1244 = vrcp.pop %v1224
        %v1245 = vrcp.pop %v1225
        %v1246 = vrcp.pop %v1226
        %v1247 = vrcp.pop %v1227
        %v1248 = vrcp.pop %v1228
        %v1249 = vrcp.pop %v1229
        %v1250 = vmul.f32 %v1072, %v1230
        %v1251 = vmul.f32 %v1075, %v1231
        %v1252 = vmul.f32 %v1080, %v1232
        %v1253 = vmul.f32 %v1083, %v1233
        %v1254 = vmul.f32 %v1088, %v1234
        %v1255 = vmul.f32 %v1091, %v1235
        %v1256 = vmul.f32 %v1096, %v1236
        %v1257 = vmul.f32 %v1099, %v1237
        %v1258 = vmul.f32 %v1104, %v1238
        %v1259 = vmul.f32 %v1107, %v1239
        %v1260 = vmul.f32 %v1112, %v1240
        %v1261 = vmul.f32 %v1115, %v1241
        %v1262 = vmul.f32 %v1120, %v1242
        %v1263 = vmul.f32 %v1123, %v1243
        %v1264 = vmul.f32 %v1128, %v1244
        %v1265 = vmul.f32 %v1131, %v1245
        %v1266 = vmul.f32 %v1136, %v1246
        %v1267 = vmul.f32 %v1139, %v1247
        %v1268 = vmul.f32 %v1144, %v1248
        %v1269 = vmul.f32 %v1147, %v1249
        %v1270 = vlaneseq
        %v1271 = vshrl.u32 %v1270, 7
        %v1272 = vadd.s32 %v1271, 8
        %v1273 = vadd.s32 %v1271, 16
        %v1274 = vadd.s32 %v1271, 24
        %v1275 = vadd.s32 %v1271, 32
        %v1276 = vadd.s32 %v1271, 40
        %v1277 = vadd.s32 %v1271, 48
        %v1278 = vadd.s32 %v1271, 56
        %v1279 = vadd.s32 %v1271, 64
        %v1280 = vadd.s32 %v1271, 72
        %v1281 = vadd.s32 %v1271, 80
        %v1282 = vadd.s32 %v1271, 88
        %v1283 = vadd.s32 %v1271, 96
        %v1284 = vadd.s32 %v1271, 104
        %v1285 = vadd.s32 %v1271, 112
        %v1286 = vadd.s32 %v1271, 120
        %v1287 = vadd.s32 %v1271, 128
        %v1288 = vadd.s32 %v1271, 136
        %v1289 = vadd.s32 %v1271, 144
        %v1290 = vadd.s32 %v1271, 152
        %s1291 = smul.u32 %s37, 128
        %s1292 = ssub.s32 %s1291, 16
        %v1293 = vstv %s1292
        %v1294 = vadd.s32 %v1293, %v1273
        %v1295 = vadd.s32 %v1293, %v1274
        %v1296 = vadd.s32 %v1293, %v1275
        %v1297 = vadd.s32 %v1293, %v1276
        %v1298 = vadd.s32 %v1293, %v1277
        %v1299 = vadd.s32 %v1293, %v1278
        %v1300 = vadd.s32 %v1293, %v1279
        %v1301 = vadd.s32 %v1293, %v1280
        %v1302 = vadd.s32 %v1293, %v1281
        %v1303 = vadd.s32 %v1293, %v1282
        %v1304 = vadd.s32 %v1293, %v1283
        %v1305 = vadd.s32 %v1293, %v1284
        %v1306 = vadd.s32 %v1293, %v1285
        %v1307 = vadd.s32 %v1293, %v1286
        %v1308 = vadd.s32 %v1293, %v1287
        %v1309 = vadd.s32 %v1293, %v1288
        %vm1310 = vcmp.lt.s32.totalorder %v1271, 0
        %v1311 = vsub.s32 0, %v1271
        %v1312 = vsel %vm1310, %v1311, %v1271
        %v1313 = vshrl.u32 %v1312, 4
        %v1314 = vand.u32 %v1312, 15
        %v1315 = vsub.s32 0, %v1314
        %v1316 = vsel %vm1310, %v1315, %v1314
        %vm1317 = vcmp.lt.s32.totalorder %v1272, 0
        %v1318 = vsub.s32 0, %v1272
        %v1319 = vsel %vm1317, %v1318, %v1272
        %v1320 = vshrl.u32 %v1319, 4
        %v1321 = vand.u32 %v1319, 15
        %v1322 = vsub.s32 0, %v1321
        %v1323 = vsel %vm1317, %v1322, %v1321
        %vm1324 = vcmp.lt.s32.totalorder %v1273, 0
        %v1325 = vsub.s32 0, %v1273
        %v1326 = vsel %vm1324, %v1325, %v1273
        %v1327 = vshrl.u32 %v1326, 4
        %v1328 = vand.u32 %v1326, 15
        %v1329 = vsub.s32 0, %v1328
        %v1330 = vsel %vm1324, %v1329, %v1328
        %vm1331 = vcmp.lt.s32.totalorder %v1274, 0
        %v1332 = vsub.s32 0, %v1274
        %v1333 = vsel %vm1331, %v1332, %v1274
        %v1334 = vshrl.u32 %v1333, 4
        %v1335 = vand.u32 %v1333, 15
        %v1336 = vsub.s32 0, %v1335
        %v1337 = vsel %vm1331, %v1336, %v1335
        %vm1338 = vcmp.lt.s32.totalorder %v1275, 0
        %v1339 = vsub.s32 0, %v1275
        %v1340 = vsel %vm1338, %v1339, %v1275
        %v1341 = vshrl.u32 %v1340, 4
        %v1342 = vand.u32 %v1340, 15
        %v1343 = vsub.s32 0, %v1342
        %v1344 = vsel %vm1338, %v1343, %v1342
        %vm1345 = vcmp.lt.s32.totalorder %v1276, 0
        %v1346 = vsub.s32 0, %v1276
        %v1347 = vsel %vm1345, %v1346, %v1276
        %v1348 = vshrl.u32 %v1347, 4
        %v1349 = vand.u32 %v1347, 15
        %v1350 = vsub.s32 0, %v1349
        %v1351 = vsel %vm1345, %v1350, %v1349
        %vm1352 = vcmp.lt.s32.totalorder %v1277, 0
        %v1353 = vsub.s32 0, %v1277
        %v1354 = vsel %vm1352, %v1353, %v1277
        %v1355 = vshrl.u32 %v1354, 4
        %v1356 = vand.u32 %v1354, 15
        %v1357 = vsub.s32 0, %v1356
        %v1358 = vsel %vm1352, %v1357, %v1356
        %vm1359 = vcmp.lt.s32.totalorder %v1278, 0
        %v1360 = vsub.s32 0, %v1278
        %v1361 = vsel %vm1359, %v1360, %v1278
        %v1362 = vshrl.u32 %v1361, 4
        %v1363 = vand.u32 %v1361, 15
        %v1364 = vsub.s32 0, %v1363
        %v1365 = vsel %vm1359, %v1364, %v1363
        %vm1366 = vcmp.lt.s32.totalorder %v1279, 0
        %v1367 = vsub.s32 0, %v1279
        %v1368 = vsel %vm1366, %v1367, %v1279
        %v1369 = vshrl.u32 %v1368, 4
        %v1370 = vand.u32 %v1368, 15
        %v1371 = vsub.s32 0, %v1370
        %v1372 = vsel %vm1366, %v1371, %v1370
        %vm1373 = vcmp.lt.s32.totalorder %v1280, 0
        %v1374 = vsub.s32 0, %v1280
        %v1375 = vsel %vm1373, %v1374, %v1280
        %v1376 = vshrl.u32 %v1375, 4
        %v1377 = vand.u32 %v1375, 15
        %v1378 = vsub.s32 0, %v1377
        %v1379 = vsel %vm1373, %v1378, %v1377
        %vm1380 = vcmp.lt.s32.totalorder %v1281, 0
        %v1381 = vsub.s32 0, %v1281
        %v1382 = vsel %vm1380, %v1381, %v1281
        %v1383 = vshrl.u32 %v1382, 4
        %v1384 = vand.u32 %v1382, 15
        %v1385 = vsub.s32 0, %v1384
        %v1386 = vsel %vm1380, %v1385, %v1384
        %vm1387 = vcmp.lt.s32.totalorder %v1282, 0
        %v1388 = vsub.s32 0, %v1282
        %v1389 = vsel %vm1387, %v1388, %v1282
        %v1390 = vshrl.u32 %v1389, 4
        %v1391 = vand.u32 %v1389, 15
        %v1392 = vsub.s32 0, %v1391
        %v1393 = vsel %vm1387, %v1392, %v1391
        %vm1394 = vcmp.lt.s32.totalorder %v1283, 0
        %v1395 = vsub.s32 0, %v1283
        %v1396 = vsel %vm1394, %v1395, %v1283
        %v1397 = vshrl.u32 %v1396, 4
        %v1398 = vand.u32 %v1396, 15
        %v1399 = vsub.s32 0, %v1398
        %v1400 = vsel %vm1394, %v1399, %v1398
        %vm1401 = vcmp.lt.s32.totalorder %v1284, 0
        %v1402 = vsub.s32 0, %v1284
        %v1403 = vsel %vm1401, %v1402, %v1284
        %v1404 = vshrl.u32 %v1403, 4
        %v1405 = vand.u32 %v1403, 15
        %v1406 = vsub.s32 0, %v1405
        %v1407 = vsel %vm1401, %v1406, %v1405
        %vm1408 = vcmp.lt.s32.totalorder %v1285, 0
        %v1409 = vsub.s32 0, %v1285
        %v1410 = vsel %vm1408, %v1409, %v1285
        %v1411 = vshrl.u32 %v1410, 4
        %v1412 = vand.u32 %v1410, 15
        %v1413 = vsub.s32 0, %v1412
        %v1414 = vsel %vm1408, %v1413, %v1412
        %vm1415 = vcmp.lt.s32.totalorder %v1286, 0
        %v1416 = vsub.s32 0, %v1286
        %v1417 = vsel %vm1415, %v1416, %v1286
        %v1418 = vshrl.u32 %v1417, 4
        %v1419 = vand.u32 %v1417, 15
        %v1420 = vsub.s32 0, %v1419
        %v1421 = vsel %vm1415, %v1420, %v1419
        %vm1422 = vcmp.lt.s32.totalorder %v1287, 0
        %v1423 = vsub.s32 0, %v1287
        %v1424 = vsel %vm1422, %v1423, %v1287
        %v1425 = vshrl.u32 %v1424, 4
        %v1426 = vand.u32 %v1424, 15
        %v1427 = vsub.s32 0, %v1426
        %v1428 = vsel %vm1422, %v1427, %v1426
        %vm1429 = vcmp.lt.s32.totalorder %v1288, 0
        %v1430 = vsub.s32 0, %v1288
        %v1431 = vsel %vm1429, %v1430, %v1288
        %v1432 = vshrl.u32 %v1431, 4
        %v1433 = vand.u32 %v1431, 15
        %v1434 = vsub.s32 0, %v1433
        %v1435 = vsel %vm1429, %v1434, %v1433
        %vm1436 = vcmp.lt.s32.totalorder %v1289, 0
        %v1437 = vsub.s32 0, %v1289
        %v1438 = vsel %vm1436, %v1437, %v1289
        %v1439 = vshrl.u32 %v1438, 4
        %v1440 = vand.u32 %v1438, 15
        %v1441 = vsub.s32 0, %v1440
        %v1442 = vsel %vm1436, %v1441, %v1440
        %vm1443 = vcmp.lt.s32.totalorder %v1290, 0
        %v1444 = vsub.s32 0, %v1290
        %v1445 = vsel %vm1443, %v1444, %v1290
        %v1446 = vshrl.u32 %v1445, 4
        %v1447 = vand.u32 %v1445, 15
        %v1448 = vsub.s32 0, %v1447
        %v1449 = vsel %vm1443, %v1448, %v1447
        %vm1450 = vcmp.ne.s32.totalorder %v1316, 0
        %vm1451 = vcmp.ne.s32.totalorder %v1323, 0
        %vm1452 = vcmp.ne.s32.totalorder %v1330, 0
        %vm1453 = vcmp.ne.s32.totalorder %v1337, 0
        %vm1454 = vcmp.ne.s32.totalorder %v1344, 0
        %vm1455 = vcmp.ne.s32.totalorder %v1351, 0
        %vm1456 = vcmp.ne.s32.totalorder %v1358, 0
        %vm1457 = vcmp.ne.s32.totalorder %v1365, 0
        %vm1458 = vcmp.ne.s32.totalorder %v1372, 0
        %vm1459 = vcmp.ne.s32.totalorder %v1379, 0
        %vm1460 = vcmp.ne.s32.totalorder %v1386, 0
        %vm1461 = vcmp.ne.s32.totalorder %v1393, 0
        %vm1462 = vcmp.ne.s32.totalorder %v1400, 0
        %vm1463 = vcmp.ne.s32.totalorder %v1407, 0
        %vm1464 = vcmp.ne.s32.totalorder %v1414, 0
        %vm1465 = vcmp.ne.s32.totalorder %v1421, 0
        %vm1466 = vcmp.ne.s32.totalorder %v1428, 0
        %vm1467 = vcmp.ne.s32.totalorder %v1435, 0
        %vm1468 = vcmp.ne.s32.totalorder %v1442, 0
        %vm1469 = vcmp.ne.s32.totalorder %v1449, 0
        %vm1470 = vcmp.lt.s32.totalorder %v1316, 0
        %vm1471 = vcmp.lt.s32.totalorder %v1323, 0
        %vm1472 = vcmp.lt.s32.totalorder %v1330, 0
        %vm1473 = vcmp.lt.s32.totalorder %v1337, 0
        %vm1474 = vcmp.lt.s32.totalorder %v1344, 0
        %vm1475 = vcmp.lt.s32.totalorder %v1351, 0
        %vm1476 = vcmp.lt.s32.totalorder %v1358, 0
        %vm1477 = vcmp.lt.s32.totalorder %v1365, 0
        %vm1478 = vcmp.lt.s32.totalorder %v1372, 0
        %vm1479 = vcmp.lt.s32.totalorder %v1379, 0
        %vm1480 = vcmp.lt.s32.totalorder %v1386, 0
        %vm1481 = vcmp.lt.s32.totalorder %v1393, 0
        %vm1482 = vcmp.lt.s32.totalorder %v1400, 0
        %vm1483 = vcmp.lt.s32.totalorder %v1407, 0
        %vm1484 = vcmp.lt.s32.totalorder %v1414, 0
        %vm1485 = vcmp.lt.s32.totalorder %v1421, 0
        %vm1486 = vcmp.lt.s32.totalorder %v1428, 0
        %vm1487 = vcmp.lt.s32.totalorder %v1435, 0
        %vm1488 = vcmp.lt.s32.totalorder %v1442, 0
        %vm1489 = vcmp.lt.s32.totalorder %v1449, 0
        %vm1490 = vmand %vm1470, %vm1450
        %vm1491 = vmand %vm1471, %vm1451
        %vm1492 = vmand %vm1472, %vm1452
        %vm1493 = vmand %vm1473, %vm1453
        %vm1494 = vmand %vm1474, %vm1454
        %vm1495 = vmand %vm1475, %vm1455
        %vm1496 = vmand %vm1476, %vm1456
        %vm1497 = vmand %vm1477, %vm1457
        %vm1498 = vmand %vm1478, %vm1458
        %vm1499 = vmand %vm1479, %vm1459
        %vm1500 = vmand %vm1480, %vm1460
        %vm1501 = vmand %vm1481, %vm1461
        %vm1502 = vmand %vm1482, %vm1462
        %vm1503 = vmand %vm1483, %vm1463
        %vm1504 = vmand %vm1484, %vm1464
        %vm1505 = vmand %vm1485, %vm1465
        %vm1506 = vmand %vm1486, %vm1466
        %vm1507 = vmand %vm1487, %vm1467
        %vm1508 = vmand %vm1488, %vm1468
        %vm1509 = vmand %vm1489, %vm1469
        %v1510 = vadd.s32 %v1316, 16
        %v1511 = vadd.s32 %v1323, 16
        %v1512 = vadd.s32 %v1330, 16
        %v1513 = vadd.s32 %v1337, 16
        %v1514 = vadd.s32 %v1344, 16
        %v1515 = vadd.s32 %v1351, 16
        %v1516 = vadd.s32 %v1358, 16
        %v1517 = vadd.s32 %v1365, 16
        %v1518 = vadd.s32 %v1372, 16
        %v1519 = vadd.s32 %v1379, 16
        %v1520 = vadd.s32 %v1386, 16
        %v1521 = vadd.s32 %v1393, 16
        %v1522 = vadd.s32 %v1400, 16
        %v1523 = vadd.s32 %v1407, 16
        %v1524 = vadd.s32 %v1414, 16
        %v1525 = vadd.s32 %v1421, 16
        %v1526 = vadd.s32 %v1428, 16
        %v1527 = vadd.s32 %v1435, 16
        %v1528 = vadd.s32 %v1442, 16
        %v1529 = vadd.s32 %v1449, 16
        %v1530 = vsel %vm1490, %v1510, %v1316
        %v1531 = vsel %vm1491, %v1511, %v1323
        %v1532 = vsel %vm1492, %v1512, %v1330
        %v1533 = vsel %vm1493, %v1513, %v1337
        %v1534 = vsel %vm1494, %v1514, %v1344
        %v1535 = vsel %vm1495, %v1515, %v1351
        %v1536 = vsel %vm1496, %v1516, %v1358
        %v1537 = vsel %vm1497, %v1517, %v1365
        %v1538 = vsel %vm1498, %v1518, %v1372
        %v1539 = vsel %vm1499, %v1519, %v1379
        %v1540 = vsel %vm1500, %v1520, %v1386
        %v1541 = vsel %vm1501, %v1521, %v1393
        %v1542 = vsel %vm1502, %v1522, %v1400
        %v1543 = vsel %vm1503, %v1523, %v1407
        %v1544 = vsel %vm1504, %v1524, %v1414
        %v1545 = vsel %vm1505, %v1525, %v1421
        %v1546 = vsel %vm1506, %v1526, %v1428
        %v1547 = vsel %vm1507, %v1527, %v1435
        %v1548 = vsel %vm1508, %v1528, %v1442
        %v1549 = vsel %vm1509, %v1529, %v1449
        %vm1550 = vcmp.ge.s32.totalorder %v1530, 1
        %vm1551 = vcmp.ge.s32.totalorder %v1531, 1
        %vm1552 = vcmp.ge.s32.totalorder %v1532, 1
        %vm1553 = vcmp.ge.s32.totalorder %v1533, 1
        %vm1554 = vcmp.ge.s32.totalorder %v1534, 1
        %vm1555 = vcmp.ge.s32.totalorder %v1535, 1
        %vm1556 = vcmp.ge.s32.totalorder %v1536, 1
        %vm1557 = vcmp.ge.s32.totalorder %v1537, 1
        %vm1558 = vcmp.ge.s32.totalorder %v1538, 1
        %vm1559 = vcmp.ge.s32.totalorder %v1539, 1
        %vm1560 = vcmp.ge.s32.totalorder %v1540, 1
        %vm1561 = vcmp.ge.s32.totalorder %v1541, 1
        %vm1562 = vcmp.ge.s32.totalorder %v1542, 1
        %vm1563 = vcmp.ge.s32.totalorder %v1543, 1
        %vm1564 = vcmp.ge.s32.totalorder %v1544, 1
        %vm1565 = vcmp.ge.s32.totalorder %v1545, 1
        %vm1566 = vcmp.ge.s32.totalorder %v1546, 1
        %vm1567 = vcmp.ge.s32.totalorder %v1547, 1
        %vm1568 = vcmp.ge.s32.totalorder %v1548, 1
        %vm1569 = vcmp.ge.s32.totalorder %v1549, 1
        %v1570 = vrot.slane %v1250, 7
        %v1571 = vrot.slane %v1251, 7
        %v1572 = vrot.slane %v1252, 7
        %v1573 = vrot.slane %v1253, 7
        %v1574 = vrot.slane %v1254, 7
        %v1575 = vrot.slane %v1255, 7
        %v1576 = vrot.slane %v1256, 7
        %v1577 = vrot.slane %v1257, 7
        %v1578 = vrot.slane %v1258, 7
        %v1579 = vrot.slane %v1259, 7
        %v1580 = vrot.slane %v1260, 7
        %v1581 = vrot.slane %v1261, 7
        %v1582 = vrot.slane %v1262, 7
        %v1583 = vrot.slane %v1263, 7
        %v1584 = vrot.slane %v1264, 7
        %v1585 = vrot.slane %v1265, 7
        %v1586 = vrot.slane %v1266, 7
        %v1587 = vrot.slane %v1267, 7
        %v1588 = vrot.slane %v1268, 7
        %v1589 = vrot.slane %v1269, 7
        %vm1590 = vcmp.lt.s32.totalorder %v1271, 1
        %v1591 = vsel %vm1590, %v1588, %v1589
        %v1592 = vsel %vm1590, %v1587, %v1588
        %v1593 = vsel %vm1590, %v1586, %v1587
        %v1594 = vsel %vm1590, %v1585, %v1586
        %v1595 = vsel %vm1590, %v1584, %v1585
        %v1596 = vsel %vm1590, %v1583, %v1584
        %v1597 = vsel %vm1590, %v1582, %v1583
        %v1598 = vsel %vm1590, %v1581, %v1582
        %v1599 = vsel %vm1590, %v1580, %v1581
        %v1600 = vsel %vm1590, %v1579, %v1580
        %v1601 = vsel %vm1590, %v1578, %v1579
        %v1602 = vsel %vm1590, %v1577, %v1578
        %v1603 = vsel %vm1590, %v1576, %v1577
        %v1604 = vsel %vm1590, %v1575, %v1576
        %v1605 = vsel %vm1590, %v1574, %v1575
        %v1606 = vsel %vm1590, %v1573, %v1574
        %v1607 = vsel %vm1590, %v1572, %v1573
        %v1608 = vsel %vm1590, %v1571, %v1572
        %v1609 = vsel %vm1590, %v1570, %v1571
        %v1610 = vsel %vm1590, %v1589, %v1570
        %v1611 = vsel %vm1550, 1, 0
        %v1612 = vsel %vm1551, 1, 0
        %v1613 = vsel %vm1552, 1, 0
        %v1614 = vsel %vm1553, 1, 0
        %v1615 = vsel %vm1554, 1, 0
        %v1616 = vsel %vm1555, 1, 0
        %v1617 = vsel %vm1556, 1, 0
        %v1618 = vsel %vm1557, 1, 0
        %v1619 = vsel %vm1558, 1, 0
        %v1620 = vsel %vm1559, 1, 0
        %v1621 = vsel %vm1560, 1, 0
        %v1622 = vsel %vm1561, 1, 0
        %v1623 = vsel %vm1562, 1, 0
        %v1624 = vsel %vm1563, 1, 0
        %v1625 = vsel %vm1564, 1, 0
        %v1626 = vsel %vm1565, 1, 0
        %v1627 = vsel %vm1566, 1, 0
        %v1628 = vsel %vm1567, 1, 0
        %v1629 = vsel %vm1568, 1, 0
        %v1630 = vsel %vm1569, 1, 0
        %vm1631 = vcmp.eq.s32.totalorder %v1611, 1
        %vm1632 = vcmp.eq.s32.totalorder %v1612, 1
        %vm1633 = vcmp.eq.s32.totalorder %v1613, 1
        %vm1634 = vcmp.eq.s32.totalorder %v1614, 1
        %vm1635 = vcmp.eq.s32.totalorder %v1615, 1
        %vm1636 = vcmp.eq.s32.totalorder %v1616, 1
        %vm1637 = vcmp.eq.s32.totalorder %v1617, 1
        %vm1638 = vcmp.eq.s32.totalorder %v1618, 1
        %vm1639 = vcmp.eq.s32.totalorder %v1619, 1
        %vm1640 = vcmp.eq.s32.totalorder %v1620, 1
        %vm1641 = vcmp.eq.s32.totalorder %v1621, 1
        %vm1642 = vcmp.eq.s32.totalorder %v1622, 1
        %vm1643 = vcmp.eq.s32.totalorder %v1623, 1
        %vm1644 = vcmp.eq.s32.totalorder %v1624, 1
        %vm1645 = vcmp.eq.s32.totalorder %v1625, 1
        %vm1646 = vcmp.eq.s32.totalorder %v1626, 1
        %vm1647 = vcmp.eq.s32.totalorder %v1627, 1
        %vm1648 = vcmp.eq.s32.totalorder %v1628, 1
        %vm1649 = vcmp.eq.s32.totalorder %v1629, 1
        %vm1650 = vcmp.eq.s32.totalorder %v1630, 1
        %v1651 = vsel %vm1631, %v1610, 0.0
        %v1652 = vsel %vm1632, %v1609, 0.0
        %v1653 = vsel %vm1633, %v1608, 0.0
        %v1654 = vsel %vm1634, %v1607, 0.0
        %v1655 = vsel %vm1635, %v1606, 0.0
        %v1656 = vsel %vm1636, %v1605, 0.0
        %v1657 = vsel %vm1637, %v1604, 0.0
        %v1658 = vsel %vm1638, %v1603, 0.0
        %v1659 = vsel %vm1639, %v1602, 0.0
        %v1660 = vsel %vm1640, %v1601, 0.0
        %v1661 = vsel %vm1641, %v1600, 0.0
        %v1662 = vsel %vm1642, %v1599, 0.0
        %v1663 = vsel %vm1643, %v1598, 0.0
        %v1664 = vsel %vm1644, %v1597, 0.0
        %v1665 = vsel %vm1645, %v1596, 0.0
        %v1666 = vsel %vm1646, %v1595, 0.0
        %v1667 = vsel %vm1647, %v1594, 0.0
        %v1668 = vsel %vm1648, %v1593, 0.0
        %v1669 = vsel %vm1649, %v1592, 0.0
        %v1670 = vsel %vm1650, %v1591, 0.0
        %v1671 = vpack.c.bf16 %v1652, %v1651
        %v1672 = vpack.c.bf16 %v1654, %v1653
        %v1673 = vpack.c.bf16 %v1656, %v1655
        %v1674 = vpack.c.bf16 %v1658, %v1657
        %v1675 = vpack.c.bf16 %v1660, %v1659
        %v1676 = vpack.c.bf16 %v1662, %v1661
        %v1677 = vpack.c.bf16 %v1664, %v1663
        %v1678 = vpack.c.bf16 %v1666, %v1665
        %v1679 = vpack.c.bf16 %v1668, %v1667
        %v1680 = vpack.c.bf16 %v1670, %v1669
        %vm1681 = vcmp.le.s32.totalorder %v1530, 14
        %vm1682 = vcmp.le.s32.totalorder %v1531, 14
        %vm1683 = vcmp.le.s32.totalorder %v1532, 14
        %vm1684 = vcmp.le.s32.totalorder %v1533, 14
        %vm1685 = vcmp.le.s32.totalorder %v1534, 14
        %vm1686 = vcmp.le.s32.totalorder %v1535, 14
        %vm1687 = vcmp.le.s32.totalorder %v1536, 14
        %vm1688 = vcmp.le.s32.totalorder %v1537, 14
        %vm1689 = vcmp.le.s32.totalorder %v1538, 14
        %vm1690 = vcmp.le.s32.totalorder %v1539, 14
        %vm1691 = vcmp.le.s32.totalorder %v1540, 14
        %vm1692 = vcmp.le.s32.totalorder %v1541, 14
        %vm1693 = vcmp.le.s32.totalorder %v1542, 14
        %vm1694 = vcmp.le.s32.totalorder %v1543, 14
        %vm1695 = vcmp.le.s32.totalorder %v1544, 14
        %vm1696 = vcmp.le.s32.totalorder %v1545, 14
        %vm1697 = vcmp.le.s32.totalorder %v1546, 14
        %vm1698 = vcmp.le.s32.totalorder %v1547, 14
        %vm1699 = vcmp.le.s32.totalorder %v1548, 14
        %vm1700 = vcmp.le.s32.totalorder %v1549, 14
        %v1701 = vrot.slane %v1250, 1
        %v1702 = vrot.slane %v1251, 1
        %v1703 = vrot.slane %v1252, 1
        %v1704 = vrot.slane %v1253, 1
        %v1705 = vrot.slane %v1254, 1
        %v1706 = vrot.slane %v1255, 1
        %v1707 = vrot.slane %v1256, 1
        %v1708 = vrot.slane %v1257, 1
        %v1709 = vrot.slane %v1258, 1
        %v1710 = vrot.slane %v1259, 1
        %v1711 = vrot.slane %v1260, 1
        %v1712 = vrot.slane %v1261, 1
        %v1713 = vrot.slane %v1262, 1
        %v1714 = vrot.slane %v1263, 1
        %v1715 = vrot.slane %v1264, 1
        %v1716 = vrot.slane %v1265, 1
        %v1717 = vrot.slane %v1266, 1
        %v1718 = vrot.slane %v1267, 1
        %v1719 = vrot.slane %v1268, 1
        %v1720 = vrot.slane %v1269, 1
        %vm1721 = vcmp.lt.s32.totalorder %v1271, 7
        %v1722 = vsel %vm1721, %v1719, %v1720
        %v1723 = vsel %vm1721, %v1718, %v1719
        %v1724 = vsel %vm1721, %v1717, %v1718
        %v1725 = vsel %vm1721, %v1716, %v1717
        %v1726 = vsel %vm1721, %v1715, %v1716
        %v1727 = vsel %vm1721, %v1714, %v1715
        %v1728 = vsel %vm1721, %v1713, %v1714
        %v1729 = vsel %vm1721, %v1712, %v1713
        %v1730 = vsel %vm1721, %v1711, %v1712
        %v1731 = vsel %vm1721, %v1710, %v1711
        %v1732 = vsel %vm1721, %v1709, %v1710
        %v1733 = vsel %vm1721, %v1708, %v1709
        %v1734 = vsel %vm1721, %v1707, %v1708
        %v1735 = vsel %vm1721, %v1706, %v1707
        %v1736 = vsel %vm1721, %v1705, %v1706
        %v1737 = vsel %vm1721, %v1704, %v1705
        %v1738 = vsel %vm1721, %v1703, %v1704
        %v1739 = vsel %vm1721, %v1702, %v1703
        %v1740 = vsel %vm1721, %v1701, %v1702
        %v1741 = vsel %vm1721, %v1720, %v1701
        %v1742 = vsel %vm1681, 1, 0
        %v1743 = vsel %vm1682, 1, 0
        %v1744 = vsel %vm1683, 1, 0
        %v1745 = vsel %vm1684, 1, 0
        %v1746 = vsel %vm1685, 1, 0
        %v1747 = vsel %vm1686, 1, 0
        %v1748 = vsel %vm1687, 1, 0
        %v1749 = vsel %vm1688, 1, 0
        %v1750 = vsel %vm1689, 1, 0
        %v1751 = vsel %vm1690, 1, 0
        %v1752 = vsel %vm1691, 1, 0
        %v1753 = vsel %vm1692, 1, 0
        %v1754 = vsel %vm1693, 1, 0
        %v1755 = vsel %vm1694, 1, 0
        %v1756 = vsel %vm1695, 1, 0
        %v1757 = vsel %vm1696, 1, 0
        %v1758 = vsel %vm1697, 1, 0
        %v1759 = vsel %vm1698, 1, 0
        %v1760 = vsel %vm1699, 1, 0
        %v1761 = vsel %vm1700, 1, 0
        %vm1762 = vcmp.eq.s32.totalorder %v1742, 1
        %vm1763 = vcmp.eq.s32.totalorder %v1743, 1
        %vm1764 = vcmp.eq.s32.totalorder %v1744, 1
        %vm1765 = vcmp.eq.s32.totalorder %v1745, 1
        %vm1766 = vcmp.eq.s32.totalorder %v1746, 1
        %vm1767 = vcmp.eq.s32.totalorder %v1747, 1
        %vm1768 = vcmp.eq.s32.totalorder %v1748, 1
        %vm1769 = vcmp.eq.s32.totalorder %v1749, 1
        %vm1770 = vcmp.eq.s32.totalorder %v1750, 1
        %vm1771 = vcmp.eq.s32.totalorder %v1751, 1
        %vm1772 = vcmp.eq.s32.totalorder %v1752, 1
        %vm1773 = vcmp.eq.s32.totalorder %v1753, 1
        %vm1774 = vcmp.eq.s32.totalorder %v1754, 1
        %vm1775 = vcmp.eq.s32.totalorder %v1755, 1
        %vm1776 = vcmp.eq.s32.totalorder %v1756, 1
        %vm1777 = vcmp.eq.s32.totalorder %v1757, 1
        %vm1778 = vcmp.eq.s32.totalorder %v1758, 1
        %vm1779 = vcmp.eq.s32.totalorder %v1759, 1
        %vm1780 = vcmp.eq.s32.totalorder %v1760, 1
        %vm1781 = vcmp.eq.s32.totalorder %v1761, 1
        %v1782 = vsel %vm1762, %v1740, 0.0
        %v1783 = vsel %vm1763, %v1739, 0.0
        %v1784 = vsel %vm1764, %v1738, 0.0
        %v1785 = vsel %vm1765, %v1737, 0.0
        %v1786 = vsel %vm1766, %v1736, 0.0
        %v1787 = vsel %vm1767, %v1735, 0.0
        %v1788 = vsel %vm1768, %v1734, 0.0
        %v1789 = vsel %vm1769, %v1733, 0.0
        %v1790 = vsel %vm1770, %v1732, 0.0
        %v1791 = vsel %vm1771, %v1731, 0.0
        %v1792 = vsel %vm1772, %v1730, 0.0
        %v1793 = vsel %vm1773, %v1729, 0.0
        %v1794 = vsel %vm1774, %v1728, 0.0
        %v1795 = vsel %vm1775, %v1727, 0.0
        %v1796 = vsel %vm1776, %v1726, 0.0
        %v1797 = vsel %vm1777, %v1725, 0.0
        %v1798 = vsel %vm1778, %v1724, 0.0
        %v1799 = vsel %vm1779, %v1723, 0.0
        %v1800 = vsel %vm1780, %v1722, 0.0
        %v1801 = vsel %vm1781, %v1741, 0.0
        %v1802 = vpack.c.bf16 %v1783, %v1782
        %v1803 = vpack.c.bf16 %v1785, %v1784
        %v1804 = vpack.c.bf16 %v1787, %v1786
        %v1805 = vpack.c.bf16 %v1789, %v1788
        %v1806 = vpack.c.bf16 %v1791, %v1790
        %v1807 = vpack.c.bf16 %v1793, %v1792
        %v1808 = vpack.c.bf16 %v1795, %v1794
        %v1809 = vpack.c.bf16 %v1797, %v1796
        %v1810 = vpack.c.bf16 %v1799, %v1798
        %v1811 = vpack.c.bf16 %v1801, %v1800
        %v1812 = vpack.c.bf16 %v1251, %v1250
        %v1813 = vpack.c.bf16 %v1253, %v1252
        %v1814 = vpack.c.bf16 %v1255, %v1254
        %v1815 = vpack.c.bf16 %v1257, %v1256
        %v1816 = vpack.c.bf16 %v1259, %v1258
        %v1817 = vpack.c.bf16 %v1261, %v1260
        %v1818 = vpack.c.bf16 %v1263, %v1262
        %v1819 = vpack.c.bf16 %v1265, %v1264
        %v1820 = vpack.c.bf16 %v1267, %v1266
        %v1821 = vpack.c.bf16 %v1269, %v1268
        %v1822 = vld [vmem:[#allocation8] sm:$0xff]
        %v1823 = vld [vmem:[#allocation8 + $0x8] sm:$0xff]
        %v1824 = vld [vmem:[#allocation8 + $0x10] sm:$0xff]
        %v1825 = vld [vmem:[#allocation8 + $0x18] sm:$0xff]
        %v1826 = vld [vmem:[#allocation8 + $0x20] sm:$0xff]
        %v1827 = vld [vmem:[#allocation8 + $0x28] sm:$0xff]
        %v1828 = vld [vmem:[#allocation8 + $0x30] sm:$0xff]
        %v1829 = vld [vmem:[#allocation8 + $0x38] sm:$0xff]
        %s1830 = scalar_lea.vmem [#allocation8], 64
        %v1831 = vld [vmem:[%s1830] sm:$0xff]
        %v1832 = vld [vmem:[%s1830 + $0x8] sm:$0xff]
        %v1833 = vld [vmem:[%s1830 + $0x10] sm:$0xff]
        %v1834 = vld [vmem:[%s1830 + $0x18] sm:$0xff]
        %v1835 = vld [vmem:[%s1830 + $0x20] sm:$0xff]
        %v1836 = vld [vmem:[%s1830 + $0x28] sm:$0xff]
        %v1837 = vld [vmem:[%s1830 + $0x30] sm:$0xff]
        %v1838 = vld [vmem:[%s1830 + $0x38] sm:$0xff]
        %v1847 = vunpack.c.l.b16 %v1831
        %v1848 = vunpack.c.h.b16 %v1831
        %v1849 = vunpack.c.l.b16 %v1832
        %v1850 = vunpack.c.h.b16 %v1832
        %v1851 = vunpack.c.l.b16 %v1833
        %v1852 = vunpack.c.h.b16 %v1833
        %v1853 = vunpack.c.l.b16 %v1834
        %v1854 = vunpack.c.h.b16 %v1834
        %v1855 = vunpack.c.l.b16 %v1835
        %v1856 = vunpack.c.h.b16 %v1835
        %v1857 = vunpack.c.l.b16 %v1836
        %v1858 = vunpack.c.h.b16 %v1836
        %v1859 = vunpack.c.l.b16 %v1837
        %v1860 = vunpack.c.h.b16 %v1837
        %v1861 = vunpack.c.l.b16 %v1838
        %v1862 = vunpack.c.h.b16 %v1838
        %v1863 = vpack.c.b16 %v1849, %v1847
        %v1864 = vpack.c.b16 %v1850, %v1848
        %v1865 = vpack.c.b16 %v1853, %v1851
        %v1866 = vpack.c.b16 %v1854, %v1852
        %v1867 = vpack.c.b16 %v1857, %v1855
        %v1868 = vpack.c.b16 %v1858, %v1856
        %v1869 = vpack.c.b16 %v1861, %v1859
        %v1870 = vpack.c.b16 %v1862, %v1860
        %vm1879 = vcmask 523264
        %v1881 = vsel %vm1879, %v1812, 0
        %v1884 = vsel %vm1879, %v1813, 0
        %v1887 = vsel %vm1879, %v1814, 0
        %v1890 = vsel %vm1879, %v1815, 0
        %v1893 = vsel %vm1879, %v1816, 0
        %v1896 = vsel %vm1879, %v1817, 0
        %v1899 = vsel %vm1879, %v1818, 0
        %v1902 = vsel %vm1879, %v1819, 0
        %v1905 = vsel %vm1879, %v1820, 0
        %v1908 = vsel %vm1879, %v1821, 0
        %1910 = vmatprep.subr.bf16.mxu0 %v1864
        %1911 = vmatpush1.bf16.msra.mxu0 %v1863
        %1912 = vmatprep.subr.bf16.mxu0 %v1866
        %1913 = vmatpush1.bf16.msra.mxu0 %v1865
        %1914 = vmatprep.subr.bf16.mxu0 %v1868
        %1915 = vmatpush1.bf16.msra.mxu0 %v1867
        %1916 = vmatprep.subr.bf16.mxu0 %v1870
        %1917 = vmatpush1.bf16.msra.mxu0 %v1869
        %1918 = vmatprep.subr.bf16.mxu0 0
        %1919 = vmatpush1.bf16.msra.mxu0 0
        %1920 = vmatprep.subr.bf16.mxu0 0
        %1921 = vmatpush1.bf16.msra.mxu0 0
        %1922 = vmatprep.subr.bf16.mxu0 0
        %1923 = vmatpush1.bf16.msra.mxu0 0
        %1924 = vmatprep.subr.bf16.mxu0 0
        %1925 = vmatpush1.bf16.msra.mxu0 0
        %1926 = vmatprep.subr.bf16.mxu0 0
        %1927 = vmatpush1.bf16.msra.mxu0 0
        %1928 = vmatprep.subr.bf16.mxu0 0
        %1929 = vmatpush1.bf16.msra.mxu0 0
        %1930 = vmatprep.subr.bf16.mxu0 0
        %1931 = vmatpush1.bf16.msra.mxu0 0
        %1932 = vmatprep.subr.bf16.mxu0 0
        %1933 = vmatpush1.bf16.msra.mxu0 0
        %1934 = vmatprep.subr.bf16.mxu0 0
        %1935 = vmatpush1.bf16.msra.mxu0 0
        %1936 = vmatprep.subr.bf16.mxu0 0
        %1937 = vmatpush1.bf16.msra.mxu0 0
        %1938 = vmatprep.subr.bf16.mxu0 0
        %1939 = vmatpush1.bf16.msra.mxu0 0
        %1940 = vmatprep.subr.bf16.mxu0 0
        %1941 = vmatpush1.bf16.msra.mxu0 0
        %1942 = vmatprep.mubr.bf16.mxu0 0
        %1943 = vmatmul.mubr.bf16.gmra.mrb[0].mxu0 %v1881
        %v1944 = vpop.f32.mrb[0].mxu0
        %v1945 = vadd.f32 0.0, %v1944
        %v1946 = vpop.f32.mrb[0].mxu0
        %v1947 = vpop.f32.mrb[0].mxu0
        %v1948 = vadd.f32 0.0, %v1947
        %v1949 = vpop.f32.mrb[0].mxu0
        %1950 = vmatprep.mubr.bf16.mxu0 0
        %1951 = vmatmul.mubr.bf16.gmra.mrb[0].mxu0 %v1884
        %v1952 = vpop.f32.mrb[0].mxu0
        %v1953 = vadd.f32 0.0, %v1952
        %v1954 = vpop.f32.mrb[0].mxu0
        %v1955 = vpop.f32.mrb[0].mxu0
        %v1956 = vadd.f32 0.0, %v1955
        %v1957 = vpop.f32.mrb[0].mxu0
        %1958 = vmatprep.mubr.bf16.mxu0 0
        %1959 = vmatmul.mubr.bf16.gmra.mrb[0].mxu0 %v1887
        %v1960 = vpop.f32.mrb[0].mxu0
        %v1961 = vadd.f32 0.0, %v1960
        %v1962 = vpop.f32.mrb[0].mxu0
        %v1963 = vadd.f32 0.0, %v1962
        %v1964 = vpop.f32.mrb[0].mxu0
        %v1965 = vadd.f32 0.0, %v1964
        %v1966 = vpop.f32.mrb[0].mxu0
        %v1967 = vadd.f32 0.0, %v1966
        %1968 = vmatprep.mubr.bf16.mxu0 0
        %1969 = vmatmul.mubr.bf16.gmra.mrb[0].mxu0 %v1890
        %v1970 = vpop.f32.mrb[0].mxu0
        %v1971 = vadd.f32 0.0, %v1970
        %v1972 = vpop.f32.mrb[0].mxu0
        %v1973 = vadd.f32 0.0, %v1972
        %v1974 = vpop.f32.mrb[0].mxu0
        %v1975 = vadd.f32 0.0, %v1974
        %v1976 = vpop.f32.mrb[0].mxu0
        %v1977 = vadd.f32 0.0, %v1976
        %1978 = vmatprep.mubr.bf16.mxu0 0
        %1979 = vmatmul.mubr.bf16.gmra.mrb[0].mxu0 %v1893
        %v1980 = vpop.f32.mrb[0].mxu0
        %v1981 = vadd.f32 0.0, %v1980
        %v1982 = vpop.f32.mrb[0].mxu0
        %v1983 = vadd.f32 0.0, %v1982
        %v1984 = vpop.f32.mrb[0].mxu0
        %v1985 = vadd.f32 0.0, %v1984
        %v1986 = vpop.f32.mrb[0].mxu0
        %v1987 = vadd.f32 0.0, %v1986
        %1988 = vmatprep.mubr.bf16.mxu0 0
        %1989 = vmatmul.mubr.bf16.gmra.mrb[0].mxu0 %v1896
        %v1990 = vpop.f32.mrb[0].mxu0
        %v1991 = vadd.f32 0.0, %v1990
        %v1992 = vpop.f32.mrb[0].mxu0
        %v1993 = vadd.f32 0.0, %v1992
        %v1994 = vpop.f32.mrb[0].mxu0
        %v1995 = vadd.f32 0.0, %v1994
        %v1996 = vpop.f32.mrb[0].mxu0
        %v1997 = vadd.f32 0.0, %v1996
        %1998 = vmatprep.mubr.bf16.mxu0 0
        %1999 = vmatmul.mubr.bf16.gmra.mrb[0].mxu0 %v1899
        %v2000 = vpop.f32.mrb[0].mxu0
        %v2001 = vadd.f32 0.0, %v2000
        %v2002 = vpop.f32.mrb[0].mxu0
        %v2003 = vadd.f32 0.0, %v2002
        %v2004 = vpop.f32.mrb[0].mxu0
        %v2005 = vadd.f32 0.0, %v2004
        %v2006 = vpop.f32.mrb[0].mxu0
        %v2007 = vadd.f32 0.0, %v2006
        %2008 = vmatprep.mubr.bf16.mxu0 0
        %2009 = vmatmul.mubr.bf16.gmra.mrb[0].mxu0 %v1902
        %v2010 = vpop.f32.mrb[0].mxu0
        %v2011 = vadd.f32 0.0, %v2010
        %v2012 = vpop.f32.mrb[0].mxu0
        %v2013 = vadd.f32 0.0, %v2012
        %v2014 = vpop.f32.mrb[0].mxu0
        %v2015 = vadd.f32 0.0, %v2014
        %v2016 = vpop.f32.mrb[0].mxu0
        %v2017 = vadd.f32 0.0, %v2016
        %2018 = vmatprep.mubr.bf16.mxu0 0
        %2019 = vmatmul.mubr.bf16.gmra.mrb[0].mxu0 %v1905
        %v2020 = vpop.f32.mrb[0].mxu0
        %v2021 = vadd.f32 0.0, %v2020
        %v2022 = vpop.f32.mrb[0].mxu0
        %v2023 = vadd.f32 0.0, %v2022
        %v2024 = vpop.f32.mrb[0].mxu0
        %v2025 = vadd.f32 0.0, %v2024
        %v2026 = vpop.f32.mrb[0].mxu0
        %v2027 = vadd.f32 0.0, %v2026
        %2028 = vmatprep.mubr.bf16.mxu0 0
        %2029 = vmatmul.mubr.bf16.gmra.mrb[0].mxu0 %v1908
        %v2030 = vpop.f32.mrb[0].mxu0
        %v2031 = vpop.f32.mrb[0].mxu0
        %v2032 = vadd.f32 0.0, %v2031
        %v2033 = vpop.f32.mrb[0].mxu0
        %v2034 = vpop.f32.mrb[0].mxu0
        %v2035 = vadd.f32 0.0, %v2034
        %2036 = vdwg.mxu0
        %v2045 = vunpack.c.l.b16 %v1822
        %v2046 = vunpack.c.h.b16 %v1822
        %v2047 = vunpack.c.l.b16 %v1823
        %v2048 = vunpack.c.h.b16 %v1823
        %v2049 = vunpack.c.l.b16 %v1824
        %v2050 = vunpack.c.h.b16 %v1824
        %v2051 = vunpack.c.l.b16 %v1825
        %v2052 = vunpack.c.h.b16 %v1825
        %v2053 = vunpack.c.l.b16 %v1826
        %v2054 = vunpack.c.h.b16 %v1826
        %v2055 = vunpack.c.l.b16 %v1827
        %v2056 = vunpack.c.h.b16 %v1827
        %v2057 = vunpack.c.l.b16 %v1828
        %v2058 = vunpack.c.h.b16 %v1828
        %v2059 = vunpack.c.l.b16 %v1829
        %v2060 = vunpack.c.h.b16 %v1829
        %v2061 = vpack.c.b16 %v2047, %v2045
        %v2062 = vpack.c.b16 %v2048, %v2046
        %v2063 = vpack.c.b16 %v2051, %v2049
        %v2064 = vpack.c.b16 %v2052, %v2050
        %v2065 = vpack.c.b16 %v2055, %v2053
        %v2066 = vpack.c.b16 %v2056, %v2054
        %v2067 = vpack.c.b16 %v2059, %v2057
        %v2068 = vpack.c.b16 %v2060, %v2058
        %v2078 = vsel %vm1879, %v1671, 0
        %v2081 = vsel %vm1879, %v1672, 0
        %v2084 = vsel %vm1879, %v1673, 0
        %v2087 = vsel %vm1879, %v1674, 0
        %v2090 = vsel %vm1879, %v1675, 0
        %v2093 = vsel %vm1879, %v1676, 0
        %v2096 = vsel %vm1879, %v1677, 0
        %v2099 = vsel %vm1879, %v1678, 0
        %v2102 = vsel %vm1879, %v1679, 0
        %v2105 = vsel %vm1879, %v1680, 0
        %2107 = vmatprep.subr.bf16.mxu0 %v2062
        %2108 = vmatpush1.bf16.msra.mxu0 %v2061
        %2109 = vmatprep.subr.bf16.mxu0 %v2064
        %2110 = vmatpush1.bf16.msra.mxu0 %v2063
        %2111 = vmatprep.subr.bf16.mxu0 %v2066
        %2112 = vmatpush1.bf16.msra.mxu0 %v2065
        %2113 = vmatprep.subr.bf16.mxu0 %v2068
        %2114 = vmatpush1.bf16.msra.mxu0 %v2067
        %2115 = vmatprep.subr.bf16.mxu0 0
        %2116 = vmatpush1.bf16.msra.mxu0 0
        %2117 = vmatprep.subr.bf16.mxu0 0
        %2118 = vmatpush1.bf16.msra.mxu0 0
        %2119 = vmatprep.subr.bf16.mxu0 0
        %2120 = vmatpush1.bf16.msra.mxu0 0
        %2121 = vmatprep.subr.bf16.mxu0 0
        %2122 = vmatpush1.bf16.msra.mxu0 0
        %2123 = vmatprep.subr.bf16.mxu0 0
        %2124 = vmatpush1.bf16.msra.mxu0 0
        %2125 = vmatprep.subr.bf16.mxu0 0
        %2126 = vmatpush1.bf16.msra.mxu0 0
        %2127 = vmatprep.subr.bf16.mxu0 0
        %2128 = vmatpush1.bf16.msra.mxu0 0
        %2129 = vmatprep.subr.bf16.mxu0 0
        %2130 = vmatpush1.bf16.msra.mxu0 0
        %2131 = vmatprep.subr.bf16.mxu0 0
        %2132 = vmatpush1.bf16.msra.mxu0 0
        %2133 = vmatprep.subr.bf16.mxu0 0
        %2134 = vmatpush1.bf16.msra.mxu0 0
        %2135 = vmatprep.subr.bf16.mxu0 0
        %2136 = vmatpush1.bf16.msra.mxu0 0
        %2137 = vmatprep.subr.bf16.mxu0 0
        %2138 = vmatpush1.bf16.msra.mxu0 0
        %2139 = vmatprep.mubr.bf16.mxu0 0
        %2140 = vmatmul.mubr.bf16.gmra.mrb[0].mxu0 %v2078
        %v2141 = vpop.f32.mrb[0].mxu0
        %v2142 = vadd.f32 %v1945, %v2141
        %v2143 = vpop.f32.mrb[0].mxu0
        %v2144 = vpop.f32.mrb[0].mxu0
        %v2145 = vadd.f32 %v1948, %v2144
        %v2146 = vpop.f32.mrb[0].mxu0
        %2147 = vmatprep.mubr.bf16.mxu0 0
        %2148 = vmatmul.mubr.bf16.gmra.mrb[0].mxu0 %v2081
        %v2149 = vpop.f32.mrb[0].mxu0
        %v2150 = vadd.f32 %v1953, %v2149
        %v2151 = vpop.f32.mrb[0].mxu0
        %v2152 = vpop.f32.mrb[0].mxu0
        %v2153 = vadd.f32 %v1956, %v2152
        %v2154 = vpop.f32.mrb[0].mxu0
        %2155 = vmatprep.mubr.bf16.mxu0 0
        %2156 = vmatmul.mubr.bf16.gmra.mrb[0].mxu0 %v2084
        %v2157 = vpop.f32.mrb[0].mxu0
        %v2158 = vadd.f32 %v1961, %v2157
        %v2159 = vpop.f32.mrb[0].mxu0
        %v2160 = vadd.f32 %v1963, %v2159
        %v2161 = vpop.f32.mrb[0].mxu0
        %v2162 = vadd.f32 %v1965, %v2161
        %v2163 = vpop.f32.mrb[0].mxu0
        %v2164 = vadd.f32 %v1967, %v2163
        %2165 = vmatprep.mubr.bf16.mxu0 0
        %2166 = vmatmul.mubr.bf16.gmra.mrb[0].mxu0 %v2087
        %v2167 = vpop.f32.mrb[0].mxu0
        %v2168 = vadd.f32 %v1971, %v2167
        %v2169 = vpop.f32.mrb[0].mxu0
        %v2170 = vadd.f32 %v1973, %v2169
        %v2171 = vpop.f32.mrb[0].mxu0
        %v2172 = vadd.f32 %v1975, %v2171
        %v2173 = vpop.f32.mrb[0].mxu0
        %v2174 = vadd.f32 %v1977, %v2173
        %2175 = vmatprep.mubr.bf16.mxu0 0
        %2176 = vmatmul.mubr.bf16.gmra.mrb[0].mxu0 %v2090
        %v2177 = vpop.f32.mrb[0].mxu0
        %v2178 = vadd.f32 %v1981, %v2177
        %v2179 = vpop.f32.mrb[0].mxu0
        %v2180 = vadd.f32 %v1983, %v2179
        %v2181 = vpop.f32.mrb[0].mxu0
        %v2182 = vadd.f32 %v1985, %v2181
        %v2183 = vpop.f32.mrb[0].mxu0
        %v2184 = vadd.f32 %v1987, %v2183
        %2185 = vmatprep.mubr.bf16.mxu0 0
        %2186 = vmatmul.mubr.bf16.gmra.mrb[0].mxu0 %v2093
        %v2187 = vpop.f32.mrb[0].mxu0
        %v2188 = vadd.f32 %v1991, %v2187
        %v2189 = vpop.f32.mrb[0].mxu0
        %v2190 = vadd.f32 %v1993, %v2189
        %v2191 = vpop.f32.mrb[0].mxu0
        %v2192 = vadd.f32 %v1995, %v2191
        %v2193 = vpop.f32.mrb[0].mxu0
        %v2194 = vadd.f32 %v1997, %v2193
        %2195 = vmatprep.mubr.bf16.mxu0 0
        %2196 = vmatmul.mubr.bf16.gmra.mrb[0].mxu0 %v2096
        %v2197 = vpop.f32.mrb[0].mxu0
        %v2198 = vadd.f32 %v2001, %v2197
        %v2199 = vpop.f32.mrb[0].mxu0
        %v2200 = vadd.f32 %v2003, %v2199
        %v2201 = vpop.f32.mrb[0].mxu0
        %v2202 = vadd.f32 %v2005, %v2201
        %v2203 = vpop.f32.mrb[0].mxu0
        %v2204 = vadd.f32 %v2007, %v2203
        %2205 = vmatprep.mubr.bf16.mxu0 0
        %2206 = vmatmul.mubr.bf16.gmra.mrb[0].mxu0 %v2099
        %v2207 = vpop.f32.mrb[0].mxu0
        %v2208 = vadd.f32 %v2011, %v2207
        %v2209 = vpop.f32.mrb[0].mxu0
        %v2210 = vadd.f32 %v2013, %v2209
        %v2211 = vpop.f32.mrb[0].mxu0
        %v2212 = vadd.f32 %v2015, %v2211
        %v2213 = vpop.f32.mrb[0].mxu0
        %v2214 = vadd.f32 %v2017, %v2213
        %2215 = vmatprep.mubr.bf16.mxu0 0
        %2216 = vmatmul.mubr.bf16.gmra.mrb[0].mxu0 %v2102
        %v2217 = vpop.f32.mrb[0].mxu0
        %v2218 = vadd.f32 %v2021, %v2217
        %v2219 = vpop.f32.mrb[0].mxu0
        %v2220 = vadd.f32 %v2023, %v2219
        %v2221 = vpop.f32.mrb[0].mxu0
        %v2222 = vadd.f32 %v2025, %v2221
        %v2223 = vpop.f32.mrb[0].mxu0
        %v2224 = vadd.f32 %v2027, %v2223
        %2225 = vmatprep.mubr.bf16.mxu0 0
        %2226 = vmatmul.mubr.bf16.gmra.mrb[0].mxu0 %v2105
        %v2227 = vpop.f32.mrb[0].mxu0
        %v2228 = vpop.f32.mrb[0].mxu0
        %v2229 = vadd.f32 %v2032, %v2228
        %v2230 = vpop.f32.mrb[0].mxu0
        %v2231 = vpop.f32.mrb[0].mxu0
        %v2232 = vadd.f32 %v2035, %v2231
        %2233 = vdwg.mxu0
        %s2234 = scalar_lea.vmem [#allocation8], 128
        %v2235 = vld [vmem:[%s2234] sm:$0xff]
        %v2236 = vld [vmem:[%s2234 + $0x8] sm:$0xff]
        %v2237 = vld [vmem:[%s2234 + $0x10] sm:$0xff]
        %v2238 = vld [vmem:[%s2234 + $0x18] sm:$0xff]
        %v2239 = vld [vmem:[%s2234 + $0x20] sm:$0xff]
        %v2240 = vld [vmem:[%s2234 + $0x28] sm:$0xff]
        %v2241 = vld [vmem:[%s2234 + $0x30] sm:$0xff]
        %v2242 = vld [vmem:[%s2234 + $0x38] sm:$0xff]
        %v2251 = vunpack.c.l.b16 %v2235
        %v2252 = vunpack.c.h.b16 %v2235
        %v2253 = vunpack.c.l.b16 %v2236
        %v2254 = vunpack.c.h.b16 %v2236
        %v2255 = vunpack.c.l.b16 %v2237
        %v2256 = vunpack.c.h.b16 %v2237
        %v2257 = vunpack.c.l.b16 %v2238
        %v2258 = vunpack.c.h.b16 %v2238
        %v2259 = vunpack.c.l.b16 %v2239
        %v2260 = vunpack.c.h.b16 %v2239
        %v2261 = vunpack.c.l.b16 %v2240
        %v2262 = vunpack.c.h.b16 %v2240
        %v2263 = vunpack.c.l.b16 %v2241
        %v2264 = vunpack.c.h.b16 %v2241
        %v2265 = vunpack.c.l.b16 %v2242
        %v2266 = vunpack.c.h.b16 %v2242
        %v2267 = vpack.c.b16 %v2253, %v2251
        %v2268 = vpack.c.b16 %v2254, %v2252
        %v2269 = vpack.c.b16 %v2257, %v2255
        %v2270 = vpack.c.b16 %v2258, %v2256
        %v2271 = vpack.c.b16 %v2261, %v2259
        %v2272 = vpack.c.b16 %v2262, %v2260
        %v2273 = vpack.c.b16 %v2265, %v2263
        %v2274 = vpack.c.b16 %v2266, %v2264
        %v2284 = vsel %vm1879, %v1802, 0
        %v2287 = vsel %vm1879, %v1803, 0
        %v2290 = vsel %vm1879, %v1804, 0
        %v2293 = vsel %vm1879, %v1805, 0
        %v2296 = vsel %vm1879, %v1806, 0
        %v2299 = vsel %vm1879, %v1807, 0
        %v2302 = vsel %vm1879, %v1808, 0
        %v2305 = vsel %vm1879, %v1809, 0
        %v2308 = vsel %vm1879, %v1810, 0
        %v2311 = vsel %vm1879, %v1811, 0
        %2313 = vmatprep.subr.bf16.mxu0 %v2268
        %2314 = vmatpush1.bf16.msra.mxu0 %v2267
        %2315 = vmatprep.subr.bf16.mxu0 %v2270
        %2316 = vmatpush1.bf16.msra.mxu0 %v2269
        %2317 = vmatprep.subr.bf16.mxu0 %v2272
        %2318 = vmatpush1.bf16.msra.mxu0 %v2271
        %2319 = vmatprep.subr.bf16.mxu0 %v2274
        %2320 = vmatpush1.bf16.msra.mxu0 %v2273
        %2321 = vmatprep.subr.bf16.mxu0 0
        %2322 = vmatpush1.bf16.msra.mxu0 0
        %2323 = vmatprep.subr.bf16.mxu0 0
        %2324 = vmatpush1.bf16.msra.mxu0 0
        %2325 = vmatprep.subr.bf16.mxu0 0
        %2326 = vmatpush1.bf16.msra.mxu0 0
        %2327 = vmatprep.subr.bf16.mxu0 0
        %2328 = vmatpush1.bf16.msra.mxu0 0
        %2329 = vmatprep.subr.bf16.mxu0 0
        %2330 = vmatpush1.bf16.msra.mxu0 0
        %2331 = vmatprep.subr.bf16.mxu0 0
        %2332 = vmatpush1.bf16.msra.mxu0 0
        %2333 = vmatprep.subr.bf16.mxu0 0
        %2334 = vmatpush1.bf16.msra.mxu0 0
        %2335 = vmatprep.subr.bf16.mxu0 0
        %2336 = vmatpush1.bf16.msra.mxu0 0
        %2337 = vmatprep.subr.bf16.mxu0 0
        %2338 = vmatpush1.bf16.msra.mxu0 0
        %2339 = vmatprep.subr.bf16.mxu0 0
        %2340 = vmatpush1.bf16.msra.mxu0 0
        %2341 = vmatprep.subr.bf16.mxu0 0
        %2342 = vmatpush1.bf16.msra.mxu0 0
        %2343 = vmatprep.subr.bf16.mxu0 0
        %2344 = vmatpush1.bf16.msra.mxu0 0
        %2345 = vmatprep.mubr.bf16.mxu0 0
        %2346 = vmatmul.mubr.bf16.gmra.mrb[0].mxu0 %v2284
        %v2347 = vpop.f32.mrb[0].mxu0
        %v2348 = vadd.f32 0.0, %v2347
        %v2349 = vpop.f32.mrb[0].mxu0
        %v2350 = vpop.f32.mrb[0].mxu0
        %v2351 = vadd.f32 0.0, %v2350
        %v2352 = vpop.f32.mrb[0].mxu0
        %2353 = vmatprep.mubr.bf16.mxu0 0
        %2354 = vmatmul.mubr.bf16.gmra.mrb[0].mxu0 %v2287
        %v2355 = vpop.f32.mrb[0].mxu0
        %v2356 = vadd.f32 0.0, %v2355
        %v2357 = vpop.f32.mrb[0].mxu0
        %v2358 = vpop.f32.mrb[0].mxu0
        %v2359 = vadd.f32 0.0, %v2358
        %v2360 = vpop.f32.mrb[0].mxu0
        %2361 = vmatprep.mubr.bf16.mxu0 0
        %2362 = vmatmul.mubr.bf16.gmra.mrb[0].mxu0 %v2290
        %v2363 = vpop.f32.mrb[0].mxu0
        %v2364 = vadd.f32 0.0, %v2363
        %v2365 = vpop.f32.mrb[0].mxu0
        %v2366 = vadd.f32 0.0, %v2365
        %v2367 = vpop.f32.mrb[0].mxu0
        %v2368 = vadd.f32 0.0, %v2367
        %v2369 = vpop.f32.mrb[0].mxu0
        %v2370 = vadd.f32 0.0, %v2369
        %2371 = vmatprep.mubr.bf16.mxu0 0
        %2372 = vmatmul.mubr.bf16.gmra.mrb[0].mxu0 %v2293
        %v2373 = vpop.f32.mrb[0].mxu0
        %v2374 = vadd.f32 0.0, %v2373
        %v2375 = vpop.f32.mrb[0].mxu0
        %v2376 = vadd.f32 0.0, %v2375
        %v2377 = vpop.f32.mrb[0].mxu0
        %v2378 = vadd.f32 0.0, %v2377
        %v2379 = vpop.f32.mrb[0].mxu0
        %v2380 = vadd.f32 0.0, %v2379
        %2381 = vmatprep.mubr.bf16.mxu0 0
        %2382 = vmatmul.mubr.bf16.gmra.mrb[0].mxu0 %v2296
        %v2383 = vpop.f32.mrb[0].mxu0
        %v2384 = vadd.f32 0.0, %v2383
        %v2385 = vpop.f32.mrb[0].mxu0
        %v2386 = vadd.f32 0.0, %v2385
        %v2387 = vpop.f32.mrb[0].mxu0
        %v2388 = vadd.f32 0.0, %v2387
        %v2389 = vpop.f32.mrb[0].mxu0
        %v2390 = vadd.f32 0.0, %v2389
        %2391 = vmatprep.mubr.bf16.mxu0 0
        %2392 = vmatmul.mubr.bf16.gmra.mrb[0].mxu0 %v2299
        %v2393 = vpop.f32.mrb[0].mxu0
        %v2394 = vadd.f32 0.0, %v2393
        %v2395 = vpop.f32.mrb[0].mxu0
        %v2396 = vadd.f32 0.0, %v2395
        %v2397 = vpop.f32.mrb[0].mxu0
        %v2398 = vadd.f32 0.0, %v2397
        %v2399 = vpop.f32.mrb[0].mxu0
        %v2400 = vadd.f32 0.0, %v2399
        %2401 = vmatprep.mubr.bf16.mxu0 0
        %2402 = vmatmul.mubr.bf16.gmra.mrb[0].mxu0 %v2302
        %v2403 = vpop.f32.mrb[0].mxu0
        %v2404 = vadd.f32 0.0, %v2403
        %v2405 = vpop.f32.mrb[0].mxu0
        %v2406 = vadd.f32 0.0, %v2405
        %v2407 = vpop.f32.mrb[0].mxu0
        %v2408 = vadd.f32 0.0, %v2407
        %v2409 = vpop.f32.mrb[0].mxu0
        %v2410 = vadd.f32 0.0, %v2409
        %2411 = vmatprep.mubr.bf16.mxu0 0
        %2412 = vmatmul.mubr.bf16.gmra.mrb[0].mxu0 %v2305
        %v2413 = vpop.f32.mrb[0].mxu0
        %v2414 = vadd.f32 0.0, %v2413
        %v2415 = vpop.f32.mrb[0].mxu0
        %v2416 = vadd.f32 0.0, %v2415
        %v2417 = vpop.f32.mrb[0].mxu0
        %v2418 = vadd.f32 0.0, %v2417
        %v2419 = vpop.f32.mrb[0].mxu0
        %v2420 = vadd.f32 0.0, %v2419
        %2421 = vmatprep.mubr.bf16.mxu0 0
        %2422 = vmatmul.mubr.bf16.gmra.mrb[0].mxu0 %v2308
        %v2423 = vpop.f32.mrb[0].mxu0
        %v2424 = vadd.f32 0.0, %v2423
        %v2425 = vpop.f32.mrb[0].mxu0
        %v2426 = vadd.f32 0.0, %v2425
        %v2427 = vpop.f32.mrb[0].mxu0
        %v2428 = vadd.f32 0.0, %v2427
        %v2429 = vpop.f32.mrb[0].mxu0
        %v2430 = vadd.f32 0.0, %v2429
        %2431 = vmatprep.mubr.bf16.mxu0 0
        %2432 = vmatmul.mubr.bf16.gmra.mrb[0].mxu0 %v2311
        %v2433 = vpop.f32.mrb[0].mxu0
        %v2434 = vpop.f32.mrb[0].mxu0
        %v2435 = vadd.f32 0.0, %v2434
        %v2436 = vpop.f32.mrb[0].mxu0
        %v2437 = vpop.f32.mrb[0].mxu0
        %v2438 = vadd.f32 0.0, %v2437
        %2439 = vdwg.mxu0
        %v2440 = vadd.f32 %v2142, %v2348
        %v2441 = vadd.f32 %v2145, %v2351
        %v2442 = vadd.f32 %v2150, %v2356
        %v2443 = vadd.f32 %v2153, %v2359
        %v2444 = vadd.f32 %v2158, %v2364
        %v2445 = vadd.f32 %v2160, %v2366
        %v2446 = vadd.f32 %v2162, %v2368
        %v2447 = vadd.f32 %v2164, %v2370
        %v2448 = vadd.f32 %v2168, %v2374
        %v2449 = vadd.f32 %v2170, %v2376
        %v2450 = vadd.f32 %v2172, %v2378
        %v2451 = vadd.f32 %v2174, %v2380
        %v2452 = vadd.f32 %v2178, %v2384
        %v2453 = vadd.f32 %v2180, %v2386
        %v2454 = vadd.f32 %v2182, %v2388
        %v2455 = vadd.f32 %v2184, %v2390
        %v2456 = vadd.f32 %v2188, %v2394
        %v2457 = vadd.f32 %v2190, %v2396
        %v2458 = vadd.f32 %v2192, %v2398
        %v2459 = vadd.f32 %v2194, %v2400
        %v2460 = vadd.f32 %v2198, %v2404
        %v2461 = vadd.f32 %v2200, %v2406
        %v2462 = vadd.f32 %v2202, %v2408
        %v2463 = vadd.f32 %v2204, %v2410
        %v2464 = vadd.f32 %v2208, %v2414
        %v2465 = vadd.f32 %v2210, %v2416
        %v2466 = vadd.f32 %v2212, %v2418
        %v2467 = vadd.f32 %v2214, %v2420
        %v2468 = vadd.f32 %v2218, %v2424
        %v2469 = vadd.f32 %v2220, %v2426
        %v2470 = vadd.f32 %v2222, %v2428
        %v2471 = vadd.f32 %v2224, %v2430
        %v2472 = vadd.f32 %v2229, %v2435
        %v2473 = vadd.f32 %v2232, %v2438
        %vm2474 = vcmp.ge.s32.totalorder %v1294, 16
        %vm2475 = vcmp.ge.s32.totalorder %v1295, 16
        %vm2476 = vcmp.ge.s32.totalorder %v1296, 16
        %vm2477 = vcmp.ge.s32.totalorder %v1297, 16
        %vm2478 = vcmp.ge.s32.totalorder %v1298, 16
        %vm2479 = vcmp.ge.s32.totalorder %v1299, 16
        %vm2480 = vcmp.ge.s32.totalorder %v1300, 16
        %vm2481 = vcmp.ge.s32.totalorder %v1301, 16
        %vm2482 = vcmp.ge.s32.totalorder %v1302, 16
        %vm2483 = vcmp.ge.s32.totalorder %v1303, 16
        %vm2484 = vcmp.ge.s32.totalorder %v1304, 16
        %vm2485 = vcmp.ge.s32.totalorder %v1305, 16
        %vm2486 = vcmp.ge.s32.totalorder %v1306, 16
        %vm2487 = vcmp.ge.s32.totalorder %v1307, 16
        %vm2488 = vcmp.ge.s32.totalorder %v1308, 16
        %vm2489 = vcmp.ge.s32.totalorder %v1309, 16
        %v2490 = vsel %vm2474, 1, 0
        %v2491 = vsel %vm2475, 1, 0
        %v2492 = vsel %vm2476, 1, 0
        %v2493 = vsel %vm2477, 1, 0
        %v2494 = vsel %vm2478, 1, 0
        %v2495 = vsel %vm2479, 1, 0
        %v2496 = vsel %vm2480, 1, 0
        %v2497 = vsel %vm2481, 1, 0
        %v2498 = vsel %vm2482, 1, 0
        %v2499 = vsel %vm2483, 1, 0
        %v2500 = vsel %vm2484, 1, 0
        %v2501 = vsel %vm2485, 1, 0
        %v2502 = vsel %vm2486, 1, 0
        %v2503 = vsel %vm2487, 1, 0
        %v2504 = vsel %vm2488, 1, 0
        %v2505 = vsel %vm2489, 1, 0
        %vm2506 = vcmp.eq.s32.totalorder %v2490, 1
        %vm2507 = vcmp.eq.s32.totalorder %v2491, 1
        %vm2508 = vcmp.eq.s32.totalorder %v2492, 1
        %vm2509 = vcmp.eq.s32.totalorder %v2493, 1
        %vm2510 = vcmp.eq.s32.totalorder %v2494, 1
        %vm2511 = vcmp.eq.s32.totalorder %v2495, 1
        %vm2512 = vcmp.eq.s32.totalorder %v2496, 1
        %vm2513 = vcmp.eq.s32.totalorder %v2497, 1
        %vm2514 = vcmp.eq.s32.totalorder %v2498, 1
        %vm2515 = vcmp.eq.s32.totalorder %v2499, 1
        %vm2516 = vcmp.eq.s32.totalorder %v2500, 1
        %vm2517 = vcmp.eq.s32.totalorder %v2501, 1
        %vm2518 = vcmp.eq.s32.totalorder %v2502, 1
        %vm2519 = vcmp.eq.s32.totalorder %v2503, 1
        %vm2520 = vcmp.eq.s32.totalorder %v2504, 1
        %vm2521 = vcmp.eq.s32.totalorder %v2505, 1
        %v2522 = vsel %vm2506, %v2440, 0.0
        %v2523 = vsel %vm2507, %v2441, 0.0
        %v2524 = vsel %vm2508, %v2442, 0.0
        %v2525 = vsel %vm2509, %v2443, 0.0
        %v2526 = vsel %vm2510, %v2444, 0.0
        %v2527 = vsel %vm2511, %v2446, 0.0
        %v2528 = vsel %vm2512, %v2448, 0.0
        %v2529 = vsel %vm2513, %v2450, 0.0
        %v2530 = vsel %vm2514, %v2452, 0.0
        %v2531 = vsel %vm2515, %v2454, 0.0
        %v2532 = vsel %vm2516, %v2456, 0.0
        %v2533 = vsel %vm2517, %v2458, 0.0
        %v2534 = vsel %vm2518, %v2460, 0.0
        %v2535 = vsel %vm2519, %v2462, 0.0
        %v2536 = vsel %vm2520, %v2464, 0.0
        %v2537 = vsel %vm2521, %v2466, 0.0
        %2554 = vrot.lane.b32.xlu0 %v2522, 64
        %v2555 = vpop.permute.xlu0 %2554
        %2556 = vrot.lane.b32.xlu0 %v2523, 64
        %v2557 = vpop.permute.xlu0 %2556
        %2558 = vrot.lane.b32.xlu0 %v2524, 64
        %v2559 = vpop.permute.xlu0 %2558
        %2560 = vrot.lane.b32.xlu0 %v2525, 64
        %v2561 = vpop.permute.xlu0 %2560
        %2562 = vrot.lane.b32.xlu0 %v2526, 64
        %v2563 = vpop.permute.xlu0 %2562
        %2564 = vrot.lane.b32.xlu0 %v2527, 64
        %v2565 = vpop.permute.xlu0 %2564
        %2566 = vrot.lane.b32.xlu0 %v2528, 64
        %v2567 = vpop.permute.xlu0 %2566
        %2568 = vrot.lane.b32.xlu0 %v2529, 64
        %v2569 = vpop.permute.xlu0 %2568
        %2570 = vrot.lane.b32.xlu0 %v2530, 64
        %v2571 = vpop.permute.xlu0 %2570
        %2572 = vrot.lane.b32.xlu0 %v2531, 64
        %v2573 = vpop.permute.xlu0 %2572
        %2574 = vrot.lane.b32.xlu0 %v2532, 64
        %v2575 = vpop.permute.xlu0 %2574
        %2576 = vrot.lane.b32.xlu0 %v2533, 64
        %v2577 = vpop.permute.xlu0 %2576
        %2578 = vrot.lane.b32.xlu0 %v2534, 64
        %v2579 = vpop.permute.xlu0 %2578
        %2580 = vrot.lane.b32.xlu0 %v2535, 64
        %v2581 = vpop.permute.xlu0 %2580
        %2582 = vrot.lane.b32.xlu0 %v2536, 64
        %v2583 = vpop.permute.xlu0 %2582
        %2584 = vrot.lane.b32.xlu0 %v2537, 64
        %v2585 = vpop.permute.xlu0 %2584
        %v2602 = vadd.f32 %v2442, %v2555
        %v2603 = vadd.f32 %v2443, %v2557
        %v2604 = vadd.f32 %v2444, %v2559
        %v2605 = vadd.f32 %v2446, %v2561
        %v2606 = vadd.f32 %v2448, %v2563
        %v2607 = vadd.f32 %v2450, %v2565
        %v2608 = vadd.f32 %v2452, %v2567
        %v2609 = vadd.f32 %v2454, %v2569
        %v2610 = vadd.f32 %v2456, %v2571
        %v2611 = vadd.f32 %v2458, %v2573
        %v2612 = vadd.f32 %v2460, %v2575
        %v2613 = vadd.f32 %v2462, %v2577
        %v2614 = vadd.f32 %v2464, %v2579
        %v2615 = vadd.f32 %v2466, %v2581
        %v2616 = vadd.f32 %v2468, %v2583
        %v2617 = vadd.f32 %v2470, %v2585
        %vm2618 = vcmp.lt.s32.totalorder %v1294, 240
        %vm2619 = vcmp.lt.s32.totalorder %v1295, 240
        %vm2620 = vcmp.lt.s32.totalorder %v1296, 240
        %vm2621 = vcmp.lt.s32.totalorder %v1297, 240
        %vm2622 = vcmp.lt.s32.totalorder %v1298, 240
        %vm2623 = vcmp.lt.s32.totalorder %v1299, 240
        %vm2624 = vcmp.lt.s32.totalorder %v1300, 240
        %vm2625 = vcmp.lt.s32.totalorder %v1301, 240
        %vm2626 = vcmp.lt.s32.totalorder %v1302, 240
        %vm2627 = vcmp.lt.s32.totalorder %v1303, 240
        %vm2628 = vcmp.lt.s32.totalorder %v1304, 240
        %vm2629 = vcmp.lt.s32.totalorder %v1305, 240
        %vm2630 = vcmp.lt.s32.totalorder %v1306, 240
        %vm2631 = vcmp.lt.s32.totalorder %v1307, 240
        %vm2632 = vcmp.lt.s32.totalorder %v1308, 240
        %vm2633 = vcmp.lt.s32.totalorder %v1309, 240
        %v2634 = vsel %vm2618, 1, 0
        %v2635 = vsel %vm2619, 1, 0
        %v2636 = vsel %vm2620, 1, 0
        %v2637 = vsel %vm2621, 1, 0
        %v2638 = vsel %vm2622, 1, 0
        %v2639 = vsel %vm2623, 1, 0
        %v2640 = vsel %vm2624, 1, 0
        %v2641 = vsel %vm2625, 1, 0
        %v2642 = vsel %vm2626, 1, 0
        %v2643 = vsel %vm2627, 1, 0
        %v2644 = vsel %vm2628, 1, 0
        %v2645 = vsel %vm2629, 1, 0
        %v2646 = vsel %vm2630, 1, 0
        %v2647 = vsel %vm2631, 1, 0
        %v2648 = vsel %vm2632, 1, 0
        %v2649 = vsel %vm2633, 1, 0
        %vm2650 = vcmp.eq.s32.totalorder %v2634, 1
        %vm2651 = vcmp.eq.s32.totalorder %v2635, 1
        %vm2652 = vcmp.eq.s32.totalorder %v2636, 1
        %vm2653 = vcmp.eq.s32.totalorder %v2637, 1
        %vm2654 = vcmp.eq.s32.totalorder %v2638, 1
        %vm2655 = vcmp.eq.s32.totalorder %v2639, 1
        %vm2656 = vcmp.eq.s32.totalorder %v2640, 1
        %vm2657 = vcmp.eq.s32.totalorder %v2641, 1
        %vm2658 = vcmp.eq.s32.totalorder %v2642, 1
        %vm2659 = vcmp.eq.s32.totalorder %v2643, 1
        %vm2660 = vcmp.eq.s32.totalorder %v2644, 1
        %vm2661 = vcmp.eq.s32.totalorder %v2645, 1
        %vm2662 = vcmp.eq.s32.totalorder %v2646, 1
        %vm2663 = vcmp.eq.s32.totalorder %v2647, 1
        %vm2664 = vcmp.eq.s32.totalorder %v2648, 1
        %vm2665 = vcmp.eq.s32.totalorder %v2649, 1
        %v2666 = vsel %vm2650, %v2445, 0.0
        %v2667 = vsel %vm2651, %v2447, 0.0
        %v2668 = vsel %vm2652, %v2449, 0.0
        %v2669 = vsel %vm2653, %v2451, 0.0
        %v2670 = vsel %vm2654, %v2453, 0.0
        %v2671 = vsel %vm2655, %v2455, 0.0
        %v2672 = vsel %vm2656, %v2457, 0.0
        %v2673 = vsel %vm2657, %v2459, 0.0
        %v2674 = vsel %vm2658, %v2461, 0.0
        %v2675 = vsel %vm2659, %v2463, 0.0
        %v2676 = vsel %vm2660, %v2465, 0.0
        %v2677 = vsel %vm2661, %v2467, 0.0
        %v2678 = vsel %vm2662, %v2469, 0.0
        %v2679 = vsel %vm2663, %v2471, 0.0
        %v2680 = vsel %vm2664, %v2472, 0.0
        %v2681 = vsel %vm2665, %v2473, 0.0
        %2698 = vrot.lane.b32.xlu0 %v2666, 64
        %v2699 = vpop.permute.xlu0 %2698
        %2700 = vrot.lane.b32.xlu0 %v2667, 64
        %v2701 = vpop.permute.xlu0 %2700
        %2702 = vrot.lane.b32.xlu0 %v2668, 64
        %v2703 = vpop.permute.xlu0 %2702
        %2704 = vrot.lane.b32.xlu0 %v2669, 64
        %v2705 = vpop.permute.xlu0 %2704
        %2706 = vrot.lane.b32.xlu0 %v2670, 64
        %v2707 = vpop.permute.xlu0 %2706
        %2708 = vrot.lane.b32.xlu0 %v2671, 64
        %v2709 = vpop.permute.xlu0 %2708
        %2710 = vrot.lane.b32.xlu0 %v2672, 64
        %v2711 = vpop.permute.xlu0 %2710
        %2712 = vrot.lane.b32.xlu0 %v2673, 64
        %v2713 = vpop.permute.xlu0 %2712
        %2714 = vrot.lane.b32.xlu0 %v2674, 64
        %v2715 = vpop.permute.xlu0 %2714
        %2716 = vrot.lane.b32.xlu0 %v2675, 64
        %v2717 = vpop.permute.xlu0 %2716
        %2718 = vrot.lane.b32.xlu0 %v2676, 64
        %v2719 = vpop.permute.xlu0 %2718
        %2720 = vrot.lane.b32.xlu0 %v2677, 64
        %v2721 = vpop.permute.xlu0 %2720
        %2722 = vrot.lane.b32.xlu0 %v2678, 64
        %v2723 = vpop.permute.xlu0 %2722
        %2724 = vrot.lane.b32.xlu0 %v2679, 64
        %v2725 = vpop.permute.xlu0 %2724
        %2726 = vrot.lane.b32.xlu0 %v2680, 64
        %v2727 = vpop.permute.xlu0 %2726
        %2728 = vrot.lane.b32.xlu0 %v2681, 64
        %v2729 = vpop.permute.xlu0 %2728
        %v2746 = vadd.f32 %v2602, %v2699
        %v2747 = vadd.f32 %v2603, %v2701
        %v2748 = vadd.f32 %v2604, %v2703
        %v2749 = vadd.f32 %v2605, %v2705
        %v2750 = vadd.f32 %v2606, %v2707
        %v2751 = vadd.f32 %v2607, %v2709
        %v2752 = vadd.f32 %v2608, %v2711
        %v2753 = vadd.f32 %v2609, %v2713
        %v2754 = vadd.f32 %v2610, %v2715
        %v2755 = vadd.f32 %v2611, %v2717
        %v2756 = vadd.f32 %v2612, %v2719
        %v2757 = vadd.f32 %v2613, %v2721
        %v2758 = vadd.f32 %v2614, %v2723
        %v2759 = vadd.f32 %v2615, %v2725
        %v2760 = vadd.f32 %v2616, %v2727
        %v2761 = vadd.f32 %v2617, %v2729
        %v2762 = vld [vmem:[#allocation10] sm:$0x1]
        %v2764 = vlaneseq
        %v2765 = vshrl.u32 %v2764, 7
        %v2766 = vsub.s32 0, %v2765
        %v2767 = vrot.slane %v2762, %v2766
        %2768 = vrot.lane.b32.xlu0 %v2767, 64
        %v2769 = vpop.permute.xlu0 %2768
        %v2771 = vadd.f32 %v2746, %v2769
        %v2772 = vadd.f32 %v2747, %v2769
        %v2773 = vadd.f32 %v2748, %v2769
        %v2774 = vadd.f32 %v2749, %v2769
        %v2775 = vadd.f32 %v2750, %v2769
        %v2776 = vadd.f32 %v2751, %v2769
        %v2777 = vadd.f32 %v2752, %v2769
        %v2778 = vadd.f32 %v2753, %v2769
        %v2779 = vadd.f32 %v2754, %v2769
        %v2780 = vadd.f32 %v2755, %v2769
        %v2781 = vadd.f32 %v2756, %v2769
        %v2782 = vadd.f32 %v2757, %v2769
        %v2783 = vadd.f32 %v2758, %v2769
        %v2784 = vadd.f32 %v2759, %v2769
        %v2785 = vadd.f32 %v2760, %v2769
        %v2786 = vadd.f32 %v2761, %v2769
        %v2787 = vsub.f32 0.0, %v2771
        %v2788 = vsub.f32 0.0, %v2772
        %v2789 = vsub.f32 0.0, %v2773
        %v2790 = vsub.f32 0.0, %v2774
        %v2791 = vsub.f32 0.0, %v2775
        %v2792 = vsub.f32 0.0, %v2776
        %v2793 = vsub.f32 0.0, %v2777
        %v2794 = vsub.f32 0.0, %v2778
        %v2795 = vsub.f32 0.0, %v2779
        %v2796 = vsub.f32 0.0, %v2780
        %v2797 = vsub.f32 0.0, %v2781
        %v2798 = vsub.f32 0.0, %v2782
        %v2799 = vsub.f32 0.0, %v2783
        %v2800 = vsub.f32 0.0, %v2784
        %v2801 = vsub.f32 0.0, %v2785
        %v2802 = vsub.f32 0.0, %v2786
        %v2803 = vmul.f32 %v2787, 1.442695
        %v2804 = vpow.pop %v2803
        %v2805 = vmul.f32 %v2788, 1.442695
        %v2806 = vpow.pop %v2805
        %v2807 = vmul.f32 %v2789, 1.442695
        %v2808 = vpow.pop %v2807
        %v2809 = vmul.f32 %v2790, 1.442695
        %v2810 = vpow.pop %v2809
        %v2811 = vmul.f32 %v2791, 1.442695
        %v2812 = vpow.pop %v2811
        %v2813 = vmul.f32 %v2792, 1.442695
        %v2814 = vpow.pop %v2813
        %v2815 = vmul.f32 %v2793, 1.442695
        %v2816 = vpow.pop %v2815
        %v2817 = vmul.f32 %v2794, 1.442695
        %v2818 = vpow.pop %v2817
        %v2819 = vmul.f32 %v2795, 1.442695
        %v2820 = vpow.pop %v2819
        %v2821 = vmul.f32 %v2796, 1.442695
        %v2822 = vpow.pop %v2821
        %v2823 = vmul.f32 %v2797, 1.442695
        %v2824 = vpow.pop %v2823
        %v2825 = vmul.f32 %v2798, 1.442695
        %v2826 = vpow.pop %v2825
        %v2827 = vmul.f32 %v2799, 1.442695
        %v2828 = vpow.pop %v2827
        %v2829 = vmul.f32 %v2800, 1.442695
        %v2830 = vpow.pop %v2829
        %v2831 = vmul.f32 %v2801, 1.442695
        %v2832 = vpow.pop %v2831
        %v2833 = vmul.f32 %v2802, 1.442695
        %v2834 = vpow.pop %v2833
        %v2835 = vadd.f32 %v2804, 1.0
        %v2836 = vadd.f32 %v2806, 1.0
        %v2837 = vadd.f32 %v2808, 1.0
        %v2838 = vadd.f32 %v2810, 1.0
        %v2839 = vadd.f32 %v2812, 1.0
        %v2840 = vadd.f32 %v2814, 1.0
        %v2841 = vadd.f32 %v2816, 1.0
        %v2842 = vadd.f32 %v2818, 1.0
        %v2843 = vadd.f32 %v2820, 1.0
        %v2844 = vadd.f32 %v2822, 1.0
        %v2845 = vadd.f32 %v2824, 1.0
        %v2846 = vadd.f32 %v2826, 1.0
        %v2847 = vadd.f32 %v2828, 1.0
        %v2848 = vadd.f32 %v2830, 1.0
        %v2849 = vadd.f32 %v2832, 1.0
        %v2850 = vadd.f32 %v2834, 1.0
        %v2851 = vrcp.pop %v2835
        %v2852 = vrcp.pop %v2836
        %v2853 = vrcp.pop %v2837
        %v2854 = vrcp.pop %v2838
        %v2855 = vrcp.pop %v2839
        %v2856 = vrcp.pop %v2840
        %v2857 = vrcp.pop %v2841
        %v2858 = vrcp.pop %v2842
        %v2859 = vrcp.pop %v2843
        %v2860 = vrcp.pop %v2844
        %v2861 = vrcp.pop %v2845
        %v2862 = vrcp.pop %v2846
        %v2863 = vrcp.pop %v2847
        %v2864 = vrcp.pop %v2848
        %v2865 = vrcp.pop %v2849
        %v2866 = vrcp.pop %v2850
        %v2867 = vmul.f32 %v2771, %v2851
        %v2868 = vmul.f32 %v2772, %v2852
        %v2869 = vmul.f32 %v2773, %v2853
        %v2870 = vmul.f32 %v2774, %v2854
        %v2871 = vmul.f32 %v2775, %v2855
        %v2872 = vmul.f32 %v2776, %v2856
        %v2873 = vmul.f32 %v2777, %v2857
        %v2874 = vmul.f32 %v2778, %v2858
        %v2875 = vmul.f32 %v2779, %v2859
        %v2876 = vmul.f32 %v2780, %v2860
        %v2877 = vmul.f32 %v2781, %v2861
        %v2878 = vmul.f32 %v2782, %v2862
        %v2879 = vmul.f32 %v2783, %v2863
        %v2880 = vmul.f32 %v2784, %v2864
        %v2881 = vmul.f32 %v2785, %v2865
        %v2882 = vmul.f32 %v2786, %v2866
        %v2883 = vpack.c.bf16 %v2868, %v2867
        %v2884 = vpack.c.bf16 %v2870, %v2869
        %v2885 = vpack.c.bf16 %v2872, %v2871
        %v2886 = vpack.c.bf16 %v2874, %v2873
        %v2887 = vpack.c.bf16 %v2876, %v2875
        %v2888 = vpack.c.bf16 %v2878, %v2877
        %v2889 = vpack.c.bf16 %v2880, %v2879
        %v2890 = vpack.c.bf16 %v2882, %v2881
        %v2891 = vld [vmem:[%s9] sm:$0xf]
        %v2892 = vld [vmem:[%s9 + $0x4] sm:$0xf]
        %v2893 = vld [vmem:[%s9 + $0x8] sm:$0xf]
        %v2894 = vld [vmem:[%s9 + $0xc] sm:$0xf]
        %v2895 = vld [vmem:[%s9 + $0x10] sm:$0xf]
        %v2896 = vld [vmem:[%s9 + $0x14] sm:$0xf]
        %v2897 = vld [vmem:[%s9 + $0x18] sm:$0xf]
        %v2898 = vld [vmem:[%s9 + $0x1c] sm:$0xf]
        %v2899 = vld [vmem:[%s9 + $0x20] sm:$0xf]
        %v2900 = vld [vmem:[%s9 + $0x24] sm:$0xf]
        %v2901 = vld [vmem:[%s9 + $0x28] sm:$0xf]
        %v2902 = vld [vmem:[%s9 + $0x2c] sm:$0xf]
        %v2903 = vld [vmem:[%s9 + $0x30] sm:$0xf]
        %v2904 = vld [vmem:[%s9 + $0x34] sm:$0xf]
        %v2905 = vld [vmem:[%s9 + $0x38] sm:$0xf]
        %v2906 = vld [vmem:[%s9 + $0x3c] sm:$0xf]
        %v2907 = vld [vmem:[%s9] sm:$0xf]
        %v2908 = vld [vmem:[%s9 + $0x4] sm:$0xf]
        %v2909 = vld [vmem:[%s9 + $0x8] sm:$0xf]
        %v2910 = vld [vmem:[%s9 + $0xc] sm:$0xf]
        %v2911 = vld [vmem:[%s9 + $0x10] sm:$0xf]
        %v2912 = vld [vmem:[%s9 + $0x14] sm:$0xf]
        %v2913 = vld [vmem:[%s9 + $0x18] sm:$0xf]
        %v2914 = vld [vmem:[%s9 + $0x1c] sm:$0xf]
        %2923 = vrot.lane.b32.xlu0 %v2883, 64
        %v2924 = vpop.permute.xlu0 %2923
        %2925 = vrot.lane.b32.xlu0 %v2884, 64
        %v2926 = vpop.permute.xlu0 %2925
        %2927 = vrot.lane.b32.xlu0 %v2885, 64
        %v2928 = vpop.permute.xlu0 %2927
        %2929 = vrot.lane.b32.xlu0 %v2886, 64
        %v2930 = vpop.permute.xlu0 %2929
        %2931 = vrot.lane.b32.xlu0 %v2887, 64
        %v2932 = vpop.permute.xlu0 %2931
        %2933 = vrot.lane.b32.xlu0 %v2888, 64
        %v2934 = vpop.permute.xlu0 %2933
        %2935 = vrot.lane.b32.xlu0 %v2889, 64
        %v2936 = vpop.permute.xlu0 %2935
        %2937 = vrot.lane.b32.xlu0 %v2890, 64
        %v2938 = vpop.permute.xlu0 %2937
        %v2947 = vunpack.c.l.b16 %v2907
        %v2948 = vunpack.c.l.b16 %v2908
        %v2949 = vunpack.c.l.b16 %v2909
        %v2950 = vunpack.c.l.b16 %v2910
        %v2951 = vunpack.c.l.b16 %v2911
        %v2952 = vunpack.c.l.b16 %v2912
        %v2953 = vunpack.c.l.b16 %v2913
        %v2954 = vunpack.c.l.b16 %v2914
        %v2955 = vpack.c.b16 %v2948, %v2947
        %v2956 = vpack.c.b16 %v2950, %v2949
        %v2957 = vpack.c.b16 %v2952, %v2951
        %v2958 = vpack.c.b16 %v2954, %v2953
        %v2964 = vsel %vm1879, %v2924, 0
        %v2967 = vsel %vm1879, %v2926, 0
        %v2970 = vsel %vm1879, %v2928, 0
        %v2973 = vsel %vm1879, %v2930, 0
        %v2976 = vsel %vm1879, %v2932, 0
        %v2979 = vsel %vm1879, %v2934, 0
        %v2982 = vsel %vm1879, %v2936, 0
        %v2985 = vsel %vm1879, %v2938, 0
        %2987 = vmatprep.subr.bf16.mxu0 0
        %2988 = vmatpush1.bf16.msra.mxu0 %v2955
        %2989 = vmatprep.subr.bf16.mxu0 0
        %2990 = vmatpush1.bf16.msra.mxu0 %v2956
        %2991 = vmatprep.subr.bf16.mxu0 0
        %2992 = vmatpush1.bf16.msra.mxu0 %v2957
        %2993 = vmatprep.subr.bf16.mxu0 0
        %2994 = vmatpush1.bf16.msra.mxu0 %v2958
        %2995 = vmatprep.subr.bf16.mxu0 0
        %2996 = vmatpush1.bf16.msra.mxu0 0
        %2997 = vmatprep.subr.bf16.mxu0 0
        %2998 = vmatpush1.bf16.msra.mxu0 0
        %2999 = vmatprep.subr.bf16.mxu0 0
        %3000 = vmatpush1.bf16.msra.mxu0 0
        %3001 = vmatprep.subr.bf16.mxu0 0
        %3002 = vmatpush1.bf16.msra.mxu0 0
        %3003 = vmatprep.subr.bf16.mxu0 0
        %3004 = vmatpush1.bf16.msra.mxu0 0
        %3005 = vmatprep.subr.bf16.mxu0 0
        %3006 = vmatpush1.bf16.msra.mxu0 0
        %3007 = vmatprep.subr.bf16.mxu0 0
        %3008 = vmatpush1.bf16.msra.mxu0 0
        %3009 = vmatprep.subr.bf16.mxu0 0
        %3010 = vmatpush1.bf16.msra.mxu0 0
        %3011 = vmatprep.subr.bf16.mxu0 0
        %3012 = vmatpush1.bf16.msra.mxu0 0
        %3013 = vmatprep.subr.bf16.mxu0 0
        %3014 = vmatpush1.bf16.msra.mxu0 0
        %3015 = vmatprep.subr.bf16.mxu0 0
        %3016 = vmatpush1.bf16.msra.mxu0 0
        %3017 = vmatprep.subr.bf16.mxu0 0
        %3018 = vmatpush1.bf16.msra.mxu0 0
        %3019 = vmatprep.mubr.bf16.mxu0 0
        %3020 = vmatmul.mubr.bf16.gmra.mrb[0].mxu0 %v2964
        %v3021 = vpop.f32.mrb[0].mxu0
        %v3022 = vadd.f32 0.0, %v3021
        %v3023 = vpop.f32.mrb[0].mxu0
        %v3024 = vpop.f32.mrb[0].mxu0
        %v3025 = vadd.f32 0.0, %v3024
        %v3026 = vpop.f32.mrb[0].mxu0
        %3027 = vmatprep.mubr.bf16.mxu0 0
        %3028 = vmatmul.mubr.bf16.gmra.mrb[0].mxu0 %v2967
        %v3029 = vpop.f32.mrb[0].mxu0
        %v3030 = vadd.f32 0.0, %v3029
        %v3031 = vpop.f32.mrb[0].mxu0
        %v3032 = vpop.f32.mrb[0].mxu0
        %v3033 = vadd.f32 0.0, %v3032
        %v3034 = vpop.f32.mrb[0].mxu0
        %3035 = vmatprep.mubr.bf16.mxu0 0
        %3036 = vmatmul.mubr.bf16.gmra.mrb[0].mxu0 %v2970
        %v3037 = vpop.f32.mrb[0].mxu0
        %v3038 = vadd.f32 0.0, %v3037
        %v3039 = vpop.f32.mrb[0].mxu0
        %v3040 = vpop.f32.mrb[0].mxu0
        %v3041 = vadd.f32 0.0, %v3040
        %v3042 = vpop.f32.mrb[0].mxu0
        %3043 = vmatprep.mubr.bf16.mxu0 0
        %3044 = vmatmul.mubr.bf16.gmra.mrb[0].mxu0 %v2973
        %v3045 = vpop.f32.mrb[0].mxu0
        %v3046 = vadd.f32 0.0, %v3045
        %v3047 = vpop.f32.mrb[0].mxu0
        %v3048 = vpop.f32.mrb[0].mxu0
        %v3049 = vadd.f32 0.0, %v3048
        %v3050 = vpop.f32.mrb[0].mxu0
        %3051 = vmatprep.mubr.bf16.mxu0 0
        %3052 = vmatmul.mubr.bf16.gmra.mrb[0].mxu0 %v2976
        %v3053 = vpop.f32.mrb[0].mxu0
        %v3054 = vadd.f32 0.0, %v3053
        %v3055 = vpop.f32.mrb[0].mxu0
        %v3056 = vpop.f32.mrb[0].mxu0
        %v3057 = vadd.f32 0.0, %v3056
        %v3058 = vpop.f32.mrb[0].mxu0
        %3059 = vmatprep.mubr.bf16.mxu0 0
        %3060 = vmatmul.mubr.bf16.gmra.mrb[0].mxu0 %v2979
        %v3061 = vpop.f32.mrb[0].mxu0
        %v3062 = vadd.f32 0.0, %v3061
        %v3063 = vpop.f32.mrb[0].mxu0
        %v3064 = vpop.f32.mrb[0].mxu0
        %v3065 = vadd.f32 0.0, %v3064
        %v3066 = vpop.f32.mrb[0].mxu0
        %3067 = vmatprep.mubr.bf16.mxu0 0
        %3068 = vmatmul.mubr.bf16.gmra.mrb[0].mxu0 %v2982
        %v3069 = vpop.f32.mrb[0].mxu0
        %v3070 = vadd.f32 0.0, %v3069
        %v3071 = vpop.f32.mrb[0].mxu0
        %v3072 = vpop.f32.mrb[0].mxu0
        %v3073 = vadd.f32 0.0, %v3072
        %v3074 = vpop.f32.mrb[0].mxu0
        %3075 = vmatprep.mubr.bf16.mxu0 0
        %3076 = vmatmul.mubr.bf16.gmra.mrb[0].mxu0 %v2985
        %v3077 = vpop.f32.mrb[0].mxu0
        %v3078 = vadd.f32 0.0, %v3077
        %v3079 = vpop.f32.mrb[0].mxu0
        %v3080 = vpop.f32.mrb[0].mxu0
        %v3081 = vadd.f32 0.0, %v3080
        %v3082 = vpop.f32.mrb[0].mxu0
        %3083 = vdwg.mxu0
        %v3100 = vunpack.c.l.b16 %v2891
        %v3101 = vunpack.c.l.b16 %v2892
        %v3102 = vunpack.c.l.b16 %v2893
        %v3103 = vunpack.c.l.b16 %v2894
        %v3104 = vunpack.c.l.b16 %v2895
        %v3105 = vunpack.c.l.b16 %v2896
        %v3106 = vunpack.c.l.b16 %v2897
        %v3107 = vunpack.c.l.b16 %v2898
        %v3108 = vunpack.c.l.b16 %v2899
        %v3109 = vunpack.c.l.b16 %v2900
        %v3110 = vunpack.c.l.b16 %v2901
        %v3111 = vunpack.c.l.b16 %v2902
        %v3112 = vunpack.c.l.b16 %v2903
        %v3113 = vunpack.c.l.b16 %v2904
        %v3114 = vunpack.c.l.b16 %v2905
        %v3115 = vunpack.c.l.b16 %v2906
        %v3116 = vpack.c.b16 %v3101, %v3100
        %v3117 = vpack.c.b16 %v3103, %v3102
        %v3118 = vpack.c.b16 %v3105, %v3104
        %v3119 = vpack.c.b16 %v3107, %v3106
        %v3120 = vpack.c.b16 %v3109, %v3108
        %v3121 = vpack.c.b16 %v3111, %v3110
        %v3122 = vpack.c.b16 %v3113, %v3112
        %v3123 = vpack.c.b16 %v3115, %v3114
        %3132 = vmatprep.subr.bf16.mxu0 0
        %3133 = vmatpush1.bf16.msra.mxu0 %v3116
        %3134 = vmatprep.subr.bf16.mxu0 0
        %3135 = vmatpush1.bf16.msra.mxu0 %v3117
        %3136 = vmatprep.subr.bf16.mxu0 0
        %3137 = vmatpush1.bf16.msra.mxu0 %v3118
        %3138 = vmatprep.subr.bf16.mxu0 0
        %3139 = vmatpush1.bf16.msra.mxu0 %v3119
        %3140 = vmatprep.subr.bf16.mxu0 0
        %3141 = vmatpush1.bf16.msra.mxu0 %v3120
        %3142 = vmatprep.subr.bf16.mxu0 0
        %3143 = vmatpush1.bf16.msra.mxu0 %v3121
        %3144 = vmatprep.subr.bf16.mxu0 0
        %3145 = vmatpush1.bf16.msra.mxu0 %v3122
        %3146 = vmatprep.subr.bf16.mxu0 0
        %3147 = vmatpush1.bf16.msra.mxu0 %v3123
        %3148 = vmatprep.subr.bf16.mxu0 0
        %3149 = vmatpush1.bf16.msra.mxu0 0
        %3150 = vmatprep.subr.bf16.mxu0 0
        %3151 = vmatpush1.bf16.msra.mxu0 0
        %3152 = vmatprep.subr.bf16.mxu0 0
        %3153 = vmatpush1.bf16.msra.mxu0 0
        %3154 = vmatprep.subr.bf16.mxu0 0
        %3155 = vmatpush1.bf16.msra.mxu0 0
        %3156 = vmatprep.subr.bf16.mxu0 0
        %3157 = vmatpush1.bf16.msra.mxu0 0
        %3158 = vmatprep.subr.bf16.mxu0 0
        %3159 = vmatpush1.bf16.msra.mxu0 0
        %3160 = vmatprep.subr.bf16.mxu0 0
        %3161 = vmatpush1.bf16.msra.mxu0 0
        %3162 = vmatprep.subr.bf16.mxu0 0
        %3163 = vmatpush1.bf16.msra.mxu0 0
        %3164 = vmatprep.mubr.bf16.mxu0 0
        %3165 = vmatmul.mubr.bf16.gmra.mrb[0].mxu0 %v957
        %v3166 = vpop.f32.mrb[0].mxu0
        %v3167 = vadd.f32 %v3022, %v3166
        %v3168 = vpop.f32.mrb[0].mxu0
        %v3169 = vpop.f32.mrb[0].mxu0
        %v3170 = vadd.f32 %v3025, %v3169
        %v3171 = vpop.f32.mrb[0].mxu0
        %3172 = vmatprep.mubr.bf16.mxu0 0
        %3173 = vmatmul.mubr.bf16.gmra.mrb[0].mxu0 %v958
        %v3174 = vpop.f32.mrb[0].mxu0
        %v3175 = vadd.f32 %v3030, %v3174
        %v3176 = vpop.f32.mrb[0].mxu0
        %v3177 = vpop.f32.mrb[0].mxu0
        %v3178 = vadd.f32 %v3033, %v3177
        %v3179 = vpop.f32.mrb[0].mxu0
        %3180 = vmatprep.mubr.bf16.mxu0 0
        %3181 = vmatmul.mubr.bf16.gmra.mrb[0].mxu0 %v959
        %v3182 = vpop.f32.mrb[0].mxu0
        %v3183 = vadd.f32 %v3038, %v3182
        %v3184 = vpop.f32.mrb[0].mxu0
        %v3185 = vpop.f32.mrb[0].mxu0
        %v3186 = vadd.f32 %v3041, %v3185
        %v3187 = vpop.f32.mrb[0].mxu0
        %3188 = vmatprep.mubr.bf16.mxu0 0
        %3189 = vmatmul.mubr.bf16.gmra.mrb[0].mxu0 %v960
        %v3190 = vpop.f32.mrb[0].mxu0
        %v3191 = vadd.f32 %v3046, %v3190
        %v3192 = vpop.f32.mrb[0].mxu0
        %v3193 = vpop.f32.mrb[0].mxu0
        %v3194 = vadd.f32 %v3049, %v3193
        %v3195 = vpop.f32.mrb[0].mxu0
        %3196 = vmatprep.mubr.bf16.mxu0 0
        %3197 = vmatmul.mubr.bf16.gmra.mrb[0].mxu0 %v961
        %v3198 = vpop.f32.mrb[0].mxu0
        %v3199 = vadd.f32 %v3054, %v3198
        %v3200 = vpop.f32.mrb[0].mxu0
        %v3201 = vpop.f32.mrb[0].mxu0
        %v3202 = vadd.f32 %v3057, %v3201
        %v3203 = vpop.f32.mrb[0].mxu0
        %3204 = vmatprep.mubr.bf16.mxu0 0
        %3205 = vmatmul.mubr.bf16.gmra.mrb[0].mxu0 %v962
        %v3206 = vpop.f32.mrb[0].mxu0
        %v3207 = vadd.f32 %v3062, %v3206
        %v3208 = vpop.f32.mrb[0].mxu0
        %v3209 = vpop.f32.mrb[0].mxu0
        %v3210 = vadd.f32 %v3065, %v3209
        %v3211 = vpop.f32.mrb[0].mxu0
        %3212 = vmatprep.mubr.bf16.mxu0 0
        %3213 = vmatmul.mubr.bf16.gmra.mrb[0].mxu0 %v963
        %v3214 = vpop.f32.mrb[0].mxu0
        %v3215 = vadd.f32 %v3070, %v3214
        %v3216 = vpop.f32.mrb[0].mxu0
        %v3217 = vpop.f32.mrb[0].mxu0
        %v3218 = vadd.f32 %v3073, %v3217
        %v3219 = vpop.f32.mrb[0].mxu0
        %3220 = vmatprep.mubr.bf16.mxu0 0
        %3221 = vmatmul.mubr.bf16.gmra.mrb[0].mxu0 %v964
        %v3222 = vpop.f32.mrb[0].mxu0
        %v3223 = vadd.f32 %v3078, %v3222
        %v3224 = vpop.f32.mrb[0].mxu0
        %v3225 = vpop.f32.mrb[0].mxu0
        %v3226 = vadd.f32 %v3081, %v3225
        %v3227 = vpop.f32.mrb[0].mxu0
        %3228 = vdwg.mxu0
        %v3229 = vld [vmem:[%s10] sm:$0x1]
        %v3231 = vlaneseq
        %v3232 = vshrl.u32 %v3231, 7
        %v3233 = vsub.s32 0, %v3232
        %v3234 = vrot.slane %v3229, %v3233
        %v3236 = vadd.f32 %v3167, %v3234
        %v3237 = vadd.f32 %v3170, %v3234
        %v3238 = vadd.f32 %v3175, %v3234
        %v3239 = vadd.f32 %v3178, %v3234
        %v3240 = vadd.f32 %v3183, %v3234
        %v3241 = vadd.f32 %v3186, %v3234
        %v3242 = vadd.f32 %v3191, %v3234
        %v3243 = vadd.f32 %v3194, %v3234
        %v3244 = vadd.f32 %v3199, %v3234
        %v3245 = vadd.f32 %v3202, %v3234
        %v3246 = vadd.f32 %v3207, %v3234
        %v3247 = vadd.f32 %v3210, %v3234
        %v3248 = vadd.f32 %v3215, %v3234
        %v3249 = vadd.f32 %v3218, %v3234
        %v3250 = vadd.f32 %v3223, %v3234
        %v3251 = vadd.f32 %v3226, %v3234
        %v3252 = vsub.f32 0.0, %v3236
        %v3253 = vsub.f32 0.0, %v3237
        %v3254 = vsub.f32 0.0, %v3238
        %v3255 = vsub.f32 0.0, %v3239
        %v3256 = vsub.f32 0.0, %v3240
        %v3257 = vsub.f32 0.0, %v3241
        %v3258 = vsub.f32 0.0, %v3242
        %v3259 = vsub.f32 0.0, %v3243
        %v3260 = vsub.f32 0.0, %v3244
        %v3261 = vsub.f32 0.0, %v3245
        %v3262 = vsub.f32 0.0, %v3246
        %v3263 = vsub.f32 0.0, %v3247
        %v3264 = vsub.f32 0.0, %v3248
        %v3265 = vsub.f32 0.0, %v3249
        %v3266 = vsub.f32 0.0, %v3250
        %v3267 = vsub.f32 0.0, %v3251
        %v3268 = vmul.f32 %v3252, 1.442695
        %v3269 = vpow.pop %v3268
        %v3270 = vmul.f32 %v3253, 1.442695
        %v3271 = vpow.pop %v3270
        %v3272 = vmul.f32 %v3254, 1.442695
        %v3273 = vpow.pop %v3272
        %v3274 = vmul.f32 %v3255, 1.442695
        %v3275 = vpow.pop %v3274
        %v3276 = vmul.f32 %v3256, 1.442695
        %v3277 = vpow.pop %v3276
        %v3278 = vmul.f32 %v3257, 1.442695
        %v3279 = vpow.pop %v3278
        %v3280 = vmul.f32 %v3258, 1.442695
        %v3281 = vpow.pop %v3280
        %v3282 = vmul.f32 %v3259, 1.442695
        %v3283 = vpow.pop %v3282
        %v3284 = vmul.f32 %v3260, 1.442695
        %v3285 = vpow.pop %v3284
        %v3286 = vmul.f32 %v3261, 1.442695
        %v3287 = vpow.pop %v3286
        %v3288 = vmul.f32 %v3262, 1.442695
        %v3289 = vpow.pop %v3288
        %v3290 = vmul.f32 %v3263, 1.442695
        %v3291 = vpow.pop %v3290
        %v3292 = vmul.f32 %v3264, 1.442695
        %v3293 = vpow.pop %v3292
        %v3294 = vmul.f32 %v3265, 1.442695
        %v3295 = vpow.pop %v3294
        %v3296 = vmul.f32 %v3266, 1.442695
        %v3297 = vpow.pop %v3296
        %v3298 = vmul.f32 %v3267, 1.442695
        %v3299 = vpow.pop %v3298
        %v3300 = vadd.f32 %v3269, 1.0
        %v3301 = vadd.f32 %v3271, 1.0
        %v3302 = vadd.f32 %v3273, 1.0
        %v3303 = vadd.f32 %v3275, 1.0
        %v3304 = vadd.f32 %v3277, 1.0
        %v3305 = vadd.f32 %v3279, 1.0
        %v3306 = vadd.f32 %v3281, 1.0
        %v3307 = vadd.f32 %v3283, 1.0
        %v3308 = vadd.f32 %v3285, 1.0
        %v3309 = vadd.f32 %v3287, 1.0
        %v3310 = vadd.f32 %v3289, 1.0
        %v3311 = vadd.f32 %v3291, 1.0
        %v3312 = vadd.f32 %v3293, 1.0
        %v3313 = vadd.f32 %v3295, 1.0
        %v3314 = vadd.f32 %v3297, 1.0
        %v3315 = vadd.f32 %v3299, 1.0
        %v3316 = vrcp.pop %v3300
        %v3317 = vrcp.pop %v3301
        %v3318 = vrcp.pop %v3302
        %v3319 = vrcp.pop %v3303
        %v3320 = vrcp.pop %v3304
        %v3321 = vrcp.pop %v3305
        %v3322 = vrcp.pop %v3306
        %v3323 = vrcp.pop %v3307
        %v3324 = vrcp.pop %v3308
        %v3325 = vrcp.pop %v3309
        %v3326 = vrcp.pop %v3310
        %v3327 = vrcp.pop %v3311
        %v3328 = vrcp.pop %v3312
        %v3329 = vrcp.pop %v3313
        %v3330 = vrcp.pop %v3314
        %v3331 = vrcp.pop %v3315
        %v3332 = vmul.f32 %v3236, %v3316
        %v3333 = vmul.f32 %v3237, %v3317
        %v3334 = vmul.f32 %v3238, %v3318
        %v3335 = vmul.f32 %v3239, %v3319
        %v3336 = vmul.f32 %v3240, %v3320
        %v3337 = vmul.f32 %v3241, %v3321
        %v3338 = vmul.f32 %v3242, %v3322
        %v3339 = vmul.f32 %v3243, %v3323
        %v3340 = vmul.f32 %v3244, %v3324
        %v3341 = vmul.f32 %v3245, %v3325
        %v3342 = vmul.f32 %v3246, %v3326
        %v3343 = vmul.f32 %v3247, %v3327
        %v3344 = vmul.f32 %v3248, %v3328
        %v3345 = vmul.f32 %v3249, %v3329
        %v3346 = vmul.f32 %v3250, %v3330
        %v3347 = vmul.f32 %v3251, %v3331
        %3348 = vst [vmem:[%s558] sm:$0xff] %v3332
        %3349 = vst [vmem:[%s558 + $0x8] sm:$0xff] %v3333
        %3350 = vst [vmem:[%s558 + $0x10] sm:$0xff] %v3334
        %3351 = vst [vmem:[%s558 + $0x18] sm:$0xff] %v3335
        %3352 = vst [vmem:[%s558 + $0x20] sm:$0xff] %v3336
        %3353 = vst [vmem:[%s558 + $0x28] sm:$0xff] %v3337
        %3354 = vst [vmem:[%s558 + $0x30] sm:$0xff] %v3338
        %3355 = vst [vmem:[%s558 + $0x38] sm:$0xff] %v3339
        %3356 = vst [vmem:[%s558 + $0x40] sm:$0xff] %v3340
        %3357 = vst [vmem:[%s558 + $0x48] sm:$0xff] %v3341
        %3358 = vst [vmem:[%s558 + $0x50] sm:$0xff] %v3342
        %3359 = vst [vmem:[%s558 + $0x58] sm:$0xff] %v3343
        %3360 = vst [vmem:[%s558 + $0x60] sm:$0xff] %v3344
        %3361 = vst [vmem:[%s558 + $0x68] sm:$0xff] %v3345
        %3362 = vst [vmem:[%s558 + $0x70] sm:$0xff] %v3346
        %3363 = vst [vmem:[%s558 + $0x78] sm:$0xff] %v3347
        %s3364 = sand.u32 %s322, 1
        %s3365 = scalar_lea.sflag [#allocation4], %s3364
        %s3366 = sand.u32 %s322, 1
        %s3367 = smul.addr %s3366, 128
        %s3368 = scalar_lea.vmem [#allocation11], %s3367
        // Predicated region
        $region85: #{tpu_custom_call.1} parent=63 // pred_check
          %p3369 = pneg %p332
        $region86: #{tpu_custom_call.1} parent=63 // pred_check_branch
          %3371 = sbr.rel (%p3369) target = $region88
        $region87: #{tpu_custom_call.1} parent=63 // pred_region
          %s3372 = smul.u32 16, %s37
          %s3374 = ssub.s32 2048, 2048
          %3375 = vsyncadd %s3365, %s3374
          %s3376 = smul.addr %s36, 32
          %s3377 = sadd.s32 %s3372, %s3376
          %s3378 = smul.addr %s3377, 128
          %s3379 = scalar_lea.hbm %s11, %s3378
          %s3380 = sshll.u32 %s3368, 4
          %s3381 = int_to_ptr.vmem [resolvable:$true] %s3380
          %3386 = dma.vmem_to_hbm [thread:$0]  %s3381, 2048, %s3379, %s3365, 128, 128, 8
        $region88: #{tpu_custom_call.1} parent=63 // pred_fallthru
          _
      $region64: #{tpu_custom_call.1} parent=5 // pred_fallthru
        _
      %p3387 = scmp.le.s32.totalorder 2, %s27
      // Predicated region
      $region89: #{tpu_custom_call.1} parent=5 // pred_check
        %p3388 = pneg %p3387
      $region90: #{tpu_custom_call.1} parent=5 // pred_check_branch
        %3390 = sbr.rel (%p3388) target = $region92
      $region91: #{tpu_custom_call.1} parent=5 // pred_region
        %s3391 = ssub.s32 %s27, 2
        // Predicated region
        $region93: #{tpu_custom_call.1} parent=91 // pred_check
          %p3392 = pneg %p338
        $region94: #{tpu_custom_call.1} parent=91 // pred_check_branch
          %3394 = sbr.rel (%p3392) target = $region96
        $region95: #{tpu_custom_call.1} parent=91 // pred_region
          %s3395 = sand.u32 %s323, 1
          %s3396 = scalar_lea.sflag [#allocation4], %s3395
          %s3397 = sand.u32 %s323, 1
          %s3398 = smul.addr %s3397, 128
          %s3399 = scalar_lea.vmem [#allocation11], %s3398
          %3400 = dma.done %s3396, 2048
        $region96: #{tpu_custom_call.1} parent=91 // pred_fallthru
          _
      $region92: #{tpu_custom_call.1} parent=5 // pred_fallthru
        _
    $region6: #{tpu_custom_call.1} parent=1 // loop_footer
      %s31 = sadd.s32 1, %s27
    $region7: #{tpu_custom_call.1} parent=1 // loop_footer_branch
      %26 = sbr.rel target = $region3
    $region8: #{tpu_custom_call.1} parent=1 // loop_exit
      _
    %3401 = vsyncpa [#allocation3], 1
    %s3402 = scalar_lea.sflag [#allocation3], 1
    %3403 = vsyncpa %s3402, 1
    %3404 = vsyncpa [#allocation6], 1
    %s3405 = scalar_lea.sflag [#allocation6], 1
    %3406 = vsyncpa %s3405, 1
    %3407 = vsyncpa [#allocation9], 1
    %3408 = vsyncpa [#allocation4], 1
    %s3409 = scalar_lea.sflag [#allocation4], 1
    %3410 = vsyncpa %s3409, 1

</llo_original>
